<compile_context>
chip_gen: v6e
topology: v6e:2x2x1
jax: 0.10.0
libtpu: 0.0.40
codegen_flags: <defaults>
</compile_context>

<pallas_src>
import functools

import jax
import jax.numpy as jnp
from jax.experimental import pallas as pl
from jax.experimental.pallas import tpu as pltpu


# --------------------------------------------------------------------------
# Fused ShuffleNetUnit kernel
# --------------------------------------------------------------------------

def _tap_slices(kh, kw, ho, wo, stride):
    """Static (row, col) slices of the padded (or phase-layout) buffer for a 3x3 tap."""
    if stride == 1:
        return slice(kh, kh + ho), slice(kw, kw + wo)

    def ph(k):  # stride 2: tap offset -> (parity phase, offset inside padded phase)
        return (1, 0) if k == 0 else ((0, 1) if k == 1 else (1, 1))

    pr, r0 = ph(kh)
    pc, c0 = ph(kw)
    base = (2 * pr + pc) * (ho + 1)
    return slice(base + r0, base + r0 + ho), slice(c0, c0 + wo)


def _unit_kernel(x_ref, wb_ref, bsc_ref, bbi_ref,
                 dww_ref, dwsc_ref, dwbi_ref,
                 we_ref, esc_ref, ebi_ref,
                 o_ref, ypad_ref, *, h, w, ho, wo, stride, downsample, cin):
    bt = x_ref.shape[0]
    cin_in = x_ref.shape[-1]
    cmid = wb_ref.shape[-1]
    cexp_pad = we_ref.shape[-1]
    cout_pad = o_ref.shape[-1]
    m = bt * ho * wo
    zdt = ypad_ref.dtype
    rows_pad = ypad_ref.shape[1]
    cols_pad = ypad_ref.shape[2]

    # ---- zero ONLY the 1-pixel border of the scratch; the interior is fully rewritten
    #      below every step, so no full memset is needed (and no per-core init issue).
    ypad_ref[:, :, 0:1, :] = jnp.zeros((bt, rows_pad, 1, cmid), zdt)
    if stride == 2:
        hp = ho + 1
        for q in range(4):
            ypad_ref[:, q * hp:q * hp + 1, :, :] = jnp.zeros((bt, 1, cols_pad, cmid), zdt)
    else:
        ypad_ref[:, 0:1, :, :] = jnp.zeros((bt, 1, cols_pad, cmid), zdt)
        ypad_ref[:, h + 1:h + 2, :, :] = jnp.zeros((bt, 1, cols_pad, cmid), zdt)
        ypad_ref[:, :, w + 1:w + 2, :] = jnp.zeros((bt, rows_pad, 1, cmid), zdt)

    # ---- 1x1 grouped bottleneck conv (block-diag dense -> one MXU matmul) + BN + ReLU,
    #      staged into the padded scratch (phase layout for stride 2) ----
    wb = wb_ref[...]
    bsc = bsc_ref[...]
    bbi = bbi_ref[...]
    x2 = None
    if stride == 2:
        hp = ho + 1
        for q in range(4):
            xq = x_ref[:, q * hp + 1:q * hp + 1 + ho, 1:1 + wo, :]          # (bt,ho,wo,cin_in)
            yq = jnp.dot(xq.reshape(m, cin_in).astype(jnp.bfloat16), wb,
                         preferred_element_type=jnp.float32)
            yq = jnp.maximum(yq * bsc + bbi, 0.0)
            ypad_ref[:, q * hp + 1:q * hp + 1 + ho, 1:1 + wo, :] = (
                yq.reshape(bt, ho, wo, cmid).astype(zdt))
    else:
        x4 = x_ref[:, 1:1 + h, 1:1 + w, :] if downsample else x_ref[...]
        x2 = x4.reshape(m, cin_in)                                          # ho==h, wo==w
        y = jnp.dot(x2.astype(jnp.bfloat16), wb, preferred_element_type=jnp.float32)
        y = jnp.maximum(y * bsc + bbi, 0.0)
        ypad_ref[:, 1:1 + h, 1:1 + w, :] = y.reshape(bt, h, w, cmid).astype(zdt)

    # ---- depthwise 3x3 conv + BN (ChannelShuffle pre-folded into dww/dwsc/dwbi);
    #      accumulate in (bt, ho, wo, cmid), one reshape after the tap loop ----
    dww = dww_ref[...]                                                       # (9, cmid), hoisted
    acc = jnp.zeros((bt, ho, wo, cmid), jnp.float32)
    for kh in range(3):
        for kw in range(3):
            rs, cs = _tap_slices(kh, kw, ho, wo, stride)
            t = 3 * kh + kw
            acc = acc + ypad_ref[:, rs, cs, :] * dww[t:t + 1].reshape(1, 1, 1, cmid)
    z = acc * dwsc_ref[...].reshape(1, 1, 1, cmid) + dwbi_ref[...].reshape(1, 1, 1, cmid)

    # ---- 1x1 grouped expand conv (dense block-diag, shuffle-permuted rows) + BN ----
    e = jnp.dot(z.reshape(m, cmid).astype(jnp.bfloat16), we_ref[...],
                preferred_element_type=jnp.float32)
    e = e * esc_ref[...] + ebi_ref[...]                                      # (m, cexp_pad)

    # ---- shortcut + fusion + final ReLU (lane-dense cout_pad-wide store) ----
    if downsample:  # AvgPool2d(3, stride, pad=1, count_include_pad) shortcut, concat fusion
        sacc = jnp.zeros((bt, ho, wo, cin_in), jnp.float32)
        for kh in range(3):
            for kw in range(3):
                rs, cs = _tap_slices(kh, kw, ho, wo, stride)
                sacc = sacc + x_ref[:, rs, cs, :]
        short = (sacc * (1.0 / 9.0)).reshape(m, cin_in)
        if cin_in != cin:
            short = short[:, :cin]
        out = jnp.maximum(jnp.concatenate([short, e], axis=-1), 0.0)
        o_ref[...] = out.reshape(bt, ho, wo, cout_pad).astype(o_ref.dtype)
    else:           # identity shortcut, add fusion (padded channels of x are exact zeros)
        out = jnp.maximum(x2 + e, 0.0)
        o_ref[...] = out.reshape(bt, ho, wo, cout_pad).astype(o_ref.dtype)


def _pick_batch_tile(n, per_image_bytes, requested=None, vmem_budget=24 << 20):
    """Batch tile: largest divisor of n that (a) keeps the double-buffered per-step VMEM
    footprint under ~24 MiB (headroom below v7x's 32 MiB scoped default) and (b) keeps
    >= 2 grid steps when possible so the 'parallel' batch axis can split across v7x's
    two TensorCores."""
    if requested is not None:
        assert n % requested == 0
        return requested
    cap = int(max(1, min(16, vmem_budget // max(per_image_bytes, 1))))
    divisors = [d for d in range(1, min(n, cap) + 1) if n % d == 0]
    for d in reversed(divisors):
        if n // d >= 2:
            return d
    return divisors[-1]


def shuffle_unit(x_nhwc, p, batch_tile=None):
    """Fused ShuffleNetUnit forward (inference).

    x_nhwc: (N, H, W, Cin_in) f32, NHWC; Cin_in may include zero-valued lane-padding
    channels from a previous unit.  Returns (N, Ho, Wo, cout_pad) with the channels
    beyond p['cout'] exactly zero (lane-dense output)."""
    n, h, w, cin_in = x_nhwc.shape
    stride, downsample = p["stride"], p["downsample"]
    cin, cout_pad = p["cin"], p["cout_pad"]
    assert cin_in == p["cin_in"], (cin_in, p["cin_in"])
    cmid = p["wb"].shape[1]
    ho = (h + 2 - 3) // stride + 1
    wo = (w + 2 - 3) // stride + 1

    if stride == 2:
        assert h % 2 == 0 and w % 2 == 0
        in_sp = (4 * (ho + 1), wo + 1)
    elif downsample:
        in_sp = (h + 2, w + 2)
    else:
        in_sp = (h, w)
    scr_sp = (4 * (ho + 1), wo + 1) if stride == 2 else (h + 2, w + 2)
    per_img = (2 * (in_sp[0] * in_sp[1] * cin_in + ho * wo * cout_pad) * 4
               + scr_sp[0] * scr_sp[1] * cmid * 4)
    bt = _pick_batch_tile(n, per_img, batch_tile)

    if stride == 2:
        # Space-to-depth phase split (done once in XLA) so the kernel only needs
        # unit-stride slices: phase q = 2*pr+pc holds x[:, pr::2, pc::2, :] at rows
        # [q*(ho+1)+1 : q*(ho+1)+1+ho], cols [1:1+wo]; borders stay zero (= conv pad).
        hp, wp = ho + 1, wo + 1
        xin = jnp.zeros((n, 4 * hp, wp, cin_in), jnp.float32)
        for pr in range(2):
            for pc in range(2):
                q = 2 * pr + pc
                xin = xin.at[:, q * hp + 1:q * hp + 1 + ho, 1:1 + wo, :].set(
                    x_nhwc[:, pr::2, pc::2, :])
    elif downsample:
        xin = jnp.pad(x_nhwc, ((0, 0), (1, 1), (1, 1), (0, 0)))
    else:
        xin = x_nhwc

    weights = (p["wb"], p["bscale"], p["bbias"], p["dww"], p["dwscale"],
               p["dwbias"], p["we"], p["escale"], p["ebias"])
    kernel = functools.partial(_unit_kernel, h=h, w=w, ho=ho, wo=wo,
                               stride=stride, downsample=downsample, cin=cin)
    return pl.pallas_call(
        kernel,
        out_shape=jax.ShapeDtypeStruct((n, ho, wo, cout_pad), jnp.float32),
        grid_spec=pltpu.PrefetchScalarGridSpec(
            num_scalar_prefetch=0,
            grid=(n // bt,),
            in_specs=[pl.BlockSpec((bt,) + xin.shape[1:], lambda i: (i, 0, 0, 0))]
                     + [pl.BlockSpec(a.shape, lambda i: (0, 0)) for a in weights],
            out_specs=pl.BlockSpec((bt, ho, wo, cout_pad), lambda i: (i, 0, 0, 0)),
            scratch_shapes=[pltpu.VMEM((bt,) + scr_sp + (cmid,), jnp.float32)]),
        compiler_params=pltpu.CompilerParams(
            dimension_semantics=("parallel",)),
    )(xin, *weights)


# --------------------------------------------------------------------------
# Deterministic parameter construction (BN folded; ChannelShuffle baked in;
# weights zero-padded for lane-dense outputs / padded-channel inputs)
# --------------------------------------------------------------------------

def _round_up(v, m):
    return (v + m - 1) // m * m


def _bn_fold(key, c):
    k1, k2, k3, k4 = jax.random.split(key, 4)
    gamma = 1.0 + 0.1 * jax.random.normal(k1, (c,), jnp.float32)
    beta = 0.1 * jax.random.normal(k2, (c,), jnp.float32)
    mean = 0.1 * jax.random.normal(k3, (c,), jnp.float32)
    var = 1.0 + 0.1 * jnp.abs(jax.random.normal(k4, (c,), jnp.float32))
    scale = gamma / jnp.sqrt(var + 1e-5)
    shift = beta - mean * scale
    return scale, shift


def make_unit_params(key, cin, cout, stride, groups, cin_in=None):
    """Returns (kernel_params, raw_params).  raw_params drive the pure-JAX reference.

    cin_in is the actual channel count of the activation the kernel will receive
    (>= cin; the extra channels are assumed to be exact zeros, as produced by a
    previous lane-dense-padded unit)."""
    down = (stride == 2) or (cin != cout)
    cmid = cout // 4
    cexp = cout - cin if down else cout
    cout_pad = _round_up(cout, 128)                    # lane-dense output width
    cexp_pad = (cout_pad - cin) if down else cout_pad
    cin_in = cin if cin_in is None else cin_in
    assert cin_in >= cin
    if not down:
        assert cin_in == cexp_pad, (
            "identity-add unit needs its input padded to round_up(cout, 128) channels")

    ks = jax.random.split(key, 9)

    def pw_raw(kw_, kb_, kbn_, ci, co):
        w_ = 0.1 * jax.random.normal(kw_, (1, 1, ci // groups, co), jnp.float32)  # HWIO
        b = 0.1 * jax.random.normal(kb_, (co,), jnp.float32)
        s, t = _bn_fold(kbn_, co)
        return w_, b, s, t

    w_b, b_b, s_b, t_b = pw_raw(ks[0], ks[1], ks[2], cin, cmid)
    w_d = 0.1 * jax.random.normal(ks[3], (3, 3, 1, cmid), jnp.float32)
    b_d = 0.1 * jax.random.normal(ks[4], (cmid,), jnp.float32)
    s_d, t_d = _bn_fold(ks[5], cmid)
    w_e, b_e, s_e, t_e = pw_raw(ks[6], ks[7], ks[8], cmid, cexp)

    raw = dict(stride=stride, groups=groups, downsample=down,
               w_b=w_b, b_b=b_b, s_b=s_b, t_b=t_b,
               w_d=w_d, b_d=b_d, s_d=s_d, t_d=t_d,
               w_e=w_e, b_e=b_e, s_e=s_e, t_e=t_e)

    def dense_blockdiag(w_hwio, ci, co):
        cig, cog = ci // groups, co // groups
        dense = jnp.zeros((ci, co), jnp.float32)
        for g in range(groups):
            dense = dense.at[g * cig:(g + 1) * cig, g * cog:(g + 1) * cog].set(
                w_hwio[0, 0, :, g * cog:(g + 1) * cog])
        return dense

    wb = dense_blockdiag(w_b, cin, cmid)
    we = dense_blockdiag(w_e, cmid, cexp)
    bscale, bbias = s_b, s_b * b_b + t_b
    escale, ebias = s_e, s_e * b_e + t_e
    dww = w_d[:, :, 0, :].reshape(9, cmid)
    dwscale, dwbias = s_d, s_d * b_d + t_d

    # Fold ChannelShuffle(groups): run the depthwise conv in un-shuffled channel order
    # (permute its per-channel params) and permute the expand weight's rows.
    perm = jnp.arange(cmid).reshape(groups, cmid // groups).T.reshape(-1)  # shuffled[c]=y[perm[c]]
    inv = jnp.argsort(perm)
    dww, dwscale, dwbias = dww[:, inv], dwscale[inv], dwbias[inv]
    we = we[inv, :]

    # Zero-pad: extra input rows (for padded-channel inputs) and extra output columns
    # (lane-dense cout_pad output).  The padded output channels are exact zeros.
    wb_pad = jnp.zeros((cin_in, cmid), jnp.float32).at[:cin, :].set(wb)
    we_pad = jnp.zeros((cmid, cexp_pad), jnp.float32).at[:, :cexp].set(we)
    escale_pad = jnp.zeros((cexp_pad,), jnp.float32).at[:cexp].set(escale)
    ebias_pad = jnp.zeros((cexp_pad,), jnp.float32).at[:cexp].set(ebias)

    kparams = dict(
        stride=stride, downsample=down,
        cin=cin, cin_in=cin_in, cout=cout, cout_pad=cout_pad,
        wb=wb_pad.astype(jnp.bfloat16),
        bscale=bscale.reshape(1, cmid), bbias=bbias.reshape(1, cmid),
        dww=dww, dwscale=dwscale.reshape(1, cmid), dwbias=dwbias.reshape(1, cmid),
        we=we_pad.astype(jnp.bfloat16),
        escale=escale_pad.reshape(1, cexp_pad), ebias=ebias_pad.reshape(1, cexp_pad))
    return kparams, raw


# --------------------------------------------------------------------------
# Pure-JAX (XLA) reference of ShuffleNetUnit.forward, for in-script validation
# --------------------------------------------------------------------------

def _reference_unit(x, raw):
    dn = ("NHWC", "HWIO", "NHWC")
    stride, groups, down = raw["stride"], raw["groups"], raw["downsample"]

    def pw(z, w, b, s, t):
        z = jax.lax.conv_general_dilated(z, w, (1, 1), "VALID",
                                         feature_group_count=groups,
                                         dimension_numbers=dn)
        return (z + b) * s + t

    y = jax.nn.relu(pw(x, raw["w_b"], raw["b_b"], raw["s_b"], raw["t_b"]))
    n, h, w_, c = y.shape
    y = y.reshape(n, h, w_, groups, c // groups).transpose(0, 1, 2, 4, 3).reshape(n, h, w_, c)
    y = jax.lax.conv_general_dilated(y, raw["w_d"], (stride, stride), ((1, 1), (1, 1)),
                                     feature_group_count=c, dimension_numbers=dn)
    y = (y + raw["b_d"]) * raw["s_d"] + raw["t_d"]
    y = pw(y, raw["w_e"], raw["b_e"], raw["s_e"], raw["t_e"])
    if down:
        sc = jax.lax.reduce_window(x, 0.0, jax.lax.add, (1, 3, 3, 1),
                                   (1, stride, stride, 1),
                                   ((0, 0), (1, 1), (1, 1), (0, 0))) / 9.0
        out = jnp.concatenate([sc, y], axis=-1)
    else:
        out = x + y
    return jax.nn.relu(out)


# --------------------------------------------------------------------------

if __name__ == "__main__":
    key = jax.random.PRNGKey(0)
    k1, k2, kx = jax.random.split(key, 3)
    groups = 3

    # Two ShuffleNetUnit configs exercising both branches of the module:
    #   unit1: stride=2            -> AvgPool shortcut + channel-concat fusion
    #   unit2: stride=1, cin==cout -> identity shortcut + add fusion
    # unit2 consumes unit1's lane-dense (256-channel, zero-padded) output directly.
    p1, raw1 = make_unit_params(k1, cin=24, cout=240, stride=2, groups=groups)
    p2, raw2 = make_unit_params(k2, cin=240, cout=240, stride=1, groups=groups,
                                cin_in=p1["cout_pad"])

    x_nchw = jax.random.normal(kx, (4, 24, 16, 16), jnp.float32)   # PyTorch NCHW input
    x = jnp.transpose(x_nchw, (0, 2, 3, 1))                        # -> NHWC once (lanes = C)

    fwd = jax.jit(lambda v: shuffle_unit(shuffle_unit(v, p1), p2))
    out_pad = fwd(x)
    jax.block_until_ready(out_pad)

    cout = p2["cout"]
    out = out_pad[..., :cout]
    ref = _reference_unit(_reference_unit(x, raw1), raw2)
    err = float(jnp.max(jnp.abs(out - ref)) / (jnp.max(jnp.abs(ref)) + 1e-6))

    out_nchw = jnp.transpose(out, (0, 3, 1, 2))
    assert out_nchw.shape == (4, 240, 8, 8), out_nchw.shape
    assert bool(jnp.all(jnp.isfinite(out_nchw)))
    assert float(jnp.max(jnp.abs(out_pad[..., cout:]))) == 0.0   # lane-padding is exact zero
    assert err < 0.05, f"mismatch vs pure-JAX reference: {err}"
    print("KERNEL_OK")
</pallas_src>

<mosaic_0001>
module attributes {stable_mosaic.version = 11 : i64} {
  func.func @_unit_kernel(%arg0: i32, %arg1: memref<2x36x9x24xf32, #tpu.memory_space<vmem>>, %arg2: memref<24x60xbf16, #tpu.memory_space<vmem>>, %arg3: memref<1x60xf32, #tpu.memory_space<vmem>>, %arg4: memref<1x60xf32, #tpu.memory_space<vmem>>, %arg5: memref<9x60xf32, #tpu.memory_space<vmem>>, %arg6: memref<1x60xf32, #tpu.memory_space<vmem>>, %arg7: memref<1x60xf32, #tpu.memory_space<vmem>>, %arg8: memref<60x232xbf16, #tpu.memory_space<vmem>>, %arg9: memref<1x232xf32, #tpu.memory_space<vmem>>, %arg10: memref<1x232xf32, #tpu.memory_space<vmem>>, %arg11: memref<2x8x8x256xf32, #tpu.memory_space<vmem>>, %arg12: memref<2x36x9x60xf32, #tpu.memory_space<vmem>>) attributes {dimension_semantics = [#tpu.dimension_semantics<parallel>], iteration_bounds = array<i64: 2>, scalar_prefetch = 0 : i64, scratch_operands = 1 : i64, tpu.core_type = #tpu.core_type<tc>, window_params = [{transform_indices = @transform_0, window_bounds = array<i64: 2, 36, 9, 24>}, {pipeline_mode = #tpu.pipeline_mode<synchronous>, transform_indices = @transform_1, window_bounds = array<i64: 24, 60>}, {pipeline_mode = #tpu.pipeline_mode<synchronous>, transform_indices = @transform_2, window_bounds = array<i64: 1, 60>}, {pipeline_mode = #tpu.pipeline_mode<synchronous>, transform_indices = @transform_3, window_bounds = array<i64: 1, 60>}, {pipeline_mode = #tpu.pipeline_mode<synchronous>, transform_indices = @transform_4, window_bounds = array<i64: 9, 60>}, {pipeline_mode = #tpu.pipeline_mode<synchronous>, transform_indices = @transform_5, window_bounds = array<i64: 1, 60>}, {pipeline_mode = #tpu.pipeline_mode<synchronous>, transform_indices = @transform_6, window_bounds = array<i64: 1, 60>}, {pipeline_mode = #tpu.pipeline_mode<synchronous>, transform_indices = @transform_7, window_bounds = array<i64: 60, 232>}, {pipeline_mode = #tpu.pipeline_mode<synchronous>, transform_indices = @transform_8, window_bounds = array<i64: 1, 232>}, {pipeline_mode = #tpu.pipeline_mode<synchronous>, transform_indices = @transform_9, window_bounds = array<i64: 1, 232>}, {transform_indices = @transform_10, window_bounds = array<i64: 2, 8, 8, 256>}]} {
    %cst = arith.constant 0.000000e+00 : f32
    %0 = vector.broadcast %cst : f32 to vector<2x36x1x60xf32>
    %c0 = arith.constant 0 : index
    %c0_0 = arith.constant 0 : index
    %c0_1 = arith.constant 0 : index
    %c0_2 = arith.constant 0 : index
    %1 = vector.load %arg12[%c0, %c0_0, %c0_1, %c0_2] : memref<2x36x9x60xf32, #tpu.memory_space<vmem>>, vector<2x36x1x60xf32>
    tpu.vector_store %arg12[%c0, %c0_0, %c0_1, %c0_2], %0 {strides = array<i32>} : memref<2x36x9x60xf32, #tpu.memory_space<vmem>>, vector<2x36x1x60xf32>,
    %cst_3 = arith.constant 0.000000e+00 : f32
    %2 = vector.broadcast %cst_3 : f32 to vector<2x1x9x60xf32>
    %c0_4 = arith.constant 0 : index
    %c0_5 = arith.constant 0 : index
    %c0_6 = arith.constant 0 : index
    %c0_7 = arith.constant 0 : index
    %3 = vector.load %arg12[%c0_4, %c0_5, %c0_6, %c0_7] : memref<2x36x9x60xf32, #tpu.memory_space<vmem>>, vector<2x1x9x60xf32>
    tpu.vector_store %arg12[%c0_4, %c0_5, %c0_6, %c0_7], %2 {strides = array<i32>} : memref<2x36x9x60xf32, #tpu.memory_space<vmem>>, vector<2x1x9x60xf32>,
    %cst_8 = arith.constant 0.000000e+00 : f32
    %4 = vector.broadcast %cst_8 : f32 to vector<2x1x9x60xf32>
    %c0_9 = arith.constant 0 : index
    %c9 = arith.constant 9 : index
    %c0_10 = arith.constant 0 : index
    %c0_11 = arith.constant 0 : index
    %5 = vector.load %arg12[%c0_9, %c9, %c0_10, %c0_11] : memref<2x36x9x60xf32, #tpu.memory_space<vmem>>, vector<2x1x9x60xf32>
    tpu.vector_store %arg12[%c0_9, %c9, %c0_10, %c0_11], %4 {strides = array<i32>} : memref<2x36x9x60xf32, #tpu.memory_space<vmem>>, vector<2x1x9x60xf32>,
    %cst_12 = arith.constant 0.000000e+00 : f32
    %6 = vector.broadcast %cst_12 : f32 to vector<2x1x9x60xf32>
    %c0_13 = arith.constant 0 : index
    %c18 = arith.constant 18 : index
    %c0_14 = arith.constant 0 : index
    %c0_15 = arith.constant 0 : index
    %7 = vector.load %arg12[%c0_13, %c18, %c0_14, %c0_15] : memref<2x36x9x60xf32, #tpu.memory_space<vmem>>, vector<2x1x9x60xf32>
    tpu.vector_store %arg12[%c0_13, %c18, %c0_14, %c0_15], %6 {strides = array<i32>} : memref<2x36x9x60xf32, #tpu.memory_space<vmem>>, vector<2x1x9x60xf32>,
    %cst_16 = arith.constant 0.000000e+00 : f32
    %8 = vector.broadcast %cst_16 : f32 to vector<2x1x9x60xf32>
    %c0_17 = arith.constant 0 : index
    %c27 = arith.constant 27 : index
    %c0_18 = arith.constant 0 : index
    %c0_19 = arith.constant 0 : index
    %9 = vector.load %arg12[%c0_17, %c27, %c0_18, %c0_19] : memref<2x36x9x60xf32, #tpu.memory_space<vmem>>, vector<2x1x9x60xf32>
    tpu.vector_store %arg12[%c0_17, %c27, %c0_18, %c0_19], %8 {strides = array<i32>} : memref<2x36x9x60xf32, #tpu.memory_space<vmem>>, vector<2x1x9x60xf32>,
    %c0_20 = arith.constant 0 : index
    %c0_21 = arith.constant 0 : index
    %10 = vector.load %arg2[%c0_20, %c0_21] : memref<24x60xbf16, #tpu.memory_space<vmem>>, vector<24x60xbf16>
    %c0_22 = arith.constant 0 : index
    %c0_23 = arith.constant 0 : index
    %11 = vector.load %arg3[%c0_22, %c0_23] : memref<1x60xf32, #tpu.memory_space<vmem>>, vector<1x60xf32>
    %c0_24 = arith.constant 0 : index
    %c0_25 = arith.constant 0 : index
    %12 = vector.load %arg4[%c0_24, %c0_25] : memref<1x60xf32, #tpu.memory_space<vmem>>, vector<1x60xf32>
    %c0_26 = arith.constant 0 : index
    %c1 = arith.constant 1 : index
    %c1_27 = arith.constant 1 : index
    %c0_28 = arith.constant 0 : index
    %13 = vector.load %arg1[%c0_26, %c1, %c1_27, %c0_28] : memref<2x36x9x24xf32, #tpu.memory_space<vmem>>, vector<2x8x8x24xf32>
    %14 = vector.shape_cast %13 : vector<2x8x8x24xf32> to vector<128x24xf32>
    %15 = arith.truncf %14 : vector<128x24xf32> to vector<128x24xbf16>
    %cst_29 = arith.constant dense<0.000000e+00> : vector<128x60xf32>
    %16 = tpu.matmul %15, %10, %cst_29 {dimension_numbers = #tpu.dot_dimension_numbers<[1], [0], [0], [1], [0, 0, 1, 1], [], []>} : vector<128x24xbf16>, vector<24x60xbf16>, vector<128x60xf32> -> vector<128x60xf32>
    %17 = vector.broadcast %11 : vector<1x60xf32> to vector<128x60xf32>
    %18 = arith.mulf %16, %17 : vector<128x60xf32>
    %19 = vector.broadcast %12 : vector<1x60xf32> to vector<128x60xf32>
    %20 = arith.addf %18, %19 : vector<128x60xf32>
    %cst_30 = arith.constant 0.000000e+00 : f32
    %21 = vector.broadcast %cst_30 : f32 to vector<128x60xf32>
    %22 = arith.maximumf %20, %21 : vector<128x60xf32>
    %23 = vector.shape_cast %22 : vector<128x60xf32> to vector<2x8x8x60xf32>
    %c0_31 = arith.constant 0 : index
    %c1_32 = arith.constant 1 : index
    %c1_33 = arith.constant 1 : index
    %c0_34 = arith.constant 0 : index
    %24 = vector.load %arg12[%c0_31, %c1_32, %c1_33, %c0_34] : memref<2x36x9x60xf32, #tpu.memory_space<vmem>>, vector<2x8x8x60xf32>
    tpu.vector_store %arg12[%c0_31, %c1_32, %c1_33, %c0_34], %23 {strides = array<i32>} : memref<2x36x9x60xf32, #tpu.memory_space<vmem>>, vector<2x8x8x60xf32>,
    %c0_35 = arith.constant 0 : index
    %c10 = arith.constant 10 : index
    %c1_36 = arith.constant 1 : index
    %c0_37 = arith.constant 0 : index
    %25 = vector.load %arg1[%c0_35, %c10, %c1_36, %c0_37] : memref<2x36x9x24xf32, #tpu.memory_space<vmem>>, vector<2x8x8x24xf32>
    %26 = vector.shape_cast %25 : vector<2x8x8x24xf32> to vector<128x24xf32>
    %27 = arith.truncf %26 : vector<128x24xf32> to vector<128x24xbf16>
    %cst_38 = arith.constant dense<0.000000e+00> : vector<128x60xf32>
    %28 = tpu.matmul %27, %10, %cst_38 {dimension_numbers = #tpu.dot_dimension_numbers<[1], [0], [0], [1], [0, 0, 1, 1], [], []>} : vector<128x24xbf16>, vector<24x60xbf16>, vector<128x60xf32> -> vector<128x60xf32>
    %29 = vector.broadcast %11 : vector<1x60xf32> to vector<128x60xf32>
    %30 = arith.mulf %28, %29 : vector<128x60xf32>
    %31 = vector.broadcast %12 : vector<1x60xf32> to vector<128x60xf32>
    %32 = arith.addf %30, %31 : vector<128x60xf32>
    %cst_39 = arith.constant 0.000000e+00 : f32
    %33 = vector.broadcast %cst_39 : f32 to vector<128x60xf32>
    %34 = arith.maximumf %32, %33 : vector<128x60xf32>
    %35 = vector.shape_cast %34 : vector<128x60xf32> to vector<2x8x8x60xf32>
    %c0_40 = arith.constant 0 : index
    %c10_41 = arith.constant 10 : index
    %c1_42 = arith.constant 1 : index
    %c0_43 = arith.constant 0 : index
    %36 = vector.load %arg12[%c0_40, %c10_41, %c1_42, %c0_43] : memref<2x36x9x60xf32, #tpu.memory_space<vmem>>, vector<2x8x8x60xf32>
    tpu.vector_store %arg12[%c0_40, %c10_41, %c1_42, %c0_43], %35 {strides = array<i32>} : memref<2x36x9x60xf32, #tpu.memory_space<vmem>>, vector<2x8x8x60xf32>,
    %c0_44 = arith.constant 0 : index
    %c19 = arith.constant 19 : index
    %c1_45 = arith.constant 1 : index
    %c0_46 = arith.constant 0 : index
    %37 = vector.load %arg1[%c0_44, %c19, %c1_45, %c0_46] : memref<2x36x9x24xf32, #tpu.memory_space<vmem>>, vector<2x8x8x24xf32>
    %38 = vector.shape_cast %37 : vector<2x8x8x24xf32> to vector<128x24xf32>
    %39 = arith.truncf %38 : vector<128x24xf32> to vector<128x24xbf16>
    %cst_47 = arith.constant dense<0.000000e+00> : vector<128x60xf32>
    %40 = tpu.matmul %39, %10, %cst_47 {dimension_numbers = #tpu.dot_dimension_numbers<[1], [0], [0], [1], [0, 0, 1, 1], [], []>} : vector<128x24xbf16>, vector<24x60xbf16>, vector<128x60xf32> -> vector<128x60xf32>
    %41 = vector.broadcast %11 : vector<1x60xf32> to vector<128x60xf32>
    %42 = arith.mulf %40, %41 : vector<128x60xf32>
    %43 = vector.broadcast %12 : vector<1x60xf32> to vector<128x60xf32>
    %44 = arith.addf %42, %43 : vector<128x60xf32>
    %cst_48 = arith.constant 0.000000e+00 : f32
    %45 = vector.broadcast %cst_48 : f32 to vector<128x60xf32>
    %46 = arith.maximumf %44, %45 : vector<128x60xf32>
    %47 = vector.shape_cast %46 : vector<128x60xf32> to vector<2x8x8x60xf32>
    %c0_49 = arith.constant 0 : index
    %c19_50 = arith.constant 19 : index
    %c1_51 = arith.constant 1 : index
    %c0_52 = arith.constant 0 : index
    %48 = vector.load %arg12[%c0_49, %c19_50, %c1_51, %c0_52] : memref<2x36x9x60xf32, #tpu.memory_space<vmem>>, vector<2x8x8x60xf32>
    tpu.vector_store %arg12[%c0_49, %c19_50, %c1_51, %c0_52], %47 {strides = array<i32>} : memref<2x36x9x60xf32, #tpu.memory_space<vmem>>, vector<2x8x8x60xf32>,
    %c0_53 = arith.constant 0 : index
    %c28 = arith.constant 28 : index
    %c1_54 = arith.constant 1 : index
    %c0_55 = arith.constant 0 : index
    %49 = vector.load %arg1[%c0_53, %c28, %c1_54, %c0_55] : memref<2x36x9x24xf32, #tpu.memory_space<vmem>>, vector<2x8x8x24xf32>
    %50 = vector.shape_cast %49 : vector<2x8x8x24xf32> to vector<128x24xf32>
    %51 = arith.truncf %50 : vector<128x24xf32> to vector<128x24xbf16>
    %cst_56 = arith.constant dense<0.000000e+00> : vector<128x60xf32>
    %52 = tpu.matmul %51, %10, %cst_56 {dimension_numbers = #tpu.dot_dimension_numbers<[1], [0], [0], [1], [0, 0, 1, 1], [], []>} : vector<128x24xbf16>, vector<24x60xbf16>, vector<128x60xf32> -> vector<128x60xf32>
    %53 = vector.broadcast %11 : vector<1x60xf32> to vector<128x60xf32>
    %54 = arith.mulf %52, %53 : vector<128x60xf32>
    %55 = vector.broadcast %12 : vector<1x60xf32> to vector<128x60xf32>
    %56 = arith.addf %54, %55 : vector<128x60xf32>
    %cst_57 = arith.constant 0.000000e+00 : f32
    %57 = vector.broadcast %cst_57 : f32 to vector<128x60xf32>
    %58 = arith.maximumf %56, %57 : vector<128x60xf32>
    %59 = vector.shape_cast %58 : vector<128x60xf32> to vector<2x8x8x60xf32>
    %c0_58 = arith.constant 0 : index
    %c28_59 = arith.constant 28 : index
    %c1_60 = arith.constant 1 : index
    %c0_61 = arith.constant 0 : index
    %60 = vector.load %arg12[%c0_58, %c28_59, %c1_60, %c0_61] : memref<2x36x9x60xf32, #tpu.memory_space<vmem>>, vector<2x8x8x60xf32>
    tpu.vector_store %arg12[%c0_58, %c28_59, %c1_60, %c0_61], %59 {strides = array<i32>} : memref<2x36x9x60xf32, #tpu.memory_space<vmem>>, vector<2x8x8x60xf32>,
    %c0_62 = arith.constant 0 : index
    %c0_63 = arith.constant 0 : index
    %61 = vector.load %arg5[%c0_62, %c0_63] : memref<9x60xf32, #tpu.memory_space<vmem>>, vector<9x60xf32>
    %cst_64 = arith.constant 0.000000e+00 : f32
    %62 = vector.broadcast %cst_64 : f32 to vector<2x8x8x60xf32>
    %c0_65 = arith.constant 0 : index
    %c27_66 = arith.constant 27 : index
    %c0_67 = arith.constant 0 : index
    %c0_68 = arith.constant 0 : index
    %63 = vector.load %arg12[%c0_65, %c27_66, %c0_67, %c0_68] : memref<2x36x9x60xf32, #tpu.memory_space<vmem>>, vector<2x8x8x60xf32>
    %64 = vector.extract_strided_slice %61 {offsets = [0, 0], sizes = [1, 60], strides = [1, 1]} : vector<9x60xf32> to vector<1x60xf32>
    %65 = vector.shape_cast %64 : vector<1x60xf32> to vector<1x1x1x60xf32>
    %66 = vector.broadcast %65 : vector<1x1x1x60xf32> to vector<2x8x8x60xf32>
    %67 = arith.mulf %63, %66 : vector<2x8x8x60xf32>
    %68 = arith.addf %62, %67 : vector<2x8x8x60xf32>
    %c0_69 = arith.constant 0 : index
    %c18_70 = arith.constant 18 : index
    %c1_71 = arith.constant 1 : index
    %c0_72 = arith.constant 0 : index
    %69 = vector.load %arg12[%c0_69, %c18_70, %c1_71, %c0_72] : memref<2x36x9x60xf32, #tpu.memory_space<vmem>>, vector<2x8x8x60xf32>
    %70 = vector.extract_strided_slice %61 {offsets = [1, 0], sizes = [1, 60], strides = [1, 1]} : vector<9x60xf32> to vector<1x60xf32>
    %71 = vector.shape_cast %70 : vector<1x60xf32> to vector<1x1x1x60xf32>
    %72 = vector.broadcast %71 : vector<1x1x1x60xf32> to vector<2x8x8x60xf32>
    %73 = arith.mulf %69, %72 : vector<2x8x8x60xf32>
    %74 = arith.addf %68, %73 : vector<2x8x8x60xf32>
    %c0_73 = arith.constant 0 : index
    %c27_74 = arith.constant 27 : index
    %c1_75 = arith.constant 1 : index
    %c0_76 = arith.constant 0 : index
    %75 = vector.load %arg12[%c0_73, %c27_74, %c1_75, %c0_76] : memref<2x36x9x60xf32, #tpu.memory_space<vmem>>, vector<2x8x8x60xf32>
    %76 = vector.extract_strided_slice %61 {offsets = [2, 0], sizes = [1, 60], strides = [1, 1]} : vector<9x60xf32> to vector<1x60xf32>
    %77 = vector.shape_cast %76 : vector<1x60xf32> to vector<1x1x1x60xf32>
    %78 = vector.broadcast %77 : vector<1x1x1x60xf32> to vector<2x8x8x60xf32>
    %79 = arith.mulf %75, %78 : vector<2x8x8x60xf32>
    %80 = arith.addf %74, %79 : vector<2x8x8x60xf32>
    %c0_77 = arith.constant 0 : index
    %c10_78 = arith.constant 10 : index
    %c0_79 = arith.constant 0 : index
    %c0_80 = arith.constant 0 : index
    %81 = vector.load %arg12[%c0_77, %c10_78, %c0_79, %c0_80] : memref<2x36x9x60xf32, #tpu.memory_space<vmem>>, vector<2x8x8x60xf32>
    %82 = vector.extract_strided_slice %61 {offsets = [3, 0], sizes = [1, 60], strides = [1, 1]} : vector<9x60xf32> to vector<1x60xf32>
    %83 = vector.shape_cast %82 : vector<1x60xf32> to vector<1x1x1x60xf32>
    %84 = vector.broadcast %83 : vector<1x1x1x60xf32> to vector<2x8x8x60xf32>
    %85 = arith.mulf %81, %84 : vector<2x8x8x60xf32>
    %86 = arith.addf %80, %85 : vector<2x8x8x60xf32>
    %c0_81 = arith.constant 0 : index
    %c1_82 = arith.constant 1 : index
    %c1_83 = arith.constant 1 : index
    %c0_84 = arith.constant 0 : index
    %87 = vector.load %arg12[%c0_81, %c1_82, %c1_83, %c0_84] : memref<2x36x9x60xf32, #tpu.memory_space<vmem>>, vector<2x8x8x60xf32>
    %88 = vector.extract_strided_slice %61 {offsets = [4, 0], sizes = [1, 60], strides = [1, 1]} : vector<9x60xf32> to vector<1x60xf32>
    %89 = vector.shape_cast %88 : vector<1x60xf32> to vector<1x1x1x60xf32>
    %90 = vector.broadcast %89 : vector<1x1x1x60xf32> to vector<2x8x8x60xf32>
    %91 = arith.mulf %87, %90 : vector<2x8x8x60xf32>
    %92 = arith.addf %86, %91 : vector<2x8x8x60xf32>
    %c0_85 = arith.constant 0 : index
    %c10_86 = arith.constant 10 : index
    %c1_87 = arith.constant 1 : index
    %c0_88 = arith.constant 0 : index
    %93 = vector.load %arg12[%c0_85, %c10_86, %c1_87, %c0_88] : memref<2x36x9x60xf32, #tpu.memory_space<vmem>>, vector<2x8x8x60xf32>
    %94 = vector.extract_strided_slice %61 {offsets = [5, 0], sizes = [1, 60], strides = [1, 1]} : vector<9x60xf32> to vector<1x60xf32>
    %95 = vector.shape_cast %94 : vector<1x60xf32> to vector<1x1x1x60xf32>
    %96 = vector.broadcast %95 : vector<1x1x1x60xf32> to vector<2x8x8x60xf32>
    %97 = arith.mulf %93, %96 : vector<2x8x8x60xf32>
    %98 = arith.addf %92, %97 : vector<2x8x8x60xf32>
    %c0_89 = arith.constant 0 : index
    %c28_90 = arith.constant 28 : index
    %c0_91 = arith.constant 0 : index
    %c0_92 = arith.constant 0 : index
    %99 = vector.load %arg12[%c0_89, %c28_90, %c0_91, %c0_92] : memref<2x36x9x60xf32, #tpu.memory_space<vmem>>, vector<2x8x8x60xf32>
    %100 = vector.extract_strided_slice %61 {offsets = [6, 0], sizes = [1, 60], strides = [1, 1]} : vector<9x60xf32> to vector<1x60xf32>
    %101 = vector.shape_cast %100 : vector<1x60xf32> to vector<1x1x1x60xf32>
    %102 = vector.broadcast %101 : vector<1x1x1x60xf32> to vector<2x8x8x60xf32>
    %103 = arith.mulf %99, %102 : vector<2x8x8x60xf32>
    %104 = arith.addf %98, %103 : vector<2x8x8x60xf32>
    %c0_93 = arith.constant 0 : index
    %c19_94 = arith.constant 19 : index
    %c1_95 = arith.constant 1 : index
    %c0_96 = arith.constant 0 : index
    %105 = vector.load %arg12[%c0_93, %c19_94, %c1_95, %c0_96] : memref<2x36x9x60xf32, #tpu.memory_space<vmem>>, vector<2x8x8x60xf32>
    %106 = vector.extract_strided_slice %61 {offsets = [7, 0], sizes = [1, 60], strides = [1, 1]} : vector<9x60xf32> to vector<1x60xf32>
    %107 = vector.shape_cast %106 : vector<1x60xf32> to vector<1x1x1x60xf32>
    %108 = vector.broadcast %107 : vector<1x1x1x60xf32> to vector<2x8x8x60xf32>
    %109 = arith.mulf %105, %108 : vector<2x8x8x60xf32>
    %110 = arith.addf %104, %109 : vector<2x8x8x60xf32>
    %c0_97 = arith.constant 0 : index
    %c28_98 = arith.constant 28 : index
    %c1_99 = arith.constant 1 : index
    %c0_100 = arith.constant 0 : index
    %111 = vector.load %arg12[%c0_97, %c28_98, %c1_99, %c0_100] : memref<2x36x9x60xf32, #tpu.memory_space<vmem>>, vector<2x8x8x60xf32>
    %112 = vector.extract_strided_slice %61 {offsets = [8, 0], sizes = [1, 60], strides = [1, 1]} : vector<9x60xf32> to vector<1x60xf32>
    %113 = vector.shape_cast %112 : vector<1x60xf32> to vector<1x1x1x60xf32>
    %114 = vector.broadcast %113 : vector<1x1x1x60xf32> to vector<2x8x8x60xf32>
    %115 = arith.mulf %111, %114 : vector<2x8x8x60xf32>
    %116 = arith.addf %110, %115 : vector<2x8x8x60xf32>
    %c0_101 = arith.constant 0 : index
    %c0_102 = arith.constant 0 : index
    %117 = vector.load %arg6[%c0_101, %c0_102] : memref<1x60xf32, #tpu.memory_space<vmem>>, vector<1x60xf32>
    %118 = vector.shape_cast %117 : vector<1x60xf32> to vector<1x1x1x60xf32>
    %119 = vector.broadcast %118 : vector<1x1x1x60xf32> to vector<2x8x8x60xf32>
    %120 = arith.mulf %116, %119 : vector<2x8x8x60xf32>
    %c0_103 = arith.constant 0 : index
    %c0_104 = arith.constant 0 : index
    %121 = vector.load %arg7[%c0_103, %c0_104] : memref<1x60xf32, #tpu.memory_space<vmem>>, vector<1x60xf32>
    %122 = vector.shape_cast %121 : vector<1x60xf32> to vector<1x1x1x60xf32>
    %123 = vector.broadcast %122 : vector<1x1x1x60xf32> to vector<2x8x8x60xf32>
    %124 = arith.addf %120, %123 : vector<2x8x8x60xf32>
    %125 = vector.shape_cast %124 : vector<2x8x8x60xf32> to vector<128x60xf32>
    %126 = arith.truncf %125 : vector<128x60xf32> to vector<128x60xbf16>
    %c0_105 = arith.constant 0 : index
    %c0_106 = arith.constant 0 : index
    %127 = vector.load %arg8[%c0_105, %c0_106] : memref<60x232xbf16, #tpu.memory_space<vmem>>, vector<60x232xbf16>
    %cst_107 = arith.constant dense<0.000000e+00> : vector<128x232xf32>
    %128 = tpu.matmul %126, %127, %cst_107 {dimension_numbers = #tpu.dot_dimension_numbers<[1], [0], [0], [1], [0, 0, 1, 1], [], []>} : vector<128x60xbf16>, vector<60x232xbf16>, vector<128x232xf32> -> vector<128x232xf32>
    %c0_108 = arith.constant 0 : index
    %c0_109 = arith.constant 0 : index
    %129 = vector.load %arg9[%c0_108, %c0_109] : memref<1x232xf32, #tpu.memory_space<vmem>>, vector<1x232xf32>
    %130 = vector.broadcast %129 : vector<1x232xf32> to vector<128x232xf32>
    %131 = arith.mulf %128, %130 : vector<128x232xf32>
    %c0_110 = arith.constant 0 : index
    %c0_111 = arith.constant 0 : index
    %132 = vector.load %arg10[%c0_110, %c0_111] : memref<1x232xf32, #tpu.memory_space<vmem>>, vector<1x232xf32>
    %133 = vector.broadcast %132 : vector<1x232xf32> to vector<128x232xf32>
    %134 = arith.addf %131, %133 : vector<128x232xf32>
    %cst_112 = arith.constant 0.000000e+00 : f32
    %135 = vector.broadcast %cst_112 : f32 to vector<2x8x8x24xf32>
    %c0_113 = arith.constant 0 : index
    %c27_114 = arith.constant 27 : index
    %c0_115 = arith.constant 0 : index
    %c0_116 = arith.constant 0 : index
    %136 = vector.load %arg1[%c0_113, %c27_114, %c0_115, %c0_116] : memref<2x36x9x24xf32, #tpu.memory_space<vmem>>, vector<2x8x8x24xf32>
    %137 = arith.addf %135, %136 : vector<2x8x8x24xf32>
    %c0_117 = arith.constant 0 : index
    %c18_118 = arith.constant 18 : index
    %c1_119 = arith.constant 1 : index
    %c0_120 = arith.constant 0 : index
    %138 = vector.load %arg1[%c0_117, %c18_118, %c1_119, %c0_120] : memref<2x36x9x24xf32, #tpu.memory_space<vmem>>, vector<2x8x8x24xf32>
    %139 = arith.addf %137, %138 : vector<2x8x8x24xf32>
    %c0_121 = arith.constant 0 : index
    %c27_122 = arith.constant 27 : index
    %c1_123 = arith.constant 1 : index
    %c0_124 = arith.constant 0 : index
    %140 = vector.load %arg1[%c0_121, %c27_122, %c1_123, %c0_124] : memref<2x36x9x24xf32, #tpu.memory_space<vmem>>, vector<2x8x8x24xf32>
    %141 = arith.addf %139, %140 : vector<2x8x8x24xf32>
    %c0_125 = arith.constant 0 : index
    %c10_126 = arith.constant 10 : index
    %c0_127 = arith.constant 0 : index
    %c0_128 = arith.constant 0 : index
    %142 = vector.load %arg1[%c0_125, %c10_126, %c0_127, %c0_128] : memref<2x36x9x24xf32, #tpu.memory_space<vmem>>, vector<2x8x8x24xf32>
    %143 = arith.addf %141, %142 : vector<2x8x8x24xf32>
    %c0_129 = arith.constant 0 : index
    %c1_130 = arith.constant 1 : index
    %c1_131 = arith.constant 1 : index
    %c0_132 = arith.constant 0 : index
    %144 = vector.load %arg1[%c0_129, %c1_130, %c1_131, %c0_132] : memref<2x36x9x24xf32, #tpu.memory_space<vmem>>, vector<2x8x8x24xf32>
    %145 = arith.addf %143, %144 : vector<2x8x8x24xf32>
    %c0_133 = arith.constant 0 : index
    %c10_134 = arith.constant 10 : index
    %c1_135 = arith.constant 1 : index
    %c0_136 = arith.constant 0 : index
    %146 = vector.load %arg1[%c0_133, %c10_134, %c1_135, %c0_136] : memref<2x36x9x24xf32, #tpu.memory_space<vmem>>, vector<2x8x8x24xf32>
    %147 = arith.addf %145, %146 : vector<2x8x8x24xf32>
    %c0_137 = arith.constant 0 : index
    %c28_138 = arith.constant 28 : index
    %c0_139 = arith.constant 0 : index
    %c0_140 = arith.constant 0 : index
    %148 = vector.load %arg1[%c0_137, %c28_138, %c0_139, %c0_140] : memref<2x36x9x24xf32, #tpu.memory_space<vmem>>, vector<2x8x8x24xf32>
    %149 = arith.addf %147, %148 : vector<2x8x8x24xf32>
    %c0_141 = arith.constant 0 : index
    %c19_142 = arith.constant 19 : index
    %c1_143 = arith.constant 1 : index
    %c0_144 = arith.constant 0 : index
    %150 = vector.load %arg1[%c0_141, %c19_142, %c1_143, %c0_144] : memref<2x36x9x24xf32, #tpu.memory_space<vmem>>, vector<2x8x8x24xf32>
    %151 = arith.addf %149, %150 : vector<2x8x8x24xf32>
    %c0_145 = arith.constant 0 : index
    %c28_146 = arith.constant 28 : index
    %c1_147 = arith.constant 1 : index
    %c0_148 = arith.constant 0 : index
    %152 = vector.load %arg1[%c0_145, %c28_146, %c1_147, %c0_148] : memref<2x36x9x24xf32, #tpu.memory_space<vmem>>, vector<2x8x8x24xf32>
    %153 = arith.addf %151, %152 : vector<2x8x8x24xf32>
    %cst_149 = arith.constant 0.111111112 : f32
    %154 = vector.broadcast %cst_149 : f32 to vector<2x8x8x24xf32>
    %155 = arith.mulf %153, %154 : vector<2x8x8x24xf32>
    %156 = vector.shape_cast %155 : vector<2x8x8x24xf32> to vector<128x24xf32>
    %157 = tpu.concatenate %156, %134 in 1 : vector<128x24xf32>, vector<128x232xf32> -> vector<128x256xf32>
    %cst_150 = arith.constant 0.000000e+00 : f32
    %158 = vector.broadcast %cst_150 : f32 to vector<128x256xf32>
    %159 = arith.maximumf %157, %158 : vector<128x256xf32>
    %160 = vector.shape_cast %159 : vector<128x256xf32> to vector<2x8x8x256xf32>
    %c0_151 = arith.constant 0 : index
    %c0_152 = arith.constant 0 : index
    %c0_153 = arith.constant 0 : index
    %c0_154 = arith.constant 0 : index
    %161 = vector.load %arg11[%c0_151, %c0_152, %c0_153, %c0_154] : memref<2x8x8x256xf32, #tpu.memory_space<vmem>>, vector<2x8x8x256xf32>
    tpu.vector_store %arg11[%c0_151, %c0_152, %c0_153, %c0_154], %160 {strides = array<i32>} : memref<2x8x8x256xf32, #tpu.memory_space<vmem>>, vector<2x8x8x256xf32>,
    return
  }
  func.func @transform_0(%arg0: i32) -> (i32, i32, i32, i32) {
    %c0_i32 = arith.constant 0 : i32
    %c0_i32_0 = arith.constant 0 : i32
    %c0_i32_1 = arith.constant 0 : i32
    %c0_i32_2 = arith.constant 0 : i32
    return %arg0, %c0_i32, %c0_i32_0, %c0_i32_1 : i32, i32, i32, i32
  }
  func.func @transform_1(%arg0: i32) -> (i32, i32) {
    %c0_i32 = arith.constant 0 : i32
    %c0_i32_0 = arith.constant 0 : i32
    %c0_i32_1 = arith.constant 0 : i32
    return %c0_i32, %c0_i32_0 : i32, i32
  }
  func.func @transform_2(%arg0: i32) -> (i32, i32) {
    %c0_i32 = arith.constant 0 : i32
    %c0_i32_0 = arith.constant 0 : i32
    %c0_i32_1 = arith.constant 0 : i32
    return %c0_i32, %c0_i32_0 : i32, i32
  }
  func.func @transform_3(%arg0: i32) -> (i32, i32) {
    %c0_i32 = arith.constant 0 : i32
    %c0_i32_0 = arith.constant 0 : i32
    %c0_i32_1 = arith.constant 0 : i32
    return %c0_i32, %c0_i32_0 : i32, i32
  }
  func.func @transform_4(%arg0: i32) -> (i32, i32) {
    %c0_i32 = arith.constant 0 : i32
    %c0_i32_0 = arith.constant 0 : i32
    %c0_i32_1 = arith.constant 0 : i32
    return %c0_i32, %c0_i32_0 : i32, i32
  }
  func.func @transform_5(%arg0: i32) -> (i32, i32) {
    %c0_i32 = arith.constant 0 : i32
    %c0_i32_0 = arith.constant 0 : i32
    %c0_i32_1 = arith.constant 0 : i32
    return %c0_i32, %c0_i32_0 : i32, i32
  }
  func.func @transform_6(%arg0: i32) -> (i32, i32) {
    %c0_i32 = arith.constant 0 : i32
    %c0_i32_0 = arith.constant 0 : i32
    %c0_i32_1 = arith.constant 0 : i32
    return %c0_i32, %c0_i32_0 : i32, i32
  }
  func.func @transform_7(%arg0: i32) -> (i32, i32) {
    %c0_i32 = arith.constant 0 : i32
    %c0_i32_0 = arith.constant 0 : i32
    %c0_i32_1 = arith.constant 0 : i32
    return %c0_i32, %c0_i32_0 : i32, i32
  }
  func.func @transform_8(%arg0: i32) -> (i32, i32) {
    %c0_i32 = arith.constant 0 : i32
    %c0_i32_0 = arith.constant 0 : i32
    %c0_i32_1 = arith.constant 0 : i32
    return %c0_i32, %c0_i32_0 : i32, i32
  }
  func.func @transform_9(%arg0: i32) -> (i32, i32) {
    %c0_i32 = arith.constant 0 : i32
    %c0_i32_0 = arith.constant 0 : i32
    %c0_i32_1 = arith.constant 0 : i32
    return %c0_i32, %c0_i32_0 : i32, i32
  }
  func.func @transform_10(%arg0: i32) -> (i32, i32, i32, i32) {
    %c0_i32 = arith.constant 0 : i32
    %c0_i32_0 = arith.constant 0 : i32
    %c0_i32_1 = arith.constant 0 : i32
    %c0_i32_2 = arith.constant 0 : i32
    return %arg0, %c0_i32, %c0_i32_0, %c0_i32_1 : i32, i32, i32, i32
  }
}

module attributes {stable_mosaic.version = 11 : i64} {
  func.func @_unit_kernel(%arg0: i32, %arg1: memref<2x8x8x256xf32, #tpu.memory_space<vmem>>, %arg2: memref<256x60xbf16, #tpu.memory_space<vmem>>, %arg3: memref<1x60xf32, #tpu.memory_space<vmem>>, %arg4: memref<1x60xf32, #tpu.memory_space<vmem>>, %arg5: memref<9x60xf32, #tpu.memory_space<vmem>>, %arg6: memref<1x60xf32, #tpu.memory_space<vmem>>, %arg7: memref<1x60xf32, #tpu.memory_space<vmem>>, %arg8: memref<60x256xbf16, #tpu.memory_space<vmem>>, %arg9: memref<1x256xf32, #tpu.memory_space<vmem>>, %arg10: memref<1x256xf32, #tpu.memory_space<vmem>>, %arg11: memref<2x8x8x256xf32, #tpu.memory_space<vmem>>, %arg12: memref<2x10x10x60xf32, #tpu.memory_space<vmem>>) attributes {dimension_semantics = [#tpu.dimension_semantics<parallel>], iteration_bounds = array<i64: 2>, scalar_prefetch = 0 : i64, scratch_operands = 1 : i64, tpu.core_type = #tpu.core_type<tc>, window_params = [{transform_indices = @transform_0, window_bounds = array<i64: 2, 8, 8, 256>}, {pipeline_mode = #tpu.pipeline_mode<synchronous>, transform_indices = @transform_1, window_bounds = array<i64: 256, 60>}, {pipeline_mode = #tpu.pipeline_mode<synchronous>, transform_indices = @transform_2, window_bounds = array<i64: 1, 60>}, {pipeline_mode = #tpu.pipeline_mode<synchronous>, transform_indices = @transform_3, window_bounds = array<i64: 1, 60>}, {pipeline_mode = #tpu.pipeline_mode<synchronous>, transform_indices = @transform_4, window_bounds = array<i64: 9, 60>}, {pipeline_mode = #tpu.pipeline_mode<synchronous>, transform_indices = @transform_5, window_bounds = array<i64: 1, 60>}, {pipeline_mode = #tpu.pipeline_mode<synchronous>, transform_indices = @transform_6, window_bounds = array<i64: 1, 60>}, {pipeline_mode = #tpu.pipeline_mode<synchronous>, transform_indices = @transform_7, window_bounds = array<i64: 60, 256>}, {pipeline_mode = #tpu.pipeline_mode<synchronous>, transform_indices = @transform_8, window_bounds = array<i64: 1, 256>}, {pipeline_mode = #tpu.pipeline_mode<synchronous>, transform_indices = @transform_9, window_bounds = array<i64: 1, 256>}, {transform_indices = @transform_10, window_bounds = array<i64: 2, 8, 8, 256>}]} {
    %cst = arith.constant 0.000000e+00 : f32
    %0 = vector.broadcast %cst : f32 to vector<2x10x1x60xf32>
    %c0 = arith.constant 0 : index
    %c0_0 = arith.constant 0 : index
    %c0_1 = arith.constant 0 : index
    %c0_2 = arith.constant 0 : index
    %1 = vector.load %arg12[%c0, %c0_0, %c0_1, %c0_2] : memref<2x10x10x60xf32, #tpu.memory_space<vmem>>, vector<2x10x1x60xf32>
    tpu.vector_store %arg12[%c0, %c0_0, %c0_1, %c0_2], %0 {strides = array<i32>} : memref<2x10x10x60xf32, #tpu.memory_space<vmem>>, vector<2x10x1x60xf32>,
    %cst_3 = arith.constant 0.000000e+00 : f32
    %2 = vector.broadcast %cst_3 : f32 to vector<2x1x10x60xf32>
    %c0_4 = arith.constant 0 : index
    %c0_5 = arith.constant 0 : index
    %c0_6 = arith.constant 0 : index
    %c0_7 = arith.constant 0 : index
    %3 = vector.load %arg12[%c0_4, %c0_5, %c0_6, %c0_7] : memref<2x10x10x60xf32, #tpu.memory_space<vmem>>, vector<2x1x10x60xf32>
    tpu.vector_store %arg12[%c0_4, %c0_5, %c0_6, %c0_7], %2 {strides = array<i32>} : memref<2x10x10x60xf32, #tpu.memory_space<vmem>>, vector<2x1x10x60xf32>,
    %cst_8 = arith.constant 0.000000e+00 : f32
    %4 = vector.broadcast %cst_8 : f32 to vector<2x1x10x60xf32>
    %c0_9 = arith.constant 0 : index
    %c9 = arith.constant 9 : index
    %c0_10 = arith.constant 0 : index
    %c0_11 = arith.constant 0 : index
    %5 = vector.load %arg12[%c0_9, %c9, %c0_10, %c0_11] : memref<2x10x10x60xf32, #tpu.memory_space<vmem>>, vector<2x1x10x60xf32>
    tpu.vector_store %arg12[%c0_9, %c9, %c0_10, %c0_11], %4 {strides = array<i32>} : memref<2x10x10x60xf32, #tpu.memory_space<vmem>>, vector<2x1x10x60xf32>,
    %cst_12 = arith.constant 0.000000e+00 : f32
    %6 = vector.broadcast %cst_12 : f32 to vector<2x10x1x60xf32>
    %c0_13 = arith.constant 0 : index
    %c0_14 = arith.constant 0 : index
    %c9_15 = arith.constant 9 : index
    %c0_16 = arith.constant 0 : index
    %7 = vector.load %arg12[%c0_13, %c0_14, %c9_15, %c0_16] : memref<2x10x10x60xf32, #tpu.memory_space<vmem>>, vector<2x10x1x60xf32>
    tpu.vector_store %arg12[%c0_13, %c0_14, %c9_15, %c0_16], %6 {strides = array<i32>} : memref<2x10x10x60xf32, #tpu.memory_space<vmem>>, vector<2x10x1x60xf32>,
    %c0_17 = arith.constant 0 : index
    %c0_18 = arith.constant 0 : index
    %8 = vector.load %arg2[%c0_17, %c0_18] : memref<256x60xbf16, #tpu.memory_space<vmem>>, vector<256x60xbf16>
    %c0_19 = arith.constant 0 : index
    %c0_20 = arith.constant 0 : index
    %9 = vector.load %arg3[%c0_19, %c0_20] : memref<1x60xf32, #tpu.memory_space<vmem>>, vector<1x60xf32>
    %c0_21 = arith.constant 0 : index
    %c0_22 = arith.constant 0 : index
    %10 = vector.load %arg4[%c0_21, %c0_22] : memref<1x60xf32, #tpu.memory_space<vmem>>, vector<1x60xf32>
    %c0_23 = arith.constant 0 : index
    %c0_24 = arith.constant 0 : index
    %c0_25 = arith.constant 0 : index
    %c0_26 = arith.constant 0 : index
    %11 = vector.load %arg1[%c0_23, %c0_24, %c0_25, %c0_26] : memref<2x8x8x256xf32, #tpu.memory_space<vmem>>, vector<2x8x8x256xf32>
    %12 = vector.shape_cast %11 : vector<2x8x8x256xf32> to vector<128x256xf32>
    %13 = arith.truncf %12 : vector<128x256xf32> to vector<128x256xbf16>
    %cst_27 = arith.constant dense<0.000000e+00> : vector<128x60xf32>
    %14 = tpu.matmul %13, %8, %cst_27 {dimension_numbers = #tpu.dot_dimension_numbers<[1], [0], [0], [1], [0, 0, 1, 1], [], []>} : vector<128x256xbf16>, vector<256x60xbf16>, vector<128x60xf32> -> vector<128x60xf32>
    %15 = vector.broadcast %9 : vector<1x60xf32> to vector<128x60xf32>
    %16 = arith.mulf %14, %15 : vector<128x60xf32>
    %17 = vector.broadcast %10 : vector<1x60xf32> to vector<128x60xf32>
    %18 = arith.addf %16, %17 : vector<128x60xf32>
    %cst_28 = arith.constant 0.000000e+00 : f32
    %19 = vector.broadcast %cst_28 : f32 to vector<128x60xf32>
    %20 = arith.maximumf %18, %19 : vector<128x60xf32>
    %21 = vector.shape_cast %20 : vector<128x60xf32> to vector<2x8x8x60xf32>
    %c0_29 = arith.constant 0 : index
    %c1 = arith.constant 1 : index
    %c1_30 = arith.constant 1 : index
    %c0_31 = arith.constant 0 : index
    %22 = vector.load %arg12[%c0_29, %c1, %c1_30, %c0_31] : memref<2x10x10x60xf32, #tpu.memory_space<vmem>>, vector<2x8x8x60xf32>
    tpu.vector_store %arg12[%c0_29, %c1, %c1_30, %c0_31], %21 {strides = array<i32>} : memref<2x10x10x60xf32, #tpu.memory_space<vmem>>, vector<2x8x8x60xf32>,
    %c0_32 = arith.constant 0 : index
    %c0_33 = arith.constant 0 : index
    %23 = vector.load %arg5[%c0_32, %c0_33] : memref<9x60xf32, #tpu.memory_space<vmem>>, vector<9x60xf32>
    %cst_34 = arith.constant 0.000000e+00 : f32
    %24 = vector.broadcast %cst_34 : f32 to vector<2x8x8x60xf32>
    %c0_35 = arith.constant 0 : index
    %c0_36 = arith.constant 0 : index
    %c0_37 = arith.constant 0 : index
    %c0_38 = arith.constant 0 : index
    %25 = vector.load %arg12[%c0_35, %c0_36, %c0_37, %c0_38] : memref<2x10x10x60xf32, #tpu.memory_space<vmem>>, vector<2x8x8x60xf32>
    %26 = vector.extract_strided_slice %23 {offsets = [0, 0], sizes = [1, 60], strides = [1, 1]} : vector<9x60xf32> to vector<1x60xf32>
    %27 = vector.shape_cast %26 : vector<1x60xf32> to vector<1x1x1x60xf32>
    %28 = vector.broadcast %27 : vector<1x1x1x60xf32> to vector<2x8x8x60xf32>
    %29 = arith.mulf %25, %28 : vector<2x8x8x60xf32>
    %30 = arith.addf %24, %29 : vector<2x8x8x60xf32>
    %c0_39 = arith.constant 0 : index
    %c0_40 = arith.constant 0 : index
    %c1_41 = arith.constant 1 : index
    %c0_42 = arith.constant 0 : index
    %31 = vector.load %arg12[%c0_39, %c0_40, %c1_41, %c0_42] : memref<2x10x10x60xf32, #tpu.memory_space<vmem>>, vector<2x8x8x60xf32>
    %32 = vector.extract_strided_slice %23 {offsets = [1, 0], sizes = [1, 60], strides = [1, 1]} : vector<9x60xf32> to vector<1x60xf32>
    %33 = vector.shape_cast %32 : vector<1x60xf32> to vector<1x1x1x60xf32>
    %34 = vector.broadcast %33 : vector<1x1x1x60xf32> to vector<2x8x8x60xf32>
    %35 = arith.mulf %31, %34 : vector<2x8x8x60xf32>
    %36 = arith.addf %30, %35 : vector<2x8x8x60xf32>
    %c0_43 = arith.constant 0 : index
    %c0_44 = arith.constant 0 : index
    %c2 = arith.constant 2 : index
    %c0_45 = arith.constant 0 : index
    %37 = vector.load %arg12[%c0_43, %c0_44, %c2, %c0_45] : memref<2x10x10x60xf32, #tpu.memory_space<vmem>>, vector<2x8x8x60xf32>
    %38 = vector.extract_strided_slice %23 {offsets = [2, 0], sizes = [1, 60], strides = [1, 1]} : vector<9x60xf32> to vector<1x60xf32>
    %39 = vector.shape_cast %38 : vector<1x60xf32> to vector<1x1x1x60xf32>
    %40 = vector.broadcast %39 : vector<1x1x1x60xf32> to vector<2x8x8x60xf32>
    %41 = arith.mulf %37, %40 : vector<2x8x8x60xf32>
    %42 = arith.addf %36, %41 : vector<2x8x8x60xf32>
    %c0_46 = arith.constant 0 : index
    %c1_47 = arith.constant 1 : index
    %c0_48 = arith.constant 0 : index
    %c0_49 = arith.constant 0 : index
    %43 = vector.load %arg12[%c0_46, %c1_47, %c0_48, %c0_49] : memref<2x10x10x60xf32, #tpu.memory_space<vmem>>, vector<2x8x8x60xf32>
    %44 = vector.extract_strided_slice %23 {offsets = [3, 0], sizes = [1, 60], strides = [1, 1]} : vector<9x60xf32> to vector<1x60xf32>
    %45 = vector.shape_cast %44 : vector<1x60xf32> to vector<1x1x1x60xf32>
    %46 = vector.broadcast %45 : vector<1x1x1x60xf32> to vector<2x8x8x60xf32>
    %47 = arith.mulf %43, %46 : vector<2x8x8x60xf32>
    %48 = arith.addf %42, %47 : vector<2x8x8x60xf32>
    %c0_50 = arith.constant 0 : index
    %c1_51 = arith.constant 1 : index
    %c1_52 = arith.constant 1 : index
    %c0_53 = arith.constant 0 : index
    %49 = vector.load %arg12[%c0_50, %c1_51, %c1_52, %c0_53] : memref<2x10x10x60xf32, #tpu.memory_space<vmem>>, vector<2x8x8x60xf32>
    %50 = vector.extract_strided_slice %23 {offsets = [4, 0], sizes = [1, 60], strides = [1, 1]} : vector<9x60xf32> to vector<1x60xf32>
    %51 = vector.shape_cast %50 : vector<1x60xf32> to vector<1x1x1x60xf32>
    %52 = vector.broadcast %51 : vector<1x1x1x60xf32> to vector<2x8x8x60xf32>
    %53 = arith.mulf %49, %52 : vector<2x8x8x60xf32>
    %54 = arith.addf %48, %53 : vector<2x8x8x60xf32>
    %c0_54 = arith.constant 0 : index
    %c1_55 = arith.constant 1 : index
    %c2_56 = arith.constant 2 : index
    %c0_57 = arith.constant 0 : index
    %55 = vector.load %arg12[%c0_54, %c1_55, %c2_56, %c0_57] : memref<2x10x10x60xf32, #tpu.memory_space<vmem>>, vector<2x8x8x60xf32>
    %56 = vector.extract_strided_slice %23 {offsets = [5, 0], sizes = [1, 60], strides = [1, 1]} : vector<9x60xf32> to vector<1x60xf32>
    %57 = vector.shape_cast %56 : vector<1x60xf32> to vector<1x1x1x60xf32>
    %58 = vector.broadcast %57 : vector<1x1x1x60xf32> to vector<2x8x8x60xf32>
    %59 = arith.mulf %55, %58 : vector<2x8x8x60xf32>
    %60 = arith.addf %54, %59 : vector<2x8x8x60xf32>
    %c0_58 = arith.constant 0 : index
    %c2_59 = arith.constant 2 : index
    %c0_60 = arith.constant 0 : index
    %c0_61 = arith.constant 0 : index
    %61 = vector.load %arg12[%c0_58, %c2_59, %c0_60, %c0_61] : memref<2x10x10x60xf32, #tpu.memory_space<vmem>>, vector<2x8x8x60xf32>
    %62 = vector.extract_strided_slice %23 {offsets = [6, 0], sizes = [1, 60], strides = [1, 1]} : vector<9x60xf32> to vector<1x60xf32>
    %63 = vector.shape_cast %62 : vector<1x60xf32> to vector<1x1x1x60xf32>
    %64 = vector.broadcast %63 : vector<1x1x1x60xf32> to vector<2x8x8x60xf32>
    %65 = arith.mulf %61, %64 : vector<2x8x8x60xf32>
    %66 = arith.addf %60, %65 : vector<2x8x8x60xf32>
    %c0_62 = arith.constant 0 : index
    %c2_63 = arith.constant 2 : index
    %c1_64 = arith.constant 1 : index
    %c0_65 = arith.constant 0 : index
    %67 = vector.load %arg12[%c0_62, %c2_63, %c1_64, %c0_65] : memref<2x10x10x60xf32, #tpu.memory_space<vmem>>, vector<2x8x8x60xf32>
    %68 = vector.extract_strided_slice %23 {offsets = [7, 0], sizes = [1, 60], strides = [1, 1]} : vector<9x60xf32> to vector<1x60xf32>
    %69 = vector.shape_cast %68 : vector<1x60xf32> to vector<1x1x1x60xf32>
    %70 = vector.broadcast %69 : vector<1x1x1x60xf32> to vector<2x8x8x60xf32>
    %71 = arith.mulf %67, %70 : vector<2x8x8x60xf32>
    %72 = arith.addf %66, %71 : vector<2x8x8x60xf32>
    %c0_66 = arith.constant 0 : index
    %c2_67 = arith.constant 2 : index
    %c2_68 = arith.constant 2 : index
    %c0_69 = arith.constant 0 : index
    %73 = vector.load %arg12[%c0_66, %c2_67, %c2_68, %c0_69] : memref<2x10x10x60xf32, #tpu.memory_space<vmem>>, vector<2x8x8x60xf32>
    %74 = vector.extract_strided_slice %23 {offsets = [8, 0], sizes = [1, 60], strides = [1, 1]} : vector<9x60xf32> to vector<1x60xf32>
    %75 = vector.shape_cast %74 : vector<1x60xf32> to vector<1x1x1x60xf32>
    %76 = vector.broadcast %75 : vector<1x1x1x60xf32> to vector<2x8x8x60xf32>
    %77 = arith.mulf %73, %76 : vector<2x8x8x60xf32>
    %78 = arith.addf %72, %77 : vector<2x8x8x60xf32>
    %c0_70 = arith.constant 0 : index
    %c0_71 = arith.constant 0 : index
    %79 = vector.load %arg6[%c0_70, %c0_71] : memref<1x60xf32, #tpu.memory_space<vmem>>, vector<1x60xf32>
    %80 = vector.shape_cast %79 : vector<1x60xf32> to vector<1x1x1x60xf32>
    %81 = vector.broadcast %80 : vector<1x1x1x60xf32> to vector<2x8x8x60xf32>
    %82 = arith.mulf %78, %81 : vector<2x8x8x60xf32>
    %c0_72 = arith.constant 0 : index
    %c0_73 = arith.constant 0 : index
    %83 = vector.load %arg7[%c0_72, %c0_73] : memref<1x60xf32, #tpu.memory_space<vmem>>, vector<1x60xf32>
    %84 = vector.shape_cast %83 : vector<1x60xf32> to vector<1x1x1x60xf32>
    %85 = vector.broadcast %84 : vector<1x1x1x60xf32> to vector<2x8x8x60xf32>
    %86 = arith.addf %82, %85 : vector<2x8x8x60xf32>
    %87 = vector.shape_cast %86 : vector<2x8x8x60xf32> to vector<128x60xf32>
    %88 = arith.truncf %87 : vector<128x60xf32> to vector<128x60xbf16>
    %c0_74 = arith.constant 0 : index
    %c0_75 = arith.constant 0 : index
    %89 = vector.load %arg8[%c0_74, %c0_75] : memref<60x256xbf16, #tpu.memory_space<vmem>>, vector<60x256xbf16>
    %cst_76 = arith.constant dense<0.000000e+00> : vector<128x256xf32>
    %90 = tpu.matmul %88, %89, %cst_76 {dimension_numbers = #tpu.dot_dimension_numbers<[1], [0], [0], [1], [0, 0, 1, 1], [], []>} : vector<128x60xbf16>, vector<60x256xbf16>, vector<128x256xf32> -> vector<128x256xf32>
    %c0_77 = arith.constant 0 : index
    %c0_78 = arith.constant 0 : index
    %91 = vector.load %arg9[%c0_77, %c0_78] : memref<1x256xf32, #tpu.memory_space<vmem>>, vector<1x256xf32>
    %92 = vector.broadcast %91 : vector<1x256xf32> to vector<128x256xf32>
    %93 = arith.mulf %90, %92 : vector<128x256xf32>
    %c0_79 = arith.constant 0 : index
    %c0_80 = arith.constant 0 : index
    %94 = vector.load %arg10[%c0_79, %c0_80] : memref<1x256xf32, #tpu.memory_space<vmem>>, vector<1x256xf32>
    %95 = vector.broadcast %94 : vector<1x256xf32> to vector<128x256xf32>
    %96 = arith.addf %93, %95 : vector<128x256xf32>
    %97 = arith.addf %12, %96 : vector<128x256xf32>
    %cst_81 = arith.constant 0.000000e+00 : f32
    %98 = vector.broadcast %cst_81 : f32 to vector<128x256xf32>
    %99 = arith.maximumf %97, %98 : vector<128x256xf32>
    %100 = vector.shape_cast %99 : vector<128x256xf32> to vector<2x8x8x256xf32>
    %c0_82 = arith.constant 0 : index
    %c0_83 = arith.constant 0 : index
    %c0_84 = arith.constant 0 : index
    %c0_85 = arith.constant 0 : index
    %101 = vector.load %arg11[%c0_82, %c0_83, %c0_84, %c0_85] : memref<2x8x8x256xf32, #tpu.memory_space<vmem>>, vector<2x8x8x256xf32>
    tpu.vector_store %arg11[%c0_82, %c0_83, %c0_84, %c0_85], %100 {strides = array<i32>} : memref<2x8x8x256xf32, #tpu.memory_space<vmem>>, vector<2x8x8x256xf32>,
    return
  }
  func.func @transform_0(%arg0: i32) -> (i32, i32, i32, i32) {
    %c0_i32 = arith.constant 0 : i32
    %c0_i32_0 = arith.constant 0 : i32
    %c0_i32_1 = arith.constant 0 : i32
    %c0_i32_2 = arith.constant 0 : i32
    return %arg0, %c0_i32, %c0_i32_0, %c0_i32_1 : i32, i32, i32, i32
  }
  func.func @transform_1(%arg0: i32) -> (i32, i32) {
    %c0_i32 = arith.constant 0 : i32
    %c0_i32_0 = arith.constant 0 : i32
    %c0_i32_1 = arith.constant 0 : i32
    return %c0_i32, %c0_i32_0 : i32, i32
  }
  func.func @transform_2(%arg0: i32) -> (i32, i32) {
    %c0_i32 = arith.constant 0 : i32
    %c0_i32_0 = arith.constant 0 : i32
    %c0_i32_1 = arith.constant 0 : i32
    return %c0_i32, %c0_i32_0 : i32, i32
  }
  func.func @transform_3(%arg0: i32) -> (i32, i32) {
    %c0_i32 = arith.constant 0 : i32
    %c0_i32_0 = arith.constant 0 : i32
    %c0_i32_1 = arith.constant 0 : i32
    return %c0_i32, %c0_i32_0 : i32, i32
  }
  func.func @transform_4(%arg0: i32) -> (i32, i32) {
    %c0_i32 = arith.constant 0 : i32
    %c0_i32_0 = arith.constant 0 : i32
    %c0_i32_1 = arith.constant 0 : i32
    return %c0_i32, %c0_i32_0 : i32, i32
  }
  func.func @transform_5(%arg0: i32) -> (i32, i32) {
    %c0_i32 = arith.constant 0 : i32
    %c0_i32_0 = arith.constant 0 : i32
    %c0_i32_1 = arith.constant 0 : i32
    return %c0_i32, %c0_i32_0 : i32, i32
  }
  func.func @transform_6(%arg0: i32) -> (i32, i32) {
    %c0_i32 = arith.constant 0 : i32
    %c0_i32_0 = arith.constant 0 : i32
    %c0_i32_1 = arith.constant 0 : i32
    return %c0_i32, %c0_i32_0 : i32, i32
  }
  func.func @transform_7(%arg0: i32) -> (i32, i32) {
    %c0_i32 = arith.constant 0 : i32
    %c0_i32_0 = arith.constant 0 : i32
    %c0_i32_1 = arith.constant 0 : i32
    return %c0_i32, %c0_i32_0 : i32, i32
  }
  func.func @transform_8(%arg0: i32) -> (i32, i32) {
    %c0_i32 = arith.constant 0 : i32
    %c0_i32_0 = arith.constant 0 : i32
    %c0_i32_1 = arith.constant 0 : i32
    return %c0_i32, %c0_i32_0 : i32, i32
  }
  func.func @transform_9(%arg0: i32) -> (i32, i32) {
    %c0_i32 = arith.constant 0 : i32
    %c0_i32_0 = arith.constant 0 : i32
    %c0_i32_1 = arith.constant 0 : i32
    return %c0_i32, %c0_i32_0 : i32, i32
  }
  func.func @transform_10(%arg0: i32) -> (i32, i32, i32, i32) {
    %c0_i32 = arith.constant 0 : i32
    %c0_i32_0 = arith.constant 0 : i32
    %c0_i32_1 = arith.constant 0 : i32
    %c0_i32_2 = arith.constant 0 : i32
    return %arg0, %c0_i32, %c0_i32_0, %c0_i32_1 : i32, i32, i32, i32
  }
}

</mosaic_0001>

<llo_original>
// kernel: _lambda_.3
$region0: #{_lambda_.3}
  #allocation0 [shape = 'u32[]', space=smem, size = 0x4, offset = 0x4, fixed_abs, tag = 'smem constant byte address 0x4 - core index']
  #allocation1 [shape = 'u32[144,128]{1,0:T(1,128)}', space=vmem, size = 0x12000, scoped, tag = 'internal scratch']
  #allocation2 [shape = 'f32[2,10,10,60]{3,2,1,0:T(8,128)}', space=vmem, size = 0x28000, scoped, tag = 'scratch operand']
  %s0 = inlined_call_operand.vmem [shape: f32[4,8,8,256], index: 0, kind: input, shape index: {}]
  %s1 = inlined_call_operand.vmem [shape: bf16[256,60], index: 1, kind: input, shape index: {}]
  %s2 = inlined_call_operand.vmem [shape: f32[1,60], index: 2, kind: input, shape index: {}]
  %s3 = inlined_call_operand.vmem [shape: f32[1,60], index: 3, kind: input, shape index: {}]
  %s4 = inlined_call_operand.vmem [shape: f32[9,60], index: 4, kind: input, shape index: {}]
  %s5 = inlined_call_operand.vmem [shape: f32[1,60], index: 5, kind: input, shape index: {}]
  %s6 = inlined_call_operand.vmem [shape: f32[1,60], index: 6, kind: input, shape index: {}]
  %s7 = inlined_call_operand.vmem [shape: bf16[60,256], index: 7, kind: input, shape index: {}]
  %s8 = inlined_call_operand.vmem [shape: f32[1,256], index: 8, kind: input, shape index: {}]
  %s9 = inlined_call_operand.vmem [shape: f32[1,256], index: 9, kind: input, shape index: {}]
  %s10 = inlined_call_operand.hbm [shape: f32[4,8,8,256], index: 10, kind: output, shape index: {}]
  %s11 = sld [smem:[#allocation0]]
  $region73: #{_lambda_.3} parent=0
    _
  %s13 = ssub.s32 1, %s11
  %s14 = scalar_select 0, %s13, %s11
  $region1: #{_lambda_.3} parent=0
    #allocation3 [shape = 'u8[262144]{0}', space=vmem, size = 0x40000, scoped, tag = 'output window, operand 0']
    #allocation4 [shape = 's32[2]{0}', space=sflag, size = 0x8, scoped, tag = 'scoped memory for _lambda_.3']
    %15 = vsyncpa [#allocation4], 0
    %s16 = scalar_lea.sflag [#allocation4], 1
    %17 = vsyncpa %s16, 0
    loop: start=0, step=1, limit=4
    $region2: #{_lambda_.3} parent=1 // loop_pre_header
      _
    $region3: #{_lambda_.3} parent=1 // loop_header
      %s19 = sphi 0, %s23
      %p20 = scmp.ge.s32.totalorder %s19, 4
      %s29 = sphi 0, %s31
      %s32 = sphi 0, %s29
      %s33 = sphi 0, %s32
      %s49 = sphi 0, %s33
      %s53 = sphi 0, %s53
      %s55 = sphi 0, %s53
      %s56 = sphi 0, %s55
      %s70 = sphi 0, %s56
      %s74 = sphi 0, %s74
      %s76 = sphi 0, %s74
      %s77 = sphi 0, %s76
      %s91 = sphi 0, %s77
      %s95 = sphi 0, %s95
      %s97 = sphi 0, %s95
      %s98 = sphi 0, %s97
      %s112 = sphi 0, %s98
      %s116 = sphi 0, %s116
      %s118 = sphi 0, %s116
      %s119 = sphi 0, %s118
      %s133 = sphi 0, %s119
      %s137 = sphi 0, %s137
      %s139 = sphi 0, %s137
      %s140 = sphi 0, %s139
      %s154 = sphi 0, %s140
      %s158 = sphi 0, %s158
      %s160 = sphi 0, %s158
      %s161 = sphi 0, %s160
      %s175 = sphi 0, %s161
      %s179 = sphi 0, %s179
      %s181 = sphi 0, %s179
      %s182 = sphi 0, %s181
      %s196 = sphi 0, %s182
      %s200 = sphi 0, %s200
      %s202 = sphi 0, %s200
      %s203 = sphi 0, %s202
      %s217 = sphi 0, %s203
      %s221 = sphi 0, %s221
      %s223 = sphi 0, %s221
      %s224 = sphi 0, %s223
      %s238 = sphi 0, %s224
      %s244 = sphi 0, %s246
      %s247 = sphi 0, %s244
      %s248 = sphi 0, %s247
      %s264 = sphi 0, %s248
    $region4: #{_lambda_.3} parent=1 // loop_header_branch
      %22 = sbr.rel (%p20) target = $region8
    $region5: #{_lambda_.3} parent=1 // loop_body
      %s24 = ssub.s32 %s19, 1
      %s25 = ssub.s32 %s19, 2
      %s26 = sadd.s32 %s19, 1
      %s27 = ssub.s32 %s19, %s26
      %p28 = scmp.eq.s32.totalorder %s27, 0
      %s30 = sadd.s32 %s29, 1
      %s31 = scalar_select %p28, %s29, %s30
      %p34 = pneg %p28
      %p35 = scmp.eq.s32.totalorder %s19, 1
      %p36 = por %p34, %p35
      %p37 = scmp.ne.s32.totalorder %s29, %s32
      %p38 = scmp.eq.s32.totalorder %s19, 0
      %p39 = por %p37, %p38
      %p40 = scmp.ne.s32.totalorder %s29, %s32
      %p41 = scmp.eq.s32.totalorder %s24, 1
      %p42 = por %p40, %p41
      %p43 = scmp.ne.s32.totalorder %s32, %s33
      %p44 = scmp.eq.s32.totalorder %s24, 0
      %p45 = por %p43, %p44
      %p46 = scmp.ne.s32.totalorder %s32, %s33
      %p47 = scmp.eq.s32.totalorder %s25, 1
      %p48 = por %p46, %p47
      %p50 = scmp.ne.s32.totalorder %s33, %s49
      %p51 = scmp.eq.s32.totalorder %s25, 0
      %p52 = por %p50, %p51
      %s54 = sadd.s32 %s53, 1
      %p57 = scmp.eq.s32.totalorder %s19, 1
      %p58 = scmp.ne.s32.totalorder %s53, %s55
      %p59 = scmp.eq.s32.totalorder %s19, 0
      %p60 = por %p58, %p59
      %p61 = scmp.ne.s32.totalorder %s53, %s55
      %p62 = scmp.eq.s32.totalorder %s24, 1
      %p63 = por %p61, %p62
      %p64 = scmp.ne.s32.totalorder %s55, %s56
      %p65 = scmp.eq.s32.totalorder %s24, 0
      %p66 = por %p64, %p65
      %p67 = scmp.ne.s32.totalorder %s55, %s56
      %p68 = scmp.eq.s32.totalorder %s25, 1
      %p69 = por %p67, %p68
      %p71 = scmp.ne.s32.totalorder %s56, %s70
      %p72 = scmp.eq.s32.totalorder %s25, 0
      %p73 = por %p71, %p72
      %s75 = sadd.s32 %s74, 1
      %p78 = scmp.eq.s32.totalorder %s19, 1
      %p79 = scmp.ne.s32.totalorder %s74, %s76
      %p80 = scmp.eq.s32.totalorder %s19, 0
      %p81 = por %p79, %p80
      %p82 = scmp.ne.s32.totalorder %s74, %s76
      %p83 = scmp.eq.s32.totalorder %s24, 1
      %p84 = por %p82, %p83
      %p85 = scmp.ne.s32.totalorder %s76, %s77
      %p86 = scmp.eq.s32.totalorder %s24, 0
      %p87 = por %p85, %p86
      %p88 = scmp.ne.s32.totalorder %s76, %s77
      %p89 = scmp.eq.s32.totalorder %s25, 1
      %p90 = por %p88, %p89
      %p92 = scmp.ne.s32.totalorder %s77, %s91
      %p93 = scmp.eq.s32.totalorder %s25, 0
      %p94 = por %p92, %p93
      %s96 = sadd.s32 %s95, 1
      %p99 = scmp.eq.s32.totalorder %s19, 1
      %p100 = scmp.ne.s32.totalorder %s95, %s97
      %p101 = scmp.eq.s32.totalorder %s19, 0
      %p102 = por %p100, %p101
      %p103 = scmp.ne.s32.totalorder %s95, %s97
      %p104 = scmp.eq.s32.totalorder %s24, 1
      %p105 = por %p103, %p104
      %p106 = scmp.ne.s32.totalorder %s97, %s98
      %p107 = scmp.eq.s32.totalorder %s24, 0
      %p108 = por %p106, %p107
      %p109 = scmp.ne.s32.totalorder %s97, %s98
      %p110 = scmp.eq.s32.totalorder %s25, 1
      %p111 = por %p109, %p110
      %p113 = scmp.ne.s32.totalorder %s98, %s112
      %p114 = scmp.eq.s32.totalorder %s25, 0
      %p115 = por %p113, %p114
      %s117 = sadd.s32 %s116, 1
      %p120 = scmp.eq.s32.totalorder %s19, 1
      %p121 = scmp.ne.s32.totalorder %s116, %s118
      %p122 = scmp.eq.s32.totalorder %s19, 0
      %p123 = por %p121, %p122
      %p124 = scmp.ne.s32.totalorder %s116, %s118
      %p125 = scmp.eq.s32.totalorder %s24, 1
      %p126 = por %p124, %p125
      %p127 = scmp.ne.s32.totalorder %s118, %s119
      %p128 = scmp.eq.s32.totalorder %s24, 0
      %p129 = por %p127, %p128
      %p130 = scmp.ne.s32.totalorder %s118, %s119
      %p131 = scmp.eq.s32.totalorder %s25, 1
      %p132 = por %p130, %p131
      %p134 = scmp.ne.s32.totalorder %s119, %s133
      %p135 = scmp.eq.s32.totalorder %s25, 0
      %p136 = por %p134, %p135
      %s138 = sadd.s32 %s137, 1
      %p141 = scmp.eq.s32.totalorder %s19, 1
      %p142 = scmp.ne.s32.totalorder %s137, %s139
      %p143 = scmp.eq.s32.totalorder %s19, 0
      %p144 = por %p142, %p143
      %p145 = scmp.ne.s32.totalorder %s137, %s139
      %p146 = scmp.eq.s32.totalorder %s24, 1
      %p147 = por %p145, %p146
      %p148 = scmp.ne.s32.totalorder %s139, %s140
      %p149 = scmp.eq.s32.totalorder %s24, 0
      %p150 = por %p148, %p149
      %p151 = scmp.ne.s32.totalorder %s139, %s140
      %p152 = scmp.eq.s32.totalorder %s25, 1
      %p153 = por %p151, %p152
      %p155 = scmp.ne.s32.totalorder %s140, %s154
      %p156 = scmp.eq.s32.totalorder %s25, 0
      %p157 = por %p155, %p156
      %s159 = sadd.s32 %s158, 1
      %p162 = scmp.eq.s32.totalorder %s19, 1
      %p163 = scmp.ne.s32.totalorder %s158, %s160
      %p164 = scmp.eq.s32.totalorder %s19, 0
      %p165 = por %p163, %p164
      %p166 = scmp.ne.s32.totalorder %s158, %s160
      %p167 = scmp.eq.s32.totalorder %s24, 1
      %p168 = por %p166, %p167
      %p169 = scmp.ne.s32.totalorder %s160, %s161
      %p170 = scmp.eq.s32.totalorder %s24, 0
      %p171 = por %p169, %p170
      %p172 = scmp.ne.s32.totalorder %s160, %s161
      %p173 = scmp.eq.s32.totalorder %s25, 1
      %p174 = por %p172, %p173
      %p176 = scmp.ne.s32.totalorder %s161, %s175
      %p177 = scmp.eq.s32.totalorder %s25, 0
      %p178 = por %p176, %p177
      %s180 = sadd.s32 %s179, 1
      %p183 = scmp.eq.s32.totalorder %s19, 1
      %p184 = scmp.ne.s32.totalorder %s179, %s181
      %p185 = scmp.eq.s32.totalorder %s19, 0
      %p186 = por %p184, %p185
      %p187 = scmp.ne.s32.totalorder %s179, %s181
      %p188 = scmp.eq.s32.totalorder %s24, 1
      %p189 = por %p187, %p188
      %p190 = scmp.ne.s32.totalorder %s181, %s182
      %p191 = scmp.eq.s32.totalorder %s24, 0
      %p192 = por %p190, %p191
      %p193 = scmp.ne.s32.totalorder %s181, %s182
      %p194 = scmp.eq.s32.totalorder %s25, 1
      %p195 = por %p193, %p194
      %p197 = scmp.ne.s32.totalorder %s182, %s196
      %p198 = scmp.eq.s32.totalorder %s25, 0
      %p199 = por %p197, %p198
      %s201 = sadd.s32 %s200, 1
      %p204 = scmp.eq.s32.totalorder %s19, 1
      %p205 = scmp.ne.s32.totalorder %s200, %s202
      %p206 = scmp.eq.s32.totalorder %s19, 0
      %p207 = por %p205, %p206
      %p208 = scmp.ne.s32.totalorder %s200, %s202
      %p209 = scmp.eq.s32.totalorder %s24, 1
      %p210 = por %p208, %p209
      %p211 = scmp.ne.s32.totalorder %s202, %s203
      %p212 = scmp.eq.s32.totalorder %s24, 0
      %p213 = por %p211, %p212
      %p214 = scmp.ne.s32.totalorder %s202, %s203
      %p215 = scmp.eq.s32.totalorder %s25, 1
      %p216 = por %p214, %p215
      %p218 = scmp.ne.s32.totalorder %s203, %s217
      %p219 = scmp.eq.s32.totalorder %s25, 0
      %p220 = por %p218, %p219
      %s222 = sadd.s32 %s221, 1
      %p225 = scmp.eq.s32.totalorder %s19, 1
      %p226 = scmp.ne.s32.totalorder %s221, %s223
      %p227 = scmp.eq.s32.totalorder %s19, 0
      %p228 = por %p226, %p227
      %p229 = scmp.ne.s32.totalorder %s221, %s223
      %p230 = scmp.eq.s32.totalorder %s24, 1
      %p231 = por %p229, %p230
      %p232 = scmp.ne.s32.totalorder %s223, %s224
      %p233 = scmp.eq.s32.totalorder %s24, 0
      %p234 = por %p232, %p233
      %p235 = scmp.ne.s32.totalorder %s223, %s224
      %p236 = scmp.eq.s32.totalorder %s25, 1
      %p237 = por %p235, %p236
      %p239 = scmp.ne.s32.totalorder %s224, %s238
      %p240 = scmp.eq.s32.totalorder %s25, 0
      %p241 = por %p239, %p240
      %s242 = ssub.s32 %s19, %s26
      %p243 = scmp.eq.s32.totalorder %s242, 0
      %s245 = sadd.s32 %s244, 1
      %s246 = scalar_select %p243, %s244, %s245
      %p249 = pneg %p243
      %p250 = scmp.eq.s32.totalorder %s19, 1
      %p251 = por %p249, %p250
      %p252 = scmp.ne.s32.totalorder %s244, %s247
      %p253 = scmp.eq.s32.totalorder %s19, 0
      %p254 = por %p252, %p253
      %p255 = scmp.ne.s32.totalorder %s244, %s247
      %p256 = scmp.eq.s32.totalorder %s24, 1
      %p257 = por %p255, %p256
      %p258 = scmp.ne.s32.totalorder %s247, %s248
      %p259 = scmp.eq.s32.totalorder %s24, 0
      %p260 = por %p258, %p259
      %p261 = scmp.ne.s32.totalorder %s247, %s248
      %p262 = scmp.eq.s32.totalorder %s25, 1
      %p263 = por %p261, %p262
      %p265 = scmp.ne.s32.totalorder %s248, %s264
      %p266 = scmp.eq.s32.totalorder %s25, 0
      %p267 = por %p265, %p266
      %p268 = scmp.le.s32.totalorder 1, %s19
      %p269 = scmp.lt.s32.totalorder %s19, 3
      %p270 = pnand %p268, %p269
      %p271 = pneg %p270
      // Predicated region
      $region9: #{_lambda_.3} parent=5 // pred_check
        _
      $region10: #{_lambda_.3} parent=5 // pred_check_branch
        %273 = sbr.rel (%p270) target = $region12
      $region11: #{_lambda_.3} parent=5 // pred_region
        %s274 = ssub.s32 %s19, 1
        // Predicated region
        $region13: #{_lambda_.3} parent=11 // pred_check
          %p275 = pneg %p66
        $region14: #{_lambda_.3} parent=11 // pred_check_branch
          %277 = sbr.rel (%p275) target = $region16
        $region15: #{_lambda_.3} parent=11 // pred_region
          _
        $region16: #{_lambda_.3} parent=11 // pred_fallthru
          _
        // Predicated region
        $region17: #{_lambda_.3} parent=11 // pred_check
          %p278 = pneg %p87
        $region18: #{_lambda_.3} parent=11 // pred_check_branch
          %280 = sbr.rel (%p278) target = $region20
        $region19: #{_lambda_.3} parent=11 // pred_region
          _
        $region20: #{_lambda_.3} parent=11 // pred_fallthru
          _
        // Predicated region
        $region21: #{_lambda_.3} parent=11 // pred_check
          %p281 = pneg %p108
        $region22: #{_lambda_.3} parent=11 // pred_check_branch
          %283 = sbr.rel (%p281) target = $region24
        $region23: #{_lambda_.3} parent=11 // pred_region
          _
        $region24: #{_lambda_.3} parent=11 // pred_fallthru
          _
        // Predicated region
        $region25: #{_lambda_.3} parent=11 // pred_check
          %p284 = pneg %p129
        $region26: #{_lambda_.3} parent=11 // pred_check_branch
          %286 = sbr.rel (%p284) target = $region28
        $region27: #{_lambda_.3} parent=11 // pred_region
          _
        $region28: #{_lambda_.3} parent=11 // pred_fallthru
          _
        // Predicated region
        $region29: #{_lambda_.3} parent=11 // pred_check
          %p287 = pneg %p150
        $region30: #{_lambda_.3} parent=11 // pred_check_branch
          %289 = sbr.rel (%p287) target = $region32
        $region31: #{_lambda_.3} parent=11 // pred_region
          _
        $region32: #{_lambda_.3} parent=11 // pred_fallthru
          _
        // Predicated region
        $region33: #{_lambda_.3} parent=11 // pred_check
          %p290 = pneg %p171
        $region34: #{_lambda_.3} parent=11 // pred_check_branch
          %292 = sbr.rel (%p290) target = $region36
        $region35: #{_lambda_.3} parent=11 // pred_region
          _
        $region36: #{_lambda_.3} parent=11 // pred_fallthru
          _
        // Predicated region
        $region37: #{_lambda_.3} parent=11 // pred_check
          %p293 = pneg %p192
        $region38: #{_lambda_.3} parent=11 // pred_check_branch
          %295 = sbr.rel (%p293) target = $region40
        $region39: #{_lambda_.3} parent=11 // pred_region
          _
        $region40: #{_lambda_.3} parent=11 // pred_fallthru
          _
        // Predicated region
        $region41: #{_lambda_.3} parent=11 // pred_check
          %p296 = pneg %p213
        $region42: #{_lambda_.3} parent=11 // pred_check_branch
          %298 = sbr.rel (%p296) target = $region44
        $region43: #{_lambda_.3} parent=11 // pred_region
          _
        $region44: #{_lambda_.3} parent=11 // pred_fallthru
          _
        // Predicated region
        $region45: #{_lambda_.3} parent=11 // pred_check
          %p299 = pneg %p234
        $region46: #{_lambda_.3} parent=11 // pred_check_branch
          %301 = sbr.rel (%p299) target = $region48
        $region47: #{_lambda_.3} parent=11 // pred_region
          _
        $region48: #{_lambda_.3} parent=11 // pred_fallthru
          _
      $region12: #{_lambda_.3} parent=5 // pred_fallthru
        _
      %p302 = scmp.lt.s32.totalorder %s19, 2
      // Predicated region
      $region49: #{_lambda_.3} parent=5 // pred_check
        %p303 = pneg %p302
      $region50: #{_lambda_.3} parent=5 // pred_check_branch
        %305 = sbr.rel (%p303) target = $region52
      $region51: #{_lambda_.3} parent=5 // pred_region
        // Predicated region
        $region53: #{_lambda_.3} parent=51 // pred_check
          %p306 = pneg %p39
        $region54: #{_lambda_.3} parent=51 // pred_check_branch
          %308 = sbr.rel (%p306) target = $region56
        $region55: #{_lambda_.3} parent=51 // pred_region
          %s309 = smul.u32 2, %s19
          %p310 = scmp.lt.s32.totalorder %s309, 3
          %s311 = scalar_select %p310, %s309, 3
          %s312 = smul.addr %s311, 16
          %s313 = smul.addr %s312, 8
          %s314 = scalar_lea.vmem %s0, %s313
          %s315 = smul.u32 2, %s19
        $region56: #{_lambda_.3} parent=51 // pred_fallthru
          _
      $region52: #{_lambda_.3} parent=5 // pred_fallthru
        _
      %p316 = scmp.le.s32.totalorder 1, %s19
      %p317 = scmp.lt.s32.totalorder %s19, 3
      %p318 = pnand %p316, %p317
      %p319 = pneg %p318
      // Predicated region
      $region57: #{_lambda_.3} parent=5 // pred_check
        _
      $region58: #{_lambda_.3} parent=5 // pred_check_branch
        %321 = sbr.rel (%p318) target = $region60
      $region59: #{_lambda_.3} parent=5 // pred_region
        %s322 = ssub.s32 %s19, 1
        %s323 = smul.u32 2, %s24
        %p324 = scmp.lt.s32.totalorder %s323, 3
        %s325 = scalar_select %p324, %s323, 3
        %s326 = smul.addr %s325, 16
        %s327 = smul.addr %s326, 8
        %s328 = scalar_lea.vmem %s0, %s327
        %p329 = pneg %p45
        %p330 = pneg %p42
        %p331 = pneg %p66
        %p332 = pneg %p63
        %p333 = pneg %p87
        %p334 = pneg %p84
        %p335 = pneg %p108
        %p336 = pneg %p105
        %p337 = pneg %p129
        %p338 = pneg %p126
        %p339 = pneg %p150
        %p340 = pneg %p147
        %p341 = pneg %p171
        %p342 = pneg %p168
        %p343 = pneg %p192
        %p344 = pneg %p189
        %p345 = pneg %p213
        %p346 = pneg %p210
        %p347 = pneg %p234
        %p348 = pneg %p231
        %p349 = pneg %p260
        %p350 = pneg %p257
        %s351 = sand.u32 %s247, 1
        %s352 = scalar_lea.sflag [#allocation4], %s351
        %s353 = sand.u32 %s247, 1
        %s354 = smul.addr %s353, 256
        %s355 = scalar_lea.vmem [#allocation3], %s354
        %s356 = smul.u32 2, %s24
        %p357 = scmp.lt.s32.totalorder %s356, 3
        %s358 = scalar_select %p357, %s356, 3
        %s359 = smul.addr %s358, 16
        %s360 = smul.addr %s359, 8
        %s361 = scalar_lea.vmem %s0, %s360
        %s362 = smul.u32 2, %s24
        %s363 = smul.u32 2, %s24
        %vm365 = vcmask 483328
        %366 = vst.msk [vmem:[#allocation2] sm:$0x1] %vm365, 0.0
        %367 = vst.msk [vmem:[#allocation2 + $0x10] sm:$0x1] %vm365, 0.0
        %368 = vst.msk [vmem:[#allocation2 + $0x20] sm:$0x1] %vm365, 0.0
        %369 = vst.msk [vmem:[#allocation2 + $0x30] sm:$0x1] %vm365, 0.0
        %370 = vst.msk [vmem:[#allocation2 + $0x40] sm:$0x1] %vm365, 0.0
        %371 = vst.msk [vmem:[#allocation2 + $0x50] sm:$0x1] %vm365, 0.0
        %372 = vst.msk [vmem:[#allocation2 + $0x60] sm:$0x1] %vm365, 0.0
        %373 = vst.msk [vmem:[#allocation2 + $0x70] sm:$0x1] %vm365, 0.0
        %374 = vst.msk [vmem:[#allocation2 + $0x80] sm:$0x1] %vm365, 0.0
        %375 = vst.msk [vmem:[#allocation2 + $0x90] sm:$0x1] %vm365, 0.0
        %376 = vst.msk [vmem:[#allocation2 + $0xa0] sm:$0x1] %vm365, 0.0
        %377 = vst.msk [vmem:[#allocation2 + $0xb0] sm:$0x1] %vm365, 0.0
        %378 = vst.msk [vmem:[#allocation2 + $0xc0] sm:$0x1] %vm365, 0.0
        %379 = vst.msk [vmem:[#allocation2 + $0xd0] sm:$0x1] %vm365, 0.0
        %380 = vst.msk [vmem:[#allocation2 + $0xe0] sm:$0x1] %vm365, 0.0
        %381 = vst.msk [vmem:[#allocation2 + $0xf0] sm:$0x1] %vm365, 0.0
        %382 = vst.msk [vmem:[#allocation2 + $0x100] sm:$0x1] %vm365, 0.0
        %383 = vst.msk [vmem:[#allocation2 + $0x110] sm:$0x1] %vm365, 0.0
        %384 = vst.msk [vmem:[#allocation2 + $0x120] sm:$0x1] %vm365, 0.0
        %385 = vst.msk [vmem:[#allocation2 + $0x130] sm:$0x1] %vm365, 0.0
        %vm386 = vcmask 490496
        %387 = vst.msk [vmem:[#allocation2] sm:$0xff] %vm386, 0.0
        %vm388 = vcmask 484352
        %389 = vst.msk [vmem:[#allocation2 + $0x8] sm:$0x3] %vm388, 0.0
        %390 = vst.msk [vmem:[#allocation2 + $0xa0] sm:$0xff] %vm386, 0.0
        %391 = vst.msk [vmem:[#allocation2 + $0xa8] sm:$0x3] %vm388, 0.0
        %s392 = scalar_lea.vmem [#allocation2], 144
        %393 = vst.msk [vmem:[%s392] sm:$0xff] %vm386, 0.0
        %394 = vst.msk [vmem:[%s392 + $0x8] sm:$0x3] %vm388, 0.0
        %395 = vst.msk [vmem:[%s392 + $0xa0] sm:$0xff] %vm386, 0.0
        %396 = vst.msk [vmem:[%s392 + $0xa8] sm:$0x3] %vm388, 0.0
        %397 = vst.msk [vmem:[#allocation2 + $0x9] sm:$0x1] %vm365, 0.0
        %398 = vst.msk [vmem:[#allocation2 + $0x19] sm:$0x1] %vm365, 0.0
        %399 = vst.msk [vmem:[#allocation2 + $0x29] sm:$0x1] %vm365, 0.0
        %400 = vst.msk [vmem:[#allocation2 + $0x39] sm:$0x1] %vm365, 0.0
        %401 = vst.msk [vmem:[#allocation2 + $0x49] sm:$0x1] %vm365, 0.0
        %402 = vst.msk [vmem:[#allocation2 + $0x59] sm:$0x1] %vm365, 0.0
        %403 = vst.msk [vmem:[#allocation2 + $0x69] sm:$0x1] %vm365, 0.0
        %404 = vst.msk [vmem:[#allocation2 + $0x79] sm:$0x1] %vm365, 0.0
        %405 = vst.msk [vmem:[#allocation2 + $0x89] sm:$0x1] %vm365, 0.0
        %406 = vst.msk [vmem:[#allocation2 + $0x99] sm:$0x1] %vm365, 0.0
        %407 = vst.msk [vmem:[#allocation2 + $0xa9] sm:$0x1] %vm365, 0.0
        %408 = vst.msk [vmem:[#allocation2 + $0xb9] sm:$0x1] %vm365, 0.0
        %409 = vst.msk [vmem:[#allocation2 + $0xc9] sm:$0x1] %vm365, 0.0
        %410 = vst.msk [vmem:[#allocation2 + $0xd9] sm:$0x1] %vm365, 0.0
        %411 = vst.msk [vmem:[#allocation2 + $0xe9] sm:$0x1] %vm365, 0.0
        %412 = vst.msk [vmem:[#allocation2 + $0xf9] sm:$0x1] %vm365, 0.0
        %413 = vst.msk [vmem:[#allocation2 + $0x109] sm:$0x1] %vm365, 0.0
        %414 = vst.msk [vmem:[#allocation2 + $0x119] sm:$0x1] %vm365, 0.0
        %415 = vst.msk [vmem:[#allocation2 + $0x129] sm:$0x1] %vm365, 0.0
        %416 = vst.msk [vmem:[#allocation2 + $0x139] sm:$0x1] %vm365, 0.0
        %v417 = vld [vmem:[%s1] sm:$0xf]
        %v418 = vld [vmem:[%s1 + $0x4] sm:$0xf]
        %v419 = vld [vmem:[%s1 + $0x8] sm:$0xf]
        %v420 = vld [vmem:[%s1 + $0xc] sm:$0xf]
        %v421 = vld [vmem:[%s1 + $0x10] sm:$0xf]
        %v422 = vld [vmem:[%s1 + $0x14] sm:$0xf]
        %v423 = vld [vmem:[%s1 + $0x18] sm:$0xf]
        %v424 = vld [vmem:[%s1 + $0x1c] sm:$0xf]
        %v425 = vld [vmem:[%s1 + $0x20] sm:$0xf]
        %v426 = vld [vmem:[%s1 + $0x24] sm:$0xf]
        %v427 = vld [vmem:[%s1 + $0x28] sm:$0xf]
        %v428 = vld [vmem:[%s1 + $0x2c] sm:$0xf]
        %v429 = vld [vmem:[%s1 + $0x30] sm:$0xf]
        %v430 = vld [vmem:[%s1 + $0x34] sm:$0xf]
        %v431 = vld [vmem:[%s1 + $0x38] sm:$0xf]
        %v432 = vld [vmem:[%s1 + $0x3c] sm:$0xf]
        %v433 = vld [vmem:[%s1 + $0x40] sm:$0xf]
        %v434 = vld [vmem:[%s1 + $0x44] sm:$0xf]
        %v435 = vld [vmem:[%s1 + $0x48] sm:$0xf]
        %v436 = vld [vmem:[%s1 + $0x4c] sm:$0xf]
        %v437 = vld [vmem:[%s1 + $0x50] sm:$0xf]
        %v438 = vld [vmem:[%s1 + $0x54] sm:$0xf]
        %v439 = vld [vmem:[%s1 + $0x58] sm:$0xf]
        %v440 = vld [vmem:[%s1 + $0x5c] sm:$0xf]
        %v441 = vld [vmem:[%s1 + $0x60] sm:$0xf]
        %v442 = vld [vmem:[%s1 + $0x64] sm:$0xf]
        %v443 = vld [vmem:[%s1 + $0x68] sm:$0xf]
        %v444 = vld [vmem:[%s1 + $0x6c] sm:$0xf]
        %v445 = vld [vmem:[%s1 + $0x70] sm:$0xf]
        %v446 = vld [vmem:[%s1 + $0x74] sm:$0xf]
        %v447 = vld [vmem:[%s1 + $0x78] sm:$0xf]
        %v448 = vld [vmem:[%s1 + $0x7c] sm:$0xf]
        %v449 = vld [vmem:[%s2] sm:$0x1]
        %v450 = vld [vmem:[%s3] sm:$0x1]
        %v451 = vld [vmem:[%s361] sm:$0xff]
        %v452 = vld [vmem:[%s361 + $0x8] sm:$0xff]
        %v453 = vld [vmem:[%s361 + $0x10] sm:$0xff]
        %v454 = vld [vmem:[%s361 + $0x18] sm:$0xff]
        %v455 = vld [vmem:[%s361 + $0x20] sm:$0xff]
        %v456 = vld [vmem:[%s361 + $0x28] sm:$0xff]
        %v457 = vld [vmem:[%s361 + $0x30] sm:$0xff]
        %v458 = vld [vmem:[%s361 + $0x38] sm:$0xff]
        %v459 = vld [vmem:[%s361 + $0x40] sm:$0xff]
        %v460 = vld [vmem:[%s361 + $0x48] sm:$0xff]
        %v461 = vld [vmem:[%s361 + $0x50] sm:$0xff]
        %v462 = vld [vmem:[%s361 + $0x58] sm:$0xff]
        %v463 = vld [vmem:[%s361 + $0x60] sm:$0xff]
        %v464 = vld [vmem:[%s361 + $0x68] sm:$0xff]
        %v465 = vld [vmem:[%s361 + $0x70] sm:$0xff]
        %v466 = vld [vmem:[%s361 + $0x78] sm:$0xff]
        %v467 = vld [vmem:[%s361 + $0x80] sm:$0xff]
        %v468 = vld [vmem:[%s361 + $0x88] sm:$0xff]
        %v469 = vld [vmem:[%s361 + $0x90] sm:$0xff]
        %v470 = vld [vmem:[%s361 + $0x98] sm:$0xff]
        %v471 = vld [vmem:[%s361 + $0xa0] sm:$0xff]
        %v472 = vld [vmem:[%s361 + $0xa8] sm:$0xff]
        %v473 = vld [vmem:[%s361 + $0xb0] sm:$0xff]
        %v474 = vld [vmem:[%s361 + $0xb8] sm:$0xff]
        %v475 = vld [vmem:[%s361 + $0xc0] sm:$0xff]
        %v476 = vld [vmem:[%s361 + $0xc8] sm:$0xff]
        %v477 = vld [vmem:[%s361 + $0xd0] sm:$0xff]
        %v478 = vld [vmem:[%s361 + $0xd8] sm:$0xff]
        %v479 = vld [vmem:[%s361 + $0xe0] sm:$0xff]
        %v480 = vld [vmem:[%s361 + $0xe8] sm:$0xff]
        %v481 = vld [vmem:[%s361 + $0xf0] sm:$0xff]
        %v482 = vld [vmem:[%s361 + $0xf8] sm:$0xff]
        %v483 = vpack.c.bf16 %v453, %v451
        %v484 = vpack.c.bf16 %v454, %v452
        %v485 = vpack.c.bf16 %v457, %v455
        %v486 = vpack.c.bf16 %v458, %v456
        %v487 = vpack.c.bf16 %v461, %v459
        %v488 = vpack.c.bf16 %v462, %v460
        %v489 = vpack.c.bf16 %v465, %v463
        %v490 = vpack.c.bf16 %v466, %v464
        %v491 = vpack.c.bf16 %v469, %v467
        %v492 = vpack.c.bf16 %v470, %v468
        %v493 = vpack.c.bf16 %v473, %v471
        %v494 = vpack.c.bf16 %v474, %v472
        %v495 = vpack.c.bf16 %v477, %v475
        %v496 = vpack.c.bf16 %v478, %v476
        %v497 = vpack.c.bf16 %v481, %v479
        %v498 = vpack.c.bf16 %v482, %v480
        %v531 = vunpack.c.l.b16 %v417
        %v532 = vunpack.c.l.b16 %v418
        %v533 = vunpack.c.l.b16 %v419
        %v534 = vunpack.c.l.b16 %v420
        %v535 = vunpack.c.l.b16 %v421
        %v536 = vunpack.c.l.b16 %v422
        %v537 = vunpack.c.l.b16 %v423
        %v538 = vunpack.c.l.b16 %v424
        %v539 = vunpack.c.l.b16 %v425
        %v540 = vunpack.c.l.b16 %v426
        %v541 = vunpack.c.l.b16 %v427
        %v542 = vunpack.c.l.b16 %v428
        %v543 = vunpack.c.l.b16 %v429
        %v544 = vunpack.c.l.b16 %v430
        %v545 = vunpack.c.l.b16 %v431
        %v546 = vunpack.c.l.b16 %v432
        %v547 = vunpack.c.l.b16 %v433
        %v548 = vunpack.c.l.b16 %v434
        %v549 = vunpack.c.l.b16 %v435
        %v550 = vunpack.c.l.b16 %v436
        %v551 = vunpack.c.l.b16 %v437
        %v552 = vunpack.c.l.b16 %v438
        %v553 = vunpack.c.l.b16 %v439
        %v554 = vunpack.c.l.b16 %v440
        %v555 = vunpack.c.l.b16 %v441
        %v556 = vunpack.c.l.b16 %v442
        %v557 = vunpack.c.l.b16 %v443
        %v558 = vunpack.c.l.b16 %v444
        %v559 = vunpack.c.l.b16 %v445
        %v560 = vunpack.c.l.b16 %v446
        %v561 = vunpack.c.l.b16 %v447
        %v562 = vunpack.c.l.b16 %v448
        %v563 = vpack.c.b16 %v532, %v531
        %v564 = vpack.c.b16 %v534, %v533
        %v565 = vpack.c.b16 %v536, %v535
        %v566 = vpack.c.b16 %v538, %v537
        %v567 = vpack.c.b16 %v540, %v539
        %v568 = vpack.c.b16 %v542, %v541
        %v569 = vpack.c.b16 %v544, %v543
        %v570 = vpack.c.b16 %v546, %v545
        %v571 = vpack.c.b16 %v548, %v547
        %v572 = vpack.c.b16 %v550, %v549
        %v573 = vpack.c.b16 %v552, %v551
        %v574 = vpack.c.b16 %v554, %v553
        %v575 = vpack.c.b16 %v556, %v555
        %v576 = vpack.c.b16 %v558, %v557
        %v577 = vpack.c.b16 %v560, %v559
        %v578 = vpack.c.b16 %v562, %v561
        %595 = vmatprep.subr.bf16.mxu0 0
        %596 = vmatpush1.bf16.msra.mxu0 %v570
        %597 = vmatprep.subr.bf16.mxu0 0
        %598 = vmatpush1.bf16.msra.mxu0 %v569
        %599 = vmatprep.subr.bf16.mxu0 0
        %600 = vmatpush1.bf16.msra.mxu0 %v568
        %601 = vmatprep.subr.bf16.mxu0 0
        %602 = vmatpush1.bf16.msra.mxu0 %v567
        %603 = vmatprep.subr.bf16.mxu0 0
        %604 = vmatpush1.bf16.msra.mxu0 %v566
        %605 = vmatprep.subr.bf16.mxu0 0
        %606 = vmatpush1.bf16.msra.mxu0 %v565
        %607 = vmatprep.subr.bf16.mxu0 0
        %608 = vmatpush1.bf16.msra.mxu0 %v564
        %609 = vmatprep.subr.bf16.mxu0 0
        %610 = vmatpush1.bf16.msra.mxu0 %v563
        %611 = vmatprep.subr.bf16.mxu0 0
        %612 = vmatpush2.bf16.msra.mxu0 %v578
        %613 = vmatprep.subr.bf16.mxu0 0
        %614 = vmatpush2.bf16.msra.mxu0 %v577
        %615 = vmatprep.subr.bf16.mxu0 0
        %616 = vmatpush2.bf16.msra.mxu0 %v576
        %617 = vmatprep.subr.bf16.mxu0 0
        %618 = vmatpush2.bf16.msra.mxu0 %v575
        %619 = vmatprep.subr.bf16.mxu0 0
        %620 = vmatpush2.bf16.msra.mxu0 %v574
        %621 = vmatprep.subr.bf16.mxu0 0
        %622 = vmatpush2.bf16.msra.mxu0 %v573
        %623 = vmatprep.subr.bf16.mxu0 0
        %624 = vmatpush2.bf16.msra.mxu0 %v572
        %625 = vmatprep.subr.bf16.mxu0 0
        %626 = vmatpush2.bf16.msra.mxu0 %v571
        %627 = vmatprep.mubr.bf16.mxu0 %v484
        %628 = vmatmul.mubr.bf16.gmra.mxu0 %v483
        %v629 = vpop.f32.mrf.mxu0
        %v630 = vadd.f32 0.0, %v629
        %v631 = vpop.f32.mrf.mxu0
        %v632 = vpop.f32.mrf.mxu0
        %v633 = vadd.f32 0.0, %v632
        %v634 = vpop.f32.mrf.mxu0
        %635 = vmatprep.mubr.bf16.mxu0 %v486
        %636 = vmatmul.mubr.bf16.gmra.mxu0 %v485
        %v637 = vpop.f32.mrf.mxu0
        %v638 = vadd.f32 0.0, %v637
        %v639 = vpop.f32.mrf.mxu0
        %v640 = vpop.f32.mrf.mxu0
        %v641 = vadd.f32 0.0, %v640
        %v642 = vpop.f32.mrf.mxu0
        %643 = vmatprep.mubr.bf16.mxu0 %v488
        %644 = vmatmul.mubr.bf16.gmra.mxu0 %v487
        %v645 = vpop.f32.mrf.mxu0
        %v646 = vadd.f32 0.0, %v645
        %v647 = vpop.f32.mrf.mxu0
        %v648 = vpop.f32.mrf.mxu0
        %v649 = vadd.f32 0.0, %v648
        %v650 = vpop.f32.mrf.mxu0
        %651 = vmatprep.mubr.bf16.mxu0 %v490
        %652 = vmatmul.mubr.bf16.gmra.mxu0 %v489
        %v653 = vpop.f32.mrf.mxu0
        %v654 = vadd.f32 0.0, %v653
        %v655 = vpop.f32.mrf.mxu0
        %v656 = vpop.f32.mrf.mxu0
        %v657 = vadd.f32 0.0, %v656
        %v658 = vpop.f32.mrf.mxu0
        %659 = vmatprep.mubr.bf16.mxu0 %v492
        %660 = vmatmul.mubr.bf16.gmra.mxu0 %v491
        %v661 = vpop.f32.mrf.mxu0
        %v662 = vadd.f32 0.0, %v661
        %v663 = vpop.f32.mrf.mxu0
        %v664 = vpop.f32.mrf.mxu0
        %v665 = vadd.f32 0.0, %v664
        %v666 = vpop.f32.mrf.mxu0
        %667 = vmatprep.mubr.bf16.mxu0 %v494
        %668 = vmatmul.mubr.bf16.gmra.mxu0 %v493
        %v669 = vpop.f32.mrf.mxu0
        %v670 = vadd.f32 0.0, %v669
        %v671 = vpop.f32.mrf.mxu0
        %v672 = vpop.f32.mrf.mxu0
        %v673 = vadd.f32 0.0, %v672
        %v674 = vpop.f32.mrf.mxu0
        %675 = vmatprep.mubr.bf16.mxu0 %v496
        %676 = vmatmul.mubr.bf16.gmra.mxu0 %v495
        %v677 = vpop.f32.mrf.mxu0
        %v678 = vadd.f32 0.0, %v677
        %v679 = vpop.f32.mrf.mxu0
        %v680 = vpop.f32.mrf.mxu0
        %v681 = vadd.f32 0.0, %v680
        %v682 = vpop.f32.mrf.mxu0
        %683 = vmatprep.mubr.bf16.mxu0 %v498
        %684 = vmatmul.mubr.bf16.gmra.mxu0 %v497
        %v685 = vpop.f32.mrf.mxu0
        %v686 = vadd.f32 0.0, %v685
        %v687 = vpop.f32.mrf.mxu0
        %v688 = vpop.f32.mrf.mxu0
        %v689 = vadd.f32 0.0, %v688
        %v690 = vpop.f32.mrf.mxu0
        %691 = vdwg.mxu0
        %v693 = vlaneseq
        %v694 = vshrl.u32 %v693, 7
        %v695 = vsub.s32 0, %v694
        %v696 = vrot.slane %v449, %v695
        %v698 = vmul.f32 %v630, %v696
        %v699 = vmul.f32 %v633, %v696
        %v700 = vmul.f32 %v638, %v696
        %v701 = vmul.f32 %v641, %v696
        %v702 = vmul.f32 %v646, %v696
        %v703 = vmul.f32 %v649, %v696
        %v704 = vmul.f32 %v654, %v696
        %v705 = vmul.f32 %v657, %v696
        %v706 = vmul.f32 %v662, %v696
        %v707 = vmul.f32 %v665, %v696
        %v708 = vmul.f32 %v670, %v696
        %v709 = vmul.f32 %v673, %v696
        %v710 = vmul.f32 %v678, %v696
        %v711 = vmul.f32 %v681, %v696
        %v712 = vmul.f32 %v686, %v696
        %v713 = vmul.f32 %v689, %v696
        %v715 = vlaneseq
        %v716 = vshrl.u32 %v715, 7
        %v717 = vsub.s32 0, %v716
        %v718 = vrot.slane %v450, %v717
        %v720 = vadd.f32 %v698, %v718
        %v721 = vadd.f32 %v699, %v718
        %v722 = vadd.f32 %v700, %v718
        %v723 = vadd.f32 %v701, %v718
        %v724 = vadd.f32 %v702, %v718
        %v725 = vadd.f32 %v703, %v718
        %v726 = vadd.f32 %v704, %v718
        %v727 = vadd.f32 %v705, %v718
        %v728 = vadd.f32 %v706, %v718
        %v729 = vadd.f32 %v707, %v718
        %v730 = vadd.f32 %v708, %v718
        %v731 = vadd.f32 %v709, %v718
        %v732 = vadd.f32 %v710, %v718
        %v733 = vadd.f32 %v711, %v718
        %v734 = vadd.f32 %v712, %v718
        %v735 = vadd.f32 %v713, %v718
        %v736 = vmax.f32 %v720, 0.0
        %v737 = vmax.f32 %v721, 0.0
        %v738 = vmax.f32 %v722, 0.0
        %v739 = vmax.f32 %v723, 0.0
        %v740 = vmax.f32 %v724, 0.0
        %v741 = vmax.f32 %v725, 0.0
        %v742 = vmax.f32 %v726, 0.0
        %v743 = vmax.f32 %v727, 0.0
        %v744 = vmax.f32 %v728, 0.0
        %v745 = vmax.f32 %v729, 0.0
        %v746 = vmax.f32 %v730, 0.0
        %v747 = vmax.f32 %v731, 0.0
        %v748 = vmax.f32 %v732, 0.0
        %v749 = vmax.f32 %v733, 0.0
        %v750 = vmax.f32 %v734, 0.0
        %v751 = vmax.f32 %v735, 0.0
        %s752 = scalar_lea.vmem [#allocation2], 16
        %753 = vst.msk [vmem:[%s752 + $0x1] sm:$0xff] %vm386, %v736
        %754 = vst.msk [vmem:[%s752 + $0x11] sm:$0xff] %vm386, %v737
        %755 = vst.msk [vmem:[%s752 + $0x21] sm:$0xff] %vm386, %v738
        %756 = vst.msk [vmem:[%s752 + $0x31] sm:$0xff] %vm386, %v739
        %757 = vst.msk [vmem:[%s752 + $0x41] sm:$0xff] %vm386, %v740
        %758 = vst.msk [vmem:[%s752 + $0x51] sm:$0xff] %vm386, %v741
        %759 = vst.msk [vmem:[%s752 + $0x61] sm:$0xff] %vm386, %v742
        %760 = vst.msk [vmem:[%s752 + $0x71] sm:$0xff] %vm386, %v743
        %761 = vst.msk [vmem:[%s752 + $0xa1] sm:$0xff] %vm386, %v744
        %762 = vst.msk [vmem:[%s752 + $0xb1] sm:$0xff] %vm386, %v745
        %763 = vst.msk [vmem:[%s752 + $0xc1] sm:$0xff] %vm386, %v746
        %764 = vst.msk [vmem:[%s752 + $0xd1] sm:$0xff] %vm386, %v747
        %765 = vst.msk [vmem:[%s752 + $0xe1] sm:$0xff] %vm386, %v748
        %766 = vst.msk [vmem:[%s752 + $0xf1] sm:$0xff] %vm386, %v749
        %767 = vst.msk [vmem:[%s752 + $0x101] sm:$0xff] %vm386, %v750
        %768 = vst.msk [vmem:[%s752 + $0x111] sm:$0xff] %vm386, %v751
        %v769 = vld [vmem:[%s4] sm:$0xff]
        %v770 = vld [vmem:[%s4 + $0x8] sm:$0x1]
        %v771 = vld [vmem:[#allocation2] sm:$0xff]
        %v772 = vld [vmem:[#allocation2 + $0x10] sm:$0xff]
        %v773 = vld [vmem:[#allocation2 + $0x20] sm:$0xff]
        %v774 = vld [vmem:[#allocation2 + $0x30] sm:$0xff]
        %v775 = vld [vmem:[#allocation2 + $0x40] sm:$0xff]
        %v776 = vld [vmem:[#allocation2 + $0x50] sm:$0xff]
        %v777 = vld [vmem:[#allocation2 + $0x60] sm:$0xff]
        %v778 = vld [vmem:[#allocation2 + $0x70] sm:$0xff]
        %v779 = vld [vmem:[#allocation2 + $0xa0] sm:$0xff]
        %v780 = vld [vmem:[#allocation2 + $0xb0] sm:$0xff]
        %v781 = vld [vmem:[#allocation2 + $0xc0] sm:$0xff]
        %v782 = vld [vmem:[#allocation2 + $0xd0] sm:$0xff]
        %v783 = vld [vmem:[#allocation2 + $0xe0] sm:$0xff]
        %v784 = vld [vmem:[#allocation2 + $0xf0] sm:$0xff]
        %v785 = vld [vmem:[#allocation2 + $0x100] sm:$0xff]
        %v786 = vld [vmem:[#allocation2 + $0x110] sm:$0xff]
        %v787 = vlaneseq
        %v788 = vshrl.u32 %v787, 7
        %v789 = vsub.s32 0, %v788
        %v790 = vrot.slane %v769, %v789
        %v791 = vmul.f32 %v771, %v790
        %v792 = vmul.f32 %v772, %v790
        %v793 = vmul.f32 %v773, %v790
        %v794 = vmul.f32 %v774, %v790
        %v795 = vmul.f32 %v775, %v790
        %v796 = vmul.f32 %v776, %v790
        %v797 = vmul.f32 %v777, %v790
        %v798 = vmul.f32 %v778, %v790
        %v799 = vmul.f32 %v779, %v790
        %v800 = vmul.f32 %v780, %v790
        %v801 = vmul.f32 %v781, %v790
        %v802 = vmul.f32 %v782, %v790
        %v803 = vmul.f32 %v783, %v790
        %v804 = vmul.f32 %v784, %v790
        %v805 = vmul.f32 %v785, %v790
        %v806 = vmul.f32 %v786, %v790
        %v807 = vadd.f32 %v791, 0.0
        %v808 = vadd.f32 %v792, 0.0
        %v809 = vadd.f32 %v793, 0.0
        %v810 = vadd.f32 %v794, 0.0
        %v811 = vadd.f32 %v795, 0.0
        %v812 = vadd.f32 %v796, 0.0
        %v813 = vadd.f32 %v797, 0.0
        %v814 = vadd.f32 %v798, 0.0
        %v815 = vadd.f32 %v799, 0.0
        %v816 = vadd.f32 %v800, 0.0
        %v817 = vadd.f32 %v801, 0.0
        %v818 = vadd.f32 %v802, 0.0
        %v819 = vadd.f32 %v803, 0.0
        %v820 = vadd.f32 %v804, 0.0
        %v821 = vadd.f32 %v805, 0.0
        %v822 = vadd.f32 %v806, 0.0
        %v823 = vld [vmem:[#allocation2 + $0x1] sm:$0xff]
        %v824 = vld [vmem:[#allocation2 + $0x11] sm:$0xff]
        %v825 = vld [vmem:[#allocation2 + $0x21] sm:$0xff]
        %v826 = vld [vmem:[#allocation2 + $0x31] sm:$0xff]
        %v827 = vld [vmem:[#allocation2 + $0x41] sm:$0xff]
        %v828 = vld [vmem:[#allocation2 + $0x51] sm:$0xff]
        %v829 = vld [vmem:[#allocation2 + $0x61] sm:$0xff]
        %v830 = vld [vmem:[#allocation2 + $0x71] sm:$0xff]
        %v831 = vld [vmem:[#allocation2 + $0xa1] sm:$0xff]
        %v832 = vld [vmem:[#allocation2 + $0xb1] sm:$0xff]
        %v833 = vld [vmem:[#allocation2 + $0xc1] sm:$0xff]
        %v834 = vld [vmem:[#allocation2 + $0xd1] sm:$0xff]
        %v835 = vld [vmem:[#allocation2 + $0xe1] sm:$0xff]
        %v836 = vld [vmem:[#allocation2 + $0xf1] sm:$0xff]
        %v837 = vld [vmem:[#allocation2 + $0x101] sm:$0xff]
        %v838 = vld [vmem:[#allocation2 + $0x111] sm:$0xff]
        %v839 = vlaneseq
        %v840 = vshrl.u32 %v839, 7
        %v841 = vsub.s32 1, %v840
        %v842 = vrot.slane %v769, %v841
        %v843 = vmul.f32 %v823, %v842
        %v844 = vmul.f32 %v824, %v842
        %v845 = vmul.f32 %v825, %v842
        %v846 = vmul.f32 %v826, %v842
        %v847 = vmul.f32 %v827, %v842
        %v848 = vmul.f32 %v828, %v842
        %v849 = vmul.f32 %v829, %v842
        %v850 = vmul.f32 %v830, %v842
        %v851 = vmul.f32 %v831, %v842
        %v852 = vmul.f32 %v832, %v842
        %v853 = vmul.f32 %v833, %v842
        %v854 = vmul.f32 %v834, %v842
        %v855 = vmul.f32 %v835, %v842
        %v856 = vmul.f32 %v836, %v842
        %v857 = vmul.f32 %v837, %v842
        %v858 = vmul.f32 %v838, %v842
        %v859 = vadd.f32 %v807, %v843
        %v860 = vadd.f32 %v808, %v844
        %v861 = vadd.f32 %v809, %v845
        %v862 = vadd.f32 %v810, %v846
        %v863 = vadd.f32 %v811, %v847
        %v864 = vadd.f32 %v812, %v848
        %v865 = vadd.f32 %v813, %v849
        %v866 = vadd.f32 %v814, %v850
        %v867 = vadd.f32 %v815, %v851
        %v868 = vadd.f32 %v816, %v852
        %v869 = vadd.f32 %v817, %v853
        %v870 = vadd.f32 %v818, %v854
        %v871 = vadd.f32 %v819, %v855
        %v872 = vadd.f32 %v820, %v856
        %v873 = vadd.f32 %v821, %v857
        %v874 = vadd.f32 %v822, %v858
        %v875 = vld [vmem:[#allocation2 + $0x2] sm:$0xff]
        %v876 = vld [vmem:[#allocation2 + $0x12] sm:$0xff]
        %v877 = vld [vmem:[#allocation2 + $0x22] sm:$0xff]
        %v878 = vld [vmem:[#allocation2 + $0x32] sm:$0xff]
        %v879 = vld [vmem:[#allocation2 + $0x42] sm:$0xff]
        %v880 = vld [vmem:[#allocation2 + $0x52] sm:$0xff]
        %v881 = vld [vmem:[#allocation2 + $0x62] sm:$0xff]
        %v882 = vld [vmem:[#allocation2 + $0x72] sm:$0xff]
        %v883 = vld [vmem:[#allocation2 + $0xa2] sm:$0xff]
        %v884 = vld [vmem:[#allocation2 + $0xb2] sm:$0xff]
        %v885 = vld [vmem:[#allocation2 + $0xc2] sm:$0xff]
        %v886 = vld [vmem:[#allocation2 + $0xd2] sm:$0xff]
        %v887 = vld [vmem:[#allocation2 + $0xe2] sm:$0xff]
        %v888 = vld [vmem:[#allocation2 + $0xf2] sm:$0xff]
        %v889 = vld [vmem:[#allocation2 + $0x102] sm:$0xff]
        %v890 = vld [vmem:[#allocation2 + $0x112] sm:$0xff]
        %v891 = vlaneseq
        %v892 = vshrl.u32 %v891, 7
        %v893 = vsub.s32 2, %v892
        %v894 = vrot.slane %v769, %v893
        %v895 = vmul.f32 %v875, %v894
        %v896 = vmul.f32 %v876, %v894
        %v897 = vmul.f32 %v877, %v894
        %v898 = vmul.f32 %v878, %v894
        %v899 = vmul.f32 %v879, %v894
        %v900 = vmul.f32 %v880, %v894
        %v901 = vmul.f32 %v881, %v894
        %v902 = vmul.f32 %v882, %v894
        %v903 = vmul.f32 %v883, %v894
        %v904 = vmul.f32 %v884, %v894
        %v905 = vmul.f32 %v885, %v894
        %v906 = vmul.f32 %v886, %v894
        %v907 = vmul.f32 %v887, %v894
        %v908 = vmul.f32 %v888, %v894
        %v909 = vmul.f32 %v889, %v894
        %v910 = vmul.f32 %v890, %v894
        %v911 = vadd.f32 %v859, %v895
        %v912 = vadd.f32 %v860, %v896
        %v913 = vadd.f32 %v861, %v897
        %v914 = vadd.f32 %v862, %v898
        %v915 = vadd.f32 %v863, %v899
        %v916 = vadd.f32 %v864, %v900
        %v917 = vadd.f32 %v865, %v901
        %v918 = vadd.f32 %v866, %v902
        %v919 = vadd.f32 %v867, %v903
        %v920 = vadd.f32 %v868, %v904
        %v921 = vadd.f32 %v869, %v905
        %v922 = vadd.f32 %v870, %v906
        %v923 = vadd.f32 %v871, %v907
        %v924 = vadd.f32 %v872, %v908
        %v925 = vadd.f32 %v873, %v909
        %v926 = vadd.f32 %v874, %v910
        %v927 = vld [vmem:[%s752] sm:$0xff]
        %v928 = vld [vmem:[%s752 + $0x10] sm:$0xff]
        %v929 = vld [vmem:[%s752 + $0x20] sm:$0xff]
        %v930 = vld [vmem:[%s752 + $0x30] sm:$0xff]
        %v931 = vld [vmem:[%s752 + $0x40] sm:$0xff]
        %v932 = vld [vmem:[%s752 + $0x50] sm:$0xff]
        %v933 = vld [vmem:[%s752 + $0x60] sm:$0xff]
        %v934 = vld [vmem:[%s752 + $0x70] sm:$0xff]
        %v935 = vld [vmem:[%s752 + $0xa0] sm:$0xff]
        %v936 = vld [vmem:[%s752 + $0xb0] sm:$0xff]
        %v937 = vld [vmem:[%s752 + $0xc0] sm:$0xff]
        %v938 = vld [vmem:[%s752 + $0xd0] sm:$0xff]
        %v939 = vld [vmem:[%s752 + $0xe0] sm:$0xff]
        %v940 = vld [vmem:[%s752 + $0xf0] sm:$0xff]
        %v941 = vld [vmem:[%s752 + $0x100] sm:$0xff]
        %v942 = vld [vmem:[%s752 + $0x110] sm:$0xff]
        %v943 = vlaneseq
        %v944 = vshrl.u32 %v943, 7
        %v945 = vsub.s32 3, %v944
        %v946 = vrot.slane %v769, %v945
        %v947 = vmul.f32 %v927, %v946
        %v948 = vmul.f32 %v928, %v946
        %v949 = vmul.f32 %v929, %v946
        %v950 = vmul.f32 %v930, %v946
        %v951 = vmul.f32 %v931, %v946
        %v952 = vmul.f32 %v932, %v946
        %v953 = vmul.f32 %v933, %v946
        %v954 = vmul.f32 %v934, %v946
        %v955 = vmul.f32 %v935, %v946
        %v956 = vmul.f32 %v936, %v946
        %v957 = vmul.f32 %v937, %v946
        %v958 = vmul.f32 %v938, %v946
        %v959 = vmul.f32 %v939, %v946
        %v960 = vmul.f32 %v940, %v946
        %v961 = vmul.f32 %v941, %v946
        %v962 = vmul.f32 %v942, %v946
        %v963 = vadd.f32 %v911, %v947
        %v964 = vadd.f32 %v912, %v948
        %v965 = vadd.f32 %v913, %v949
        %v966 = vadd.f32 %v914, %v950
        %v967 = vadd.f32 %v915, %v951
        %v968 = vadd.f32 %v916, %v952
        %v969 = vadd.f32 %v917, %v953
        %v970 = vadd.f32 %v918, %v954
        %v971 = vadd.f32 %v919, %v955
        %v972 = vadd.f32 %v920, %v956
        %v973 = vadd.f32 %v921, %v957
        %v974 = vadd.f32 %v922, %v958
        %v975 = vadd.f32 %v923, %v959
        %v976 = vadd.f32 %v924, %v960
        %v977 = vadd.f32 %v925, %v961
        %v978 = vadd.f32 %v926, %v962
        %v979 = vld [vmem:[%s752 + $0x1] sm:$0xff]
        %v980 = vld [vmem:[%s752 + $0x11] sm:$0xff]
        %v981 = vld [vmem:[%s752 + $0x21] sm:$0xff]
        %v982 = vld [vmem:[%s752 + $0x31] sm:$0xff]
        %v983 = vld [vmem:[%s752 + $0x41] sm:$0xff]
        %v984 = vld [vmem:[%s752 + $0x51] sm:$0xff]
        %v985 = vld [vmem:[%s752 + $0x61] sm:$0xff]
        %v986 = vld [vmem:[%s752 + $0x71] sm:$0xff]
        %v987 = vld [vmem:[%s752 + $0xa1] sm:$0xff]
        %v988 = vld [vmem:[%s752 + $0xb1] sm:$0xff]
        %v989 = vld [vmem:[%s752 + $0xc1] sm:$0xff]
        %v990 = vld [vmem:[%s752 + $0xd1] sm:$0xff]
        %v991 = vld [vmem:[%s752 + $0xe1] sm:$0xff]
        %v992 = vld [vmem:[%s752 + $0xf1] sm:$0xff]
        %v993 = vld [vmem:[%s752 + $0x101] sm:$0xff]
        %v994 = vld [vmem:[%s752 + $0x111] sm:$0xff]
        %v995 = vlaneseq
        %v996 = vshrl.u32 %v995, 7
        %v997 = vsub.s32 4, %v996
        %v998 = vrot.slane %v769, %v997
        %v999 = vmul.f32 %v979, %v998
        %v1000 = vmul.f32 %v980, %v998
        %v1001 = vmul.f32 %v981, %v998
        %v1002 = vmul.f32 %v982, %v998
        %v1003 = vmul.f32 %v983, %v998
        %v1004 = vmul.f32 %v984, %v998
        %v1005 = vmul.f32 %v985, %v998
        %v1006 = vmul.f32 %v986, %v998
        %v1007 = vmul.f32 %v987, %v998
        %v1008 = vmul.f32 %v988, %v998
        %v1009 = vmul.f32 %v989, %v998
        %v1010 = vmul.f32 %v990, %v998
        %v1011 = vmul.f32 %v991, %v998
        %v1012 = vmul.f32 %v992, %v998
        %v1013 = vmul.f32 %v993, %v998
        %v1014 = vmul.f32 %v994, %v998
        %v1015 = vadd.f32 %v963, %v999
        %v1016 = vadd.f32 %v964, %v1000
        %v1017 = vadd.f32 %v965, %v1001
        %v1018 = vadd.f32 %v966, %v1002
        %v1019 = vadd.f32 %v967, %v1003
        %v1020 = vadd.f32 %v968, %v1004
        %v1021 = vadd.f32 %v969, %v1005
        %v1022 = vadd.f32 %v970, %v1006
        %v1023 = vadd.f32 %v971, %v1007
        %v1024 = vadd.f32 %v972, %v1008
        %v1025 = vadd.f32 %v973, %v1009
        %v1026 = vadd.f32 %v974, %v1010
        %v1027 = vadd.f32 %v975, %v1011
        %v1028 = vadd.f32 %v976, %v1012
        %v1029 = vadd.f32 %v977, %v1013
        %v1030 = vadd.f32 %v978, %v1014
        %v1031 = vld [vmem:[%s752 + $0x2] sm:$0xff]
        %v1032 = vld [vmem:[%s752 + $0x12] sm:$0xff]
        %v1033 = vld [vmem:[%s752 + $0x22] sm:$0xff]
        %v1034 = vld [vmem:[%s752 + $0x32] sm:$0xff]
        %v1035 = vld [vmem:[%s752 + $0x42] sm:$0xff]
        %v1036 = vld [vmem:[%s752 + $0x52] sm:$0xff]
        %v1037 = vld [vmem:[%s752 + $0x62] sm:$0xff]
        %v1038 = vld [vmem:[%s752 + $0x72] sm:$0xff]
        %v1039 = vld [vmem:[%s752 + $0xa2] sm:$0xff]
        %v1040 = vld [vmem:[%s752 + $0xb2] sm:$0xff]
        %v1041 = vld [vmem:[%s752 + $0xc2] sm:$0xff]
        %v1042 = vld [vmem:[%s752 + $0xd2] sm:$0xff]
        %v1043 = vld [vmem:[%s752 + $0xe2] sm:$0xff]
        %v1044 = vld [vmem:[%s752 + $0xf2] sm:$0xff]
        %v1045 = vld [vmem:[%s752 + $0x102] sm:$0xff]
        %v1046 = vld [vmem:[%s752 + $0x112] sm:$0xff]
        %v1047 = vlaneseq
        %v1048 = vshrl.u32 %v1047, 7
        %v1049 = vsub.s32 5, %v1048
        %v1050 = vrot.slane %v769, %v1049
        %v1051 = vmul.f32 %v1031, %v1050
        %v1052 = vmul.f32 %v1032, %v1050
        %v1053 = vmul.f32 %v1033, %v1050
        %v1054 = vmul.f32 %v1034, %v1050
        %v1055 = vmul.f32 %v1035, %v1050
        %v1056 = vmul.f32 %v1036, %v1050
        %v1057 = vmul.f32 %v1037, %v1050
        %v1058 = vmul.f32 %v1038, %v1050
        %v1059 = vmul.f32 %v1039, %v1050
        %v1060 = vmul.f32 %v1040, %v1050
        %v1061 = vmul.f32 %v1041, %v1050
        %v1062 = vmul.f32 %v1042, %v1050
        %v1063 = vmul.f32 %v1043, %v1050
        %v1064 = vmul.f32 %v1044, %v1050
        %v1065 = vmul.f32 %v1045, %v1050
        %v1066 = vmul.f32 %v1046, %v1050
        %v1067 = vadd.f32 %v1015, %v1051
        %v1068 = vadd.f32 %v1016, %v1052
        %v1069 = vadd.f32 %v1017, %v1053
        %v1070 = vadd.f32 %v1018, %v1054
        %v1071 = vadd.f32 %v1019, %v1055
        %v1072 = vadd.f32 %v1020, %v1056
        %v1073 = vadd.f32 %v1021, %v1057
        %v1074 = vadd.f32 %v1022, %v1058
        %v1075 = vadd.f32 %v1023, %v1059
        %v1076 = vadd.f32 %v1024, %v1060
        %v1077 = vadd.f32 %v1025, %v1061
        %v1078 = vadd.f32 %v1026, %v1062
        %v1079 = vadd.f32 %v1027, %v1063
        %v1080 = vadd.f32 %v1028, %v1064
        %v1081 = vadd.f32 %v1029, %v1065
        %v1082 = vadd.f32 %v1030, %v1066
        %s1083 = scalar_lea.vmem [#allocation2], 32
        %v1084 = vld [vmem:[%s1083] sm:$0xff]
        %v1085 = vld [vmem:[%s1083 + $0x10] sm:$0xff]
        %v1086 = vld [vmem:[%s1083 + $0x20] sm:$0xff]
        %v1087 = vld [vmem:[%s1083 + $0x30] sm:$0xff]
        %v1088 = vld [vmem:[%s1083 + $0x40] sm:$0xff]
        %v1089 = vld [vmem:[%s1083 + $0x50] sm:$0xff]
        %v1090 = vld [vmem:[%s1083 + $0x60] sm:$0xff]
        %v1091 = vld [vmem:[%s1083 + $0x70] sm:$0xff]
        %v1092 = vld [vmem:[%s1083 + $0xa0] sm:$0xff]
        %v1093 = vld [vmem:[%s1083 + $0xb0] sm:$0xff]
        %v1094 = vld [vmem:[%s1083 + $0xc0] sm:$0xff]
        %v1095 = vld [vmem:[%s1083 + $0xd0] sm:$0xff]
        %v1096 = vld [vmem:[%s1083 + $0xe0] sm:$0xff]
        %v1097 = vld [vmem:[%s1083 + $0xf0] sm:$0xff]
        %v1098 = vld [vmem:[%s1083 + $0x100] sm:$0xff]
        %v1099 = vld [vmem:[%s1083 + $0x110] sm:$0xff]
        %v1100 = vlaneseq
        %v1101 = vshrl.u32 %v1100, 7
        %v1102 = vsub.s32 6, %v1101
        %v1103 = vrot.slane %v769, %v1102
        %v1104 = vmul.f32 %v1084, %v1103
        %v1105 = vmul.f32 %v1085, %v1103
        %v1106 = vmul.f32 %v1086, %v1103
        %v1107 = vmul.f32 %v1087, %v1103
        %v1108 = vmul.f32 %v1088, %v1103
        %v1109 = vmul.f32 %v1089, %v1103
        %v1110 = vmul.f32 %v1090, %v1103
        %v1111 = vmul.f32 %v1091, %v1103
        %v1112 = vmul.f32 %v1092, %v1103
        %v1113 = vmul.f32 %v1093, %v1103
        %v1114 = vmul.f32 %v1094, %v1103
        %v1115 = vmul.f32 %v1095, %v1103
        %v1116 = vmul.f32 %v1096, %v1103
        %v1117 = vmul.f32 %v1097, %v1103
        %v1118 = vmul.f32 %v1098, %v1103
        %v1119 = vmul.f32 %v1099, %v1103
        %v1120 = vadd.f32 %v1067, %v1104
        %v1121 = vadd.f32 %v1068, %v1105
        %v1122 = vadd.f32 %v1069, %v1106
        %v1123 = vadd.f32 %v1070, %v1107
        %v1124 = vadd.f32 %v1071, %v1108
        %v1125 = vadd.f32 %v1072, %v1109
        %v1126 = vadd.f32 %v1073, %v1110
        %v1127 = vadd.f32 %v1074, %v1111
        %v1128 = vadd.f32 %v1075, %v1112
        %v1129 = vadd.f32 %v1076, %v1113
        %v1130 = vadd.f32 %v1077, %v1114
        %v1131 = vadd.f32 %v1078, %v1115
        %v1132 = vadd.f32 %v1079, %v1116
        %v1133 = vadd.f32 %v1080, %v1117
        %v1134 = vadd.f32 %v1081, %v1118
        %v1135 = vadd.f32 %v1082, %v1119
        %v1136 = vld [vmem:[%s1083 + $0x1] sm:$0xff]
        %v1137 = vld [vmem:[%s1083 + $0x11] sm:$0xff]
        %v1138 = vld [vmem:[%s1083 + $0x21] sm:$0xff]
        %v1139 = vld [vmem:[%s1083 + $0x31] sm:$0xff]
        %v1140 = vld [vmem:[%s1083 + $0x41] sm:$0xff]
        %v1141 = vld [vmem:[%s1083 + $0x51] sm:$0xff]
        %v1142 = vld [vmem:[%s1083 + $0x61] sm:$0xff]
        %v1143 = vld [vmem:[%s1083 + $0x71] sm:$0xff]
        %v1144 = vld [vmem:[%s1083 + $0xa1] sm:$0xff]
        %v1145 = vld [vmem:[%s1083 + $0xb1] sm:$0xff]
        %v1146 = vld [vmem:[%s1083 + $0xc1] sm:$0xff]
        %v1147 = vld [vmem:[%s1083 + $0xd1] sm:$0xff]
        %v1148 = vld [vmem:[%s1083 + $0xe1] sm:$0xff]
        %v1149 = vld [vmem:[%s1083 + $0xf1] sm:$0xff]
        %v1150 = vld [vmem:[%s1083 + $0x101] sm:$0xff]
        %v1151 = vld [vmem:[%s1083 + $0x111] sm:$0xff]
        %v1152 = vlaneseq
        %v1153 = vshrl.u32 %v1152, 7
        %v1154 = vsub.s32 7, %v1153
        %v1155 = vrot.slane %v769, %v1154
        %v1156 = vmul.f32 %v1136, %v1155
        %v1157 = vmul.f32 %v1137, %v1155
        %v1158 = vmul.f32 %v1138, %v1155
        %v1159 = vmul.f32 %v1139, %v1155
        %v1160 = vmul.f32 %v1140, %v1155
        %v1161 = vmul.f32 %v1141, %v1155
        %v1162 = vmul.f32 %v1142, %v1155
        %v1163 = vmul.f32 %v1143, %v1155
        %v1164 = vmul.f32 %v1144, %v1155
        %v1165 = vmul.f32 %v1145, %v1155
        %v1166 = vmul.f32 %v1146, %v1155
        %v1167 = vmul.f32 %v1147, %v1155
        %v1168 = vmul.f32 %v1148, %v1155
        %v1169 = vmul.f32 %v1149, %v1155
        %v1170 = vmul.f32 %v1150, %v1155
        %v1171 = vmul.f32 %v1151, %v1155
        %v1172 = vadd.f32 %v1120, %v1156
        %v1173 = vadd.f32 %v1121, %v1157
        %v1174 = vadd.f32 %v1122, %v1158
        %v1175 = vadd.f32 %v1123, %v1159
        %v1176 = vadd.f32 %v1124, %v1160
        %v1177 = vadd.f32 %v1125, %v1161
        %v1178 = vadd.f32 %v1126, %v1162
        %v1179 = vadd.f32 %v1127, %v1163
        %v1180 = vadd.f32 %v1128, %v1164
        %v1181 = vadd.f32 %v1129, %v1165
        %v1182 = vadd.f32 %v1130, %v1166
        %v1183 = vadd.f32 %v1131, %v1167
        %v1184 = vadd.f32 %v1132, %v1168
        %v1185 = vadd.f32 %v1133, %v1169
        %v1186 = vadd.f32 %v1134, %v1170
        %v1187 = vadd.f32 %v1135, %v1171
        %v1188 = vld [vmem:[%s1083 + $0x2] sm:$0xff]
        %v1189 = vld [vmem:[%s1083 + $0x12] sm:$0xff]
        %v1190 = vld [vmem:[%s1083 + $0x22] sm:$0xff]
        %v1191 = vld [vmem:[%s1083 + $0x32] sm:$0xff]
        %v1192 = vld [vmem:[%s1083 + $0x42] sm:$0xff]
        %v1193 = vld [vmem:[%s1083 + $0x52] sm:$0xff]
        %v1194 = vld [vmem:[%s1083 + $0x62] sm:$0xff]
        %v1195 = vld [vmem:[%s1083 + $0x72] sm:$0xff]
        %v1196 = vld [vmem:[%s1083 + $0xa2] sm:$0xff]
        %v1197 = vld [vmem:[%s1083 + $0xb2] sm:$0xff]
        %v1198 = vld [vmem:[%s1083 + $0xc2] sm:$0xff]
        %v1199 = vld [vmem:[%s1083 + $0xd2] sm:$0xff]
        %v1200 = vld [vmem:[%s1083 + $0xe2] sm:$0xff]
        %v1201 = vld [vmem:[%s1083 + $0xf2] sm:$0xff]
        %v1202 = vld [vmem:[%s1083 + $0x102] sm:$0xff]
        %v1203 = vld [vmem:[%s1083 + $0x112] sm:$0xff]
        %v1204 = vlaneseq
        %v1205 = vshrl.u32 %v1204, 7
        %v1206 = vsub.s32 0, %v1205
        %v1207 = vrot.slane %v770, %v1206
        %v1208 = vmul.f32 %v1188, %v1207
        %v1209 = vmul.f32 %v1189, %v1207
        %v1210 = vmul.f32 %v1190, %v1207
        %v1211 = vmul.f32 %v1191, %v1207
        %v1212 = vmul.f32 %v1192, %v1207
        %v1213 = vmul.f32 %v1193, %v1207
        %v1214 = vmul.f32 %v1194, %v1207
        %v1215 = vmul.f32 %v1195, %v1207
        %v1216 = vmul.f32 %v1196, %v1207
        %v1217 = vmul.f32 %v1197, %v1207
        %v1218 = vmul.f32 %v1198, %v1207
        %v1219 = vmul.f32 %v1199, %v1207
        %v1220 = vmul.f32 %v1200, %v1207
        %v1221 = vmul.f32 %v1201, %v1207
        %v1222 = vmul.f32 %v1202, %v1207
        %v1223 = vmul.f32 %v1203, %v1207
        %v1224 = vadd.f32 %v1172, %v1208
        %v1225 = vadd.f32 %v1173, %v1209
        %v1226 = vadd.f32 %v1174, %v1210
        %v1227 = vadd.f32 %v1175, %v1211
        %v1228 = vadd.f32 %v1176, %v1212
        %v1229 = vadd.f32 %v1177, %v1213
        %v1230 = vadd.f32 %v1178, %v1214
        %v1231 = vadd.f32 %v1179, %v1215
        %v1232 = vadd.f32 %v1180, %v1216
        %v1233 = vadd.f32 %v1181, %v1217
        %v1234 = vadd.f32 %v1182, %v1218
        %v1235 = vadd.f32 %v1183, %v1219
        %v1236 = vadd.f32 %v1184, %v1220
        %v1237 = vadd.f32 %v1185, %v1221
        %v1238 = vadd.f32 %v1186, %v1222
        %v1239 = vadd.f32 %v1187, %v1223
        %v1240 = vld [vmem:[%s5] sm:$0x1]
        %v1242 = vlaneseq
        %v1243 = vshrl.u32 %v1242, 7
        %v1244 = vsub.s32 0, %v1243
        %v1245 = vrot.slane %v1240, %v1244
        %v1247 = vmul.f32 %v1224, %v1245
        %v1248 = vmul.f32 %v1225, %v1245
        %v1249 = vmul.f32 %v1226, %v1245
        %v1250 = vmul.f32 %v1227, %v1245
        %v1251 = vmul.f32 %v1228, %v1245
        %v1252 = vmul.f32 %v1229, %v1245
        %v1253 = vmul.f32 %v1230, %v1245
        %v1254 = vmul.f32 %v1231, %v1245
        %v1255 = vmul.f32 %v1232, %v1245
        %v1256 = vmul.f32 %v1233, %v1245
        %v1257 = vmul.f32 %v1234, %v1245
        %v1258 = vmul.f32 %v1235, %v1245
        %v1259 = vmul.f32 %v1236, %v1245
        %v1260 = vmul.f32 %v1237, %v1245
        %v1261 = vmul.f32 %v1238, %v1245
        %v1262 = vmul.f32 %v1239, %v1245
        %v1263 = vld [vmem:[%s6] sm:$0x1]
        %v1265 = vlaneseq
        %v1266 = vshrl.u32 %v1265, 7
        %v1267 = vsub.s32 0, %v1266
        %v1268 = vrot.slane %v1263, %v1267
        %v1270 = vadd.f32 %v1247, %v1268
        %v1271 = vadd.f32 %v1248, %v1268
        %v1272 = vadd.f32 %v1249, %v1268
        %v1273 = vadd.f32 %v1250, %v1268
        %v1274 = vadd.f32 %v1251, %v1268
        %v1275 = vadd.f32 %v1252, %v1268
        %v1276 = vadd.f32 %v1253, %v1268
        %v1277 = vadd.f32 %v1254, %v1268
        %v1278 = vadd.f32 %v1255, %v1268
        %v1279 = vadd.f32 %v1256, %v1268
        %v1280 = vadd.f32 %v1257, %v1268
        %v1281 = vadd.f32 %v1258, %v1268
        %v1282 = vadd.f32 %v1259, %v1268
        %v1283 = vadd.f32 %v1260, %v1268
        %v1284 = vadd.f32 %v1261, %v1268
        %v1285 = vadd.f32 %v1262, %v1268
        %v1286 = vpack.c.bf16 %v1271, %v1270
        %v1287 = vpack.c.bf16 %v1273, %v1272
        %v1288 = vpack.c.bf16 %v1275, %v1274
        %v1289 = vpack.c.bf16 %v1277, %v1276
        %v1290 = vpack.c.bf16 %v1279, %v1278
        %v1291 = vpack.c.bf16 %v1281, %v1280
        %v1292 = vpack.c.bf16 %v1283, %v1282
        %v1293 = vpack.c.bf16 %v1285, %v1284
        %v1294 = vld [vmem:[%s7] sm:$0xff]
        %v1295 = vld [vmem:[%s7 + $0x8] sm:$0xff]
        %v1296 = vld [vmem:[%s7 + $0x10] sm:$0xff]
        %v1297 = vld [vmem:[%s7 + $0x18] sm:$0xff]
        %v1298 = vld [vmem:[%s7 + $0x20] sm:$0xff]
        %v1299 = vld [vmem:[%s7 + $0x28] sm:$0xff]
        %v1300 = vld [vmem:[%s7 + $0x30] sm:$0xff]
        %v1301 = vld [vmem:[%s7 + $0x38] sm:$0x33]
        %v1310 = vunpack.c.l.b16 %v1294
        %v1311 = vunpack.c.h.b16 %v1294
        %v1312 = vunpack.c.l.b16 %v1295
        %v1313 = vunpack.c.h.b16 %v1295
        %v1314 = vunpack.c.l.b16 %v1296
        %v1315 = vunpack.c.h.b16 %v1296
        %v1316 = vunpack.c.l.b16 %v1297
        %v1317 = vunpack.c.h.b16 %v1297
        %v1318 = vunpack.c.l.b16 %v1298
        %v1319 = vunpack.c.h.b16 %v1298
        %v1320 = vunpack.c.l.b16 %v1299
        %v1321 = vunpack.c.h.b16 %v1299
        %v1322 = vunpack.c.l.b16 %v1300
        %v1323 = vunpack.c.h.b16 %v1300
        %v1324 = vunpack.c.l.b16 %v1301
        %v1325 = vunpack.c.h.b16 %v1301
        %v1326 = vpack.c.b16 %v1312, %v1310
        %v1327 = vpack.c.b16 %v1313, %v1311
        %v1328 = vpack.c.b16 %v1316, %v1314
        %v1329 = vpack.c.b16 %v1317, %v1315
        %v1330 = vpack.c.b16 %v1320, %v1318
        %v1331 = vpack.c.b16 %v1321, %v1319
        %v1332 = vpack.c.b16 %v1324, %v1322
        %v1333 = vpack.c.b16 %v1325, %v1323
        %v1341 = vsel %vm386, %v1286, 0
        %v1344 = vsel %vm386, %v1287, 0
        %v1347 = vsel %vm386, %v1288, 0
        %v1350 = vsel %vm386, %v1289, 0
        %v1353 = vsel %vm386, %v1290, 0
        %v1356 = vsel %vm386, %v1291, 0
        %v1359 = vsel %vm386, %v1292, 0
        %v1362 = vsel %vm386, %v1293, 0
        %vm1364 = vcmask 1045504
        %v1366 = vsel %vm1364, %v1332, 0
        %v1369 = vsel %vm1364, %v1333, 0
        %1371 = vmatprep.subr.bf16.mxu0 0
        %1372 = vmatpush1.bf16.msra.mxu0 0
        %1373 = vmatprep.subr.bf16.mxu0 0
        %1374 = vmatpush1.bf16.msra.mxu0 0
        %1375 = vmatprep.subr.bf16.mxu0 0
        %1376 = vmatpush1.bf16.msra.mxu0 0
        %1377 = vmatprep.subr.bf16.mxu0 0
        %1378 = vmatpush1.bf16.msra.mxu0 0
        %1379 = vmatprep.subr.bf16.mxu0 %v1369
        %1380 = vmatpush1.bf16.msra.mxu0 %v1366
        %1381 = vmatprep.subr.bf16.mxu0 %v1331
        %1382 = vmatpush1.bf16.msra.mxu0 %v1330
        %1383 = vmatprep.subr.bf16.mxu0 %v1329
        %1384 = vmatpush1.bf16.msra.mxu0 %v1328
        %1385 = vmatprep.subr.bf16.mxu0 %v1327
        %1386 = vmatpush1.bf16.msra.mxu0 %v1326
        %1387 = vmatprep.subr.bf16.mxu0 0
        %1388 = vmatpush2.bf16.msra.mxu0 0
        %1389 = vmatprep.subr.bf16.mxu0 0
        %1390 = vmatpush2.bf16.msra.mxu0 0
        %1391 = vmatprep.subr.bf16.mxu0 0
        %1392 = vmatpush2.bf16.msra.mxu0 0
        %1393 = vmatprep.subr.bf16.mxu0 0
        %1394 = vmatpush2.bf16.msra.mxu0 0
        %1395 = vmatprep.subr.bf16.mxu0 0
        %1396 = vmatpush2.bf16.msra.mxu0 0
        %1397 = vmatprep.subr.bf16.mxu0 0
        %1398 = vmatpush2.bf16.msra.mxu0 0
        %1399 = vmatprep.subr.bf16.mxu0 0
        %1400 = vmatpush2.bf16.msra.mxu0 0
        %1401 = vmatprep.subr.bf16.mxu0 0
        %1402 = vmatpush2.bf16.msra.mxu0 0
        %1403 = vmatprep.mubr.bf16.mxu0 0
        %1404 = vmatmul.mubr.bf16.gmra.mxu0 %v1341
        %v1405 = vpop.f32.mrf.mxu0
        %v1406 = vadd.f32 0.0, %v1405
        %v1407 = vpop.f32.mrf.mxu0
        %v1408 = vadd.f32 0.0, %v1407
        %v1409 = vpop.f32.mrf.mxu0
        %v1410 = vadd.f32 0.0, %v1409
        %v1411 = vpop.f32.mrf.mxu0
        %v1412 = vadd.f32 0.0, %v1411
        %1413 = vmatprep.mubr.bf16.mxu0 0
        %1414 = vmatmul.mubr.bf16.gmra.mxu0 %v1344
        %v1415 = vpop.f32.mrf.mxu0
        %v1416 = vadd.f32 0.0, %v1415
        %v1417 = vpop.f32.mrf.mxu0
        %v1418 = vadd.f32 0.0, %v1417
        %v1419 = vpop.f32.mrf.mxu0
        %v1420 = vadd.f32 0.0, %v1419
        %v1421 = vpop.f32.mrf.mxu0
        %v1422 = vadd.f32 0.0, %v1421
        %1423 = vmatprep.mubr.bf16.mxu0 0
        %1424 = vmatmul.mubr.bf16.gmra.mxu0 %v1347
        %v1425 = vpop.f32.mrf.mxu0
        %v1426 = vadd.f32 0.0, %v1425
        %v1427 = vpop.f32.mrf.mxu0
        %v1428 = vadd.f32 0.0, %v1427
        %v1429 = vpop.f32.mrf.mxu0
        %v1430 = vadd.f32 0.0, %v1429
        %v1431 = vpop.f32.mrf.mxu0
        %v1432 = vadd.f32 0.0, %v1431
        %1433 = vmatprep.mubr.bf16.mxu0 0
        %1434 = vmatmul.mubr.bf16.gmra.mxu0 %v1350
        %v1435 = vpop.f32.mrf.mxu0
        %v1436 = vadd.f32 0.0, %v1435
        %v1437 = vpop.f32.mrf.mxu0
        %v1438 = vadd.f32 0.0, %v1437
        %v1439 = vpop.f32.mrf.mxu0
        %v1440 = vadd.f32 0.0, %v1439
        %v1441 = vpop.f32.mrf.mxu0
        %v1442 = vadd.f32 0.0, %v1441
        %1443 = vmatprep.mubr.bf16.mxu0 0
        %1444 = vmatmul.mubr.bf16.gmra.mxu0 %v1353
        %v1445 = vpop.f32.mrf.mxu0
        %v1446 = vadd.f32 0.0, %v1445
        %v1447 = vpop.f32.mrf.mxu0
        %v1448 = vadd.f32 0.0, %v1447
        %v1449 = vpop.f32.mrf.mxu0
        %v1450 = vadd.f32 0.0, %v1449
        %v1451 = vpop.f32.mrf.mxu0
        %v1452 = vadd.f32 0.0, %v1451
        %1453 = vmatprep.mubr.bf16.mxu0 0
        %1454 = vmatmul.mubr.bf16.gmra.mxu0 %v1356
        %v1455 = vpop.f32.mrf.mxu0
        %v1456 = vadd.f32 0.0, %v1455
        %v1457 = vpop.f32.mrf.mxu0
        %v1458 = vadd.f32 0.0, %v1457
        %v1459 = vpop.f32.mrf.mxu0
        %v1460 = vadd.f32 0.0, %v1459
        %v1461 = vpop.f32.mrf.mxu0
        %v1462 = vadd.f32 0.0, %v1461
        %1463 = vmatprep.mubr.bf16.mxu0 0
        %1464 = vmatmul.mubr.bf16.gmra.mxu0 %v1359
        %v1465 = vpop.f32.mrf.mxu0
        %v1466 = vadd.f32 0.0, %v1465
        %v1467 = vpop.f32.mrf.mxu0
        %v1468 = vadd.f32 0.0, %v1467
        %v1469 = vpop.f32.mrf.mxu0
        %v1470 = vadd.f32 0.0, %v1469
        %v1471 = vpop.f32.mrf.mxu0
        %v1472 = vadd.f32 0.0, %v1471
        %1473 = vmatprep.mubr.bf16.mxu0 0
        %1474 = vmatmul.mubr.bf16.gmra.mxu0 %v1362
        %v1475 = vpop.f32.mrf.mxu0
        %v1476 = vadd.f32 0.0, %v1475
        %v1477 = vpop.f32.mrf.mxu0
        %v1478 = vadd.f32 0.0, %v1477
        %v1479 = vpop.f32.mrf.mxu0
        %v1480 = vadd.f32 0.0, %v1479
        %v1481 = vpop.f32.mrf.mxu0
        %v1482 = vadd.f32 0.0, %v1481
        %1483 = vdwg.mxu0
        %v1484 = vld [vmem:[%s8] sm:$0x3]
        %v1486 = vlaneseq
        %v1487 = vshrl.u32 %v1486, 7
        %v1488 = vsub.s32 0, %v1487
        %v1489 = vrot.slane %v1484, %v1488
        %v1490 = vlaneseq
        %v1491 = vshrl.u32 %v1490, 7
        %v1492 = vsub.s32 1, %v1491
        %v1493 = vrot.slane %v1484, %v1492
        %v1496 = vmul.f32 %v1406, %v1489
        %v1497 = vmul.f32 %v1408, %v1493
        %v1498 = vmul.f32 %v1410, %v1489
        %v1499 = vmul.f32 %v1412, %v1493
        %v1500 = vmul.f32 %v1416, %v1489
        %v1501 = vmul.f32 %v1418, %v1493
        %v1502 = vmul.f32 %v1420, %v1489
        %v1503 = vmul.f32 %v1422, %v1493
        %v1504 = vmul.f32 %v1426, %v1489
        %v1505 = vmul.f32 %v1428, %v1493
        %v1506 = vmul.f32 %v1430, %v1489
        %v1507 = vmul.f32 %v1432, %v1493
        %v1508 = vmul.f32 %v1436, %v1489
        %v1509 = vmul.f32 %v1438, %v1493
        %v1510 = vmul.f32 %v1440, %v1489
        %v1511 = vmul.f32 %v1442, %v1493
        %v1512 = vmul.f32 %v1446, %v1489
        %v1513 = vmul.f32 %v1448, %v1493
        %v1514 = vmul.f32 %v1450, %v1489
        %v1515 = vmul.f32 %v1452, %v1493
        %v1516 = vmul.f32 %v1456, %v1489
        %v1517 = vmul.f32 %v1458, %v1493
        %v1518 = vmul.f32 %v1460, %v1489
        %v1519 = vmul.f32 %v1462, %v1493
        %v1520 = vmul.f32 %v1466, %v1489
        %v1521 = vmul.f32 %v1468, %v1493
        %v1522 = vmul.f32 %v1470, %v1489
        %v1523 = vmul.f32 %v1472, %v1493
        %v1524 = vmul.f32 %v1476, %v1489
        %v1525 = vmul.f32 %v1478, %v1493
        %v1526 = vmul.f32 %v1480, %v1489
        %v1527 = vmul.f32 %v1482, %v1493
        %v1528 = vld [vmem:[%s9] sm:$0x3]
        %v1530 = vlaneseq
        %v1531 = vshrl.u32 %v1530, 7
        %v1532 = vsub.s32 0, %v1531
        %v1533 = vrot.slane %v1528, %v1532
        %v1534 = vlaneseq
        %v1535 = vshrl.u32 %v1534, 7
        %v1536 = vsub.s32 1, %v1535
        %v1537 = vrot.slane %v1528, %v1536
        %v1540 = vadd.f32 %v1496, %v1533
        %v1541 = vadd.f32 %v1497, %v1537
        %v1542 = vadd.f32 %v1498, %v1533
        %v1543 = vadd.f32 %v1499, %v1537
        %v1544 = vadd.f32 %v1500, %v1533
        %v1545 = vadd.f32 %v1501, %v1537
        %v1546 = vadd.f32 %v1502, %v1533
        %v1547 = vadd.f32 %v1503, %v1537
        %v1548 = vadd.f32 %v1504, %v1533
        %v1549 = vadd.f32 %v1505, %v1537
        %v1550 = vadd.f32 %v1506, %v1533
        %v1551 = vadd.f32 %v1507, %v1537
        %v1552 = vadd.f32 %v1508, %v1533
        %v1553 = vadd.f32 %v1509, %v1537
        %v1554 = vadd.f32 %v1510, %v1533
        %v1555 = vadd.f32 %v1511, %v1537
        %v1556 = vadd.f32 %v1512, %v1533
        %v1557 = vadd.f32 %v1513, %v1537
        %v1558 = vadd.f32 %v1514, %v1533
        %v1559 = vadd.f32 %v1515, %v1537
        %v1560 = vadd.f32 %v1516, %v1533
        %v1561 = vadd.f32 %v1517, %v1537
        %v1562 = vadd.f32 %v1518, %v1533
        %v1563 = vadd.f32 %v1519, %v1537
        %v1564 = vadd.f32 %v1520, %v1533
        %v1565 = vadd.f32 %v1521, %v1537
        %v1566 = vadd.f32 %v1522, %v1533
        %v1567 = vadd.f32 %v1523, %v1537
        %v1568 = vadd.f32 %v1524, %v1533
        %v1569 = vadd.f32 %v1525, %v1537
        %v1570 = vadd.f32 %v1526, %v1533
        %v1571 = vadd.f32 %v1527, %v1537
        %v1572 = vadd.f32 %v451, %v1540
        %v1573 = vadd.f32 %v452, %v1541
        %v1574 = vadd.f32 %v453, %v1542
        %v1575 = vadd.f32 %v454, %v1543
        %v1576 = vadd.f32 %v455, %v1544
        %v1577 = vadd.f32 %v456, %v1545
        %v1578 = vadd.f32 %v457, %v1546
        %v1579 = vadd.f32 %v458, %v1547
        %v1580 = vadd.f32 %v459, %v1548
        %v1581 = vadd.f32 %v460, %v1549
        %v1582 = vadd.f32 %v461, %v1550
        %v1583 = vadd.f32 %v462, %v1551
        %v1584 = vadd.f32 %v463, %v1552
        %v1585 = vadd.f32 %v464, %v1553
        %v1586 = vadd.f32 %v465, %v1554
        %v1587 = vadd.f32 %v466, %v1555
        %v1588 = vadd.f32 %v467, %v1556
        %v1589 = vadd.f32 %v468, %v1557
        %v1590 = vadd.f32 %v469, %v1558
        %v1591 = vadd.f32 %v470, %v1559
        %v1592 = vadd.f32 %v471, %v1560
        %v1593 = vadd.f32 %v472, %v1561
        %v1594 = vadd.f32 %v473, %v1562
        %v1595 = vadd.f32 %v474, %v1563
        %v1596 = vadd.f32 %v475, %v1564
        %v1597 = vadd.f32 %v476, %v1565
        %v1598 = vadd.f32 %v477, %v1566
        %v1599 = vadd.f32 %v478, %v1567
        %v1600 = vadd.f32 %v479, %v1568
        %v1601 = vadd.f32 %v480, %v1569
        %v1602 = vadd.f32 %v481, %v1570
        %v1603 = vadd.f32 %v482, %v1571
        %v1604 = vmax.f32 %v1572, 0.0
        %v1605 = vmax.f32 %v1573, 0.0
        %v1606 = vmax.f32 %v1574, 0.0
        %v1607 = vmax.f32 %v1575, 0.0
        %v1608 = vmax.f32 %v1576, 0.0
        %v1609 = vmax.f32 %v1577, 0.0
        %v1610 = vmax.f32 %v1578, 0.0
        %v1611 = vmax.f32 %v1579, 0.0
        %v1612 = vmax.f32 %v1580, 0.0
        %v1613 = vmax.f32 %v1581, 0.0
        %v1614 = vmax.f32 %v1582, 0.0
        %v1615 = vmax.f32 %v1583, 0.0
        %v1616 = vmax.f32 %v1584, 0.0
        %v1617 = vmax.f32 %v1585, 0.0
        %v1618 = vmax.f32 %v1586, 0.0
        %v1619 = vmax.f32 %v1587, 0.0
        %v1620 = vmax.f32 %v1588, 0.0
        %v1621 = vmax.f32 %v1589, 0.0
        %v1622 = vmax.f32 %v1590, 0.0
        %v1623 = vmax.f32 %v1591, 0.0
        %v1624 = vmax.f32 %v1592, 0.0
        %v1625 = vmax.f32 %v1593, 0.0
        %v1626 = vmax.f32 %v1594, 0.0
        %v1627 = vmax.f32 %v1595, 0.0
        %v1628 = vmax.f32 %v1596, 0.0
        %v1629 = vmax.f32 %v1597, 0.0
        %v1630 = vmax.f32 %v1598, 0.0
        %v1631 = vmax.f32 %v1599, 0.0
        %v1632 = vmax.f32 %v1600, 0.0
        %v1633 = vmax.f32 %v1601, 0.0
        %v1634 = vmax.f32 %v1602, 0.0
        %v1635 = vmax.f32 %v1603, 0.0
        %1636 = vst [vmem:[%s355] sm:$0xff] %v1604
        %1637 = vst [vmem:[%s355 + $0x8] sm:$0xff] %v1605
        %1638 = vst [vmem:[%s355 + $0x10] sm:$0xff] %v1606
        %1639 = vst [vmem:[%s355 + $0x18] sm:$0xff] %v1607
        %1640 = vst [vmem:[%s355 + $0x20] sm:$0xff] %v1608
        %1641 = vst [vmem:[%s355 + $0x28] sm:$0xff] %v1609
        %1642 = vst [vmem:[%s355 + $0x30] sm:$0xff] %v1610
        %1643 = vst [vmem:[%s355 + $0x38] sm:$0xff] %v1611
        %1644 = vst [vmem:[%s355 + $0x40] sm:$0xff] %v1612
        %1645 = vst [vmem:[%s355 + $0x48] sm:$0xff] %v1613
        %1646 = vst [vmem:[%s355 + $0x50] sm:$0xff] %v1614
        %1647 = vst [vmem:[%s355 + $0x58] sm:$0xff] %v1615
        %1648 = vst [vmem:[%s355 + $0x60] sm:$0xff] %v1616
        %1649 = vst [vmem:[%s355 + $0x68] sm:$0xff] %v1617
        %1650 = vst [vmem:[%s355 + $0x70] sm:$0xff] %v1618
        %1651 = vst [vmem:[%s355 + $0x78] sm:$0xff] %v1619
        %1652 = vst [vmem:[%s355 + $0x80] sm:$0xff] %v1620
        %1653 = vst [vmem:[%s355 + $0x88] sm:$0xff] %v1621
        %1654 = vst [vmem:[%s355 + $0x90] sm:$0xff] %v1622
        %1655 = vst [vmem:[%s355 + $0x98] sm:$0xff] %v1623
        %1656 = vst [vmem:[%s355 + $0xa0] sm:$0xff] %v1624
        %1657 = vst [vmem:[%s355 + $0xa8] sm:$0xff] %v1625
        %1658 = vst [vmem:[%s355 + $0xb0] sm:$0xff] %v1626
        %1659 = vst [vmem:[%s355 + $0xb8] sm:$0xff] %v1627
        %1660 = vst [vmem:[%s355 + $0xc0] sm:$0xff] %v1628
        %1661 = vst [vmem:[%s355 + $0xc8] sm:$0xff] %v1629
        %1662 = vst [vmem:[%s355 + $0xd0] sm:$0xff] %v1630
        %1663 = vst [vmem:[%s355 + $0xd8] sm:$0xff] %v1631
        %1664 = vst [vmem:[%s355 + $0xe0] sm:$0xff] %v1632
        %1665 = vst [vmem:[%s355 + $0xe8] sm:$0xff] %v1633
        %1666 = vst [vmem:[%s355 + $0xf0] sm:$0xff] %v1634
        %1667 = vst [vmem:[%s355 + $0xf8] sm:$0xff] %v1635
        %s1668 = sand.u32 %s247, 1
        %s1669 = scalar_lea.sflag [#allocation4], %s1668
        %s1670 = sand.u32 %s247, 1
        %s1671 = smul.addr %s1670, 256
        %s1672 = scalar_lea.vmem [#allocation3], %s1671
        // Predicated region
        $region61: #{_lambda_.3} parent=59 // pred_check
          %p1673 = pneg %p257
        $region62: #{_lambda_.3} parent=59 // pred_check_branch
          %1675 = sbr.rel (%p1673) target = $region64
        $region63: #{_lambda_.3} parent=59 // pred_region
          %s1676 = smul.u32 2, %s24
          %s1678 = ssub.s32 4096, 4096
          %1679 = vsyncadd %s1669, %s1678
          %s1680 = smul.addr %s1676, 16
          %s1681 = smul.addr %s1680, 128
          %s1682 = scalar_lea.hbm %s10, %s1681
          %s1683 = sshll.u32 %s1672, 4
          %s1684 = int_to_ptr.vmem [resolvable:$true] %s1683
          %1689 = dma.vmem_to_hbm [thread:$0]  %s1684, 4096, %s1682, %s1669, 256, 256, 16
        $region64: #{_lambda_.3} parent=59 // pred_fallthru
          _
      $region60: #{_lambda_.3} parent=5 // pred_fallthru
        _
      %p1690 = scmp.le.s32.totalorder 2, %s19
      // Predicated region
      $region65: #{_lambda_.3} parent=5 // pred_check
        %p1691 = pneg %p1690
      $region66: #{_lambda_.3} parent=5 // pred_check_branch
        %1693 = sbr.rel (%p1691) target = $region68
      $region67: #{_lambda_.3} parent=5 // pred_region
        %s1694 = ssub.s32 %s19, 2
        // Predicated region
        $region69: #{_lambda_.3} parent=67 // pred_check
          %p1695 = pneg %p263
        $region70: #{_lambda_.3} parent=67 // pred_check_branch
          %1697 = sbr.rel (%p1695) target = $region72
        $region71: #{_lambda_.3} parent=67 // pred_region
          %s1698 = sand.u32 %s248, 1
          %s1699 = scalar_lea.sflag [#allocation4], %s1698
          %s1700 = sand.u32 %s248, 1
          %s1701 = smul.addr %s1700, 256
          %s1702 = scalar_lea.vmem [#allocation3], %s1701
          %1703 = dma.done %s1699, 4096
        $region72: #{_lambda_.3} parent=67 // pred_fallthru
          _
      $region68: #{_lambda_.3} parent=5 // pred_fallthru
        _
    $region6: #{_lambda_.3} parent=1 // loop_footer
      %s23 = sadd.s32 1, %s19
    $region7: #{_lambda_.3} parent=1 // loop_footer_branch
      %18 = sbr.rel target = $region3
    $region8: #{_lambda_.3} parent=1 // loop_exit
      _
    %1704 = vsyncpa [#allocation4], 1
    %s1705 = scalar_lea.sflag [#allocation4], 1
    %1706 = vsyncpa %s1705, 1

// kernel: _lambda_.2
$region0: #{_lambda_.2}
  #allocation0 [shape = 'u32[]', space=smem, size = 0x4, offset = 0x4, fixed_abs, tag = 'smem constant byte address 0x4 - core index']
  #allocation1 [shape = 'u32[144,128]{1,0:T(1,128)}', space=vmem, size = 0x12000, scoped, tag = 'internal scratch']
  #allocation2 [shape = 'f32[2,36,9,60]{3,2,1,0:T(8,128)}', space=vmem, size = 0x90000, scoped, tag = 'scratch operand']
  %s0 = inlined_call_operand.vmem [shape: f32[4,36,9,24], index: 0, kind: input, shape index: {}]
  %s1 = inlined_call_operand.vmem [shape: bf16[24,60], index: 1, kind: input, shape index: {}]
  %s2 = inlined_call_operand.vmem [shape: f32[1,60], index: 2, kind: input, shape index: {}]
  %s3 = inlined_call_operand.vmem [shape: f32[1,60], index: 3, kind: input, shape index: {}]
  %s4 = inlined_call_operand.vmem [shape: f32[9,60], index: 4, kind: input, shape index: {}]
  %s5 = inlined_call_operand.vmem [shape: f32[1,60], index: 5, kind: input, shape index: {}]
  %s6 = inlined_call_operand.vmem [shape: f32[1,60], index: 6, kind: input, shape index: {}]
  %s7 = inlined_call_operand.vmem [shape: bf16[60,232], index: 7, kind: input, shape index: {}]
  %s8 = inlined_call_operand.vmem [shape: f32[1,232], index: 8, kind: input, shape index: {}]
  %s9 = inlined_call_operand.vmem [shape: f32[1,232], index: 9, kind: input, shape index: {}]
  %s10 = inlined_call_operand.vmem [shape: f32[4,8,8,256], index: 10, kind: output, shape index: {}]
  %s11 = sld [smem:[#allocation0]]
  $region73: #{_lambda_.2} parent=0
    _
  %s13 = ssub.s32 1, %s11
  %s14 = scalar_select 0, %s13, %s11
  loop: start=0, step=1, limit=4
  $region2: #{_lambda_.2} parent=0 // loop_pre_header
    _
  $region3: #{_lambda_.2} parent=0 // loop_header
    %s16 = sphi 0, %s20
    %p17 = scmp.ge.s32.totalorder %s16, 4
    %s26 = sphi 0, %s28
    %s29 = sphi 0, %s26
    %s30 = sphi 0, %s29
    %s46 = sphi 0, %s30
    %s50 = sphi 0, %s50
    %s52 = sphi 0, %s50
    %s53 = sphi 0, %s52
    %s67 = sphi 0, %s53
    %s71 = sphi 0, %s71
    %s73 = sphi 0, %s71
    %s74 = sphi 0, %s73
    %s88 = sphi 0, %s74
    %s92 = sphi 0, %s92
    %s94 = sphi 0, %s92
    %s95 = sphi 0, %s94
    %s109 = sphi 0, %s95
    %s113 = sphi 0, %s113
    %s115 = sphi 0, %s113
    %s116 = sphi 0, %s115
    %s130 = sphi 0, %s116
    %s134 = sphi 0, %s134
    %s136 = sphi 0, %s134
    %s137 = sphi 0, %s136
    %s151 = sphi 0, %s137
    %s155 = sphi 0, %s155
    %s157 = sphi 0, %s155
    %s158 = sphi 0, %s157
    %s172 = sphi 0, %s158
    %s176 = sphi 0, %s176
    %s178 = sphi 0, %s176
    %s179 = sphi 0, %s178
    %s193 = sphi 0, %s179
    %s197 = sphi 0, %s197
    %s199 = sphi 0, %s197
    %s200 = sphi 0, %s199
    %s214 = sphi 0, %s200
    %s218 = sphi 0, %s218
    %s220 = sphi 0, %s218
    %s221 = sphi 0, %s220
    %s235 = sphi 0, %s221
    %s241 = sphi 0, %s243
    %s244 = sphi 0, %s241
    %s245 = sphi 0, %s244
    %s261 = sphi 0, %s245
  $region4: #{_lambda_.2} parent=0 // loop_header_branch
    %19 = sbr.rel (%p17) target = $region8
  $region5: #{_lambda_.2} parent=0 // loop_body
    %s21 = ssub.s32 %s16, 1
    %s22 = ssub.s32 %s16, 2
    %s23 = sadd.s32 %s16, 1
    %s24 = ssub.s32 %s16, %s23
    %p25 = scmp.eq.s32.totalorder %s24, 0
    %s27 = sadd.s32 %s26, 1
    %s28 = scalar_select %p25, %s26, %s27
    %p31 = pneg %p25
    %p32 = scmp.eq.s32.totalorder %s16, 1
    %p33 = por %p31, %p32
    %p34 = scmp.ne.s32.totalorder %s26, %s29
    %p35 = scmp.eq.s32.totalorder %s16, 0
    %p36 = por %p34, %p35
    %p37 = scmp.ne.s32.totalorder %s26, %s29
    %p38 = scmp.eq.s32.totalorder %s21, 1
    %p39 = por %p37, %p38
    %p40 = scmp.ne.s32.totalorder %s29, %s30
    %p41 = scmp.eq.s32.totalorder %s21, 0
    %p42 = por %p40, %p41
    %p43 = scmp.ne.s32.totalorder %s29, %s30
    %p44 = scmp.eq.s32.totalorder %s22, 1
    %p45 = por %p43, %p44
    %p47 = scmp.ne.s32.totalorder %s30, %s46
    %p48 = scmp.eq.s32.totalorder %s22, 0
    %p49 = por %p47, %p48
    %s51 = sadd.s32 %s50, 1
    %p54 = scmp.eq.s32.totalorder %s16, 1
    %p55 = scmp.ne.s32.totalorder %s50, %s52
    %p56 = scmp.eq.s32.totalorder %s16, 0
    %p57 = por %p55, %p56
    %p58 = scmp.ne.s32.totalorder %s50, %s52
    %p59 = scmp.eq.s32.totalorder %s21, 1
    %p60 = por %p58, %p59
    %p61 = scmp.ne.s32.totalorder %s52, %s53
    %p62 = scmp.eq.s32.totalorder %s21, 0
    %p63 = por %p61, %p62
    %p64 = scmp.ne.s32.totalorder %s52, %s53
    %p65 = scmp.eq.s32.totalorder %s22, 1
    %p66 = por %p64, %p65
    %p68 = scmp.ne.s32.totalorder %s53, %s67
    %p69 = scmp.eq.s32.totalorder %s22, 0
    %p70 = por %p68, %p69
    %s72 = sadd.s32 %s71, 1
    %p75 = scmp.eq.s32.totalorder %s16, 1
    %p76 = scmp.ne.s32.totalorder %s71, %s73
    %p77 = scmp.eq.s32.totalorder %s16, 0
    %p78 = por %p76, %p77
    %p79 = scmp.ne.s32.totalorder %s71, %s73
    %p80 = scmp.eq.s32.totalorder %s21, 1
    %p81 = por %p79, %p80
    %p82 = scmp.ne.s32.totalorder %s73, %s74
    %p83 = scmp.eq.s32.totalorder %s21, 0
    %p84 = por %p82, %p83
    %p85 = scmp.ne.s32.totalorder %s73, %s74
    %p86 = scmp.eq.s32.totalorder %s22, 1
    %p87 = por %p85, %p86
    %p89 = scmp.ne.s32.totalorder %s74, %s88
    %p90 = scmp.eq.s32.totalorder %s22, 0
    %p91 = por %p89, %p90
    %s93 = sadd.s32 %s92, 1
    %p96 = scmp.eq.s32.totalorder %s16, 1
    %p97 = scmp.ne.s32.totalorder %s92, %s94
    %p98 = scmp.eq.s32.totalorder %s16, 0
    %p99 = por %p97, %p98
    %p100 = scmp.ne.s32.totalorder %s92, %s94
    %p101 = scmp.eq.s32.totalorder %s21, 1
    %p102 = por %p100, %p101
    %p103 = scmp.ne.s32.totalorder %s94, %s95
    %p104 = scmp.eq.s32.totalorder %s21, 0
    %p105 = por %p103, %p104
    %p106 = scmp.ne.s32.totalorder %s94, %s95
    %p107 = scmp.eq.s32.totalorder %s22, 1
    %p108 = por %p106, %p107
    %p110 = scmp.ne.s32.totalorder %s95, %s109
    %p111 = scmp.eq.s32.totalorder %s22, 0
    %p112 = por %p110, %p111
    %s114 = sadd.s32 %s113, 1
    %p117 = scmp.eq.s32.totalorder %s16, 1
    %p118 = scmp.ne.s32.totalorder %s113, %s115
    %p119 = scmp.eq.s32.totalorder %s16, 0
    %p120 = por %p118, %p119
    %p121 = scmp.ne.s32.totalorder %s113, %s115
    %p122 = scmp.eq.s32.totalorder %s21, 1
    %p123 = por %p121, %p122
    %p124 = scmp.ne.s32.totalorder %s115, %s116
    %p125 = scmp.eq.s32.totalorder %s21, 0
    %p126 = por %p124, %p125
    %p127 = scmp.ne.s32.totalorder %s115, %s116
    %p128 = scmp.eq.s32.totalorder %s22, 1
    %p129 = por %p127, %p128
    %p131 = scmp.ne.s32.totalorder %s116, %s130
    %p132 = scmp.eq.s32.totalorder %s22, 0
    %p133 = por %p131, %p132
    %s135 = sadd.s32 %s134, 1
    %p138 = scmp.eq.s32.totalorder %s16, 1
    %p139 = scmp.ne.s32.totalorder %s134, %s136
    %p140 = scmp.eq.s32.totalorder %s16, 0
    %p141 = por %p139, %p140
    %p142 = scmp.ne.s32.totalorder %s134, %s136
    %p143 = scmp.eq.s32.totalorder %s21, 1
    %p144 = por %p142, %p143
    %p145 = scmp.ne.s32.totalorder %s136, %s137
    %p146 = scmp.eq.s32.totalorder %s21, 0
    %p147 = por %p145, %p146
    %p148 = scmp.ne.s32.totalorder %s136, %s137
    %p149 = scmp.eq.s32.totalorder %s22, 1
    %p150 = por %p148, %p149
    %p152 = scmp.ne.s32.totalorder %s137, %s151
    %p153 = scmp.eq.s32.totalorder %s22, 0
    %p154 = por %p152, %p153
    %s156 = sadd.s32 %s155, 1
    %p159 = scmp.eq.s32.totalorder %s16, 1
    %p160 = scmp.ne.s32.totalorder %s155, %s157
    %p161 = scmp.eq.s32.totalorder %s16, 0
    %p162 = por %p160, %p161
    %p163 = scmp.ne.s32.totalorder %s155, %s157
    %p164 = scmp.eq.s32.totalorder %s21, 1
    %p165 = por %p163, %p164
    %p166 = scmp.ne.s32.totalorder %s157, %s158
    %p167 = scmp.eq.s32.totalorder %s21, 0
    %p168 = por %p166, %p167
    %p169 = scmp.ne.s32.totalorder %s157, %s158
    %p170 = scmp.eq.s32.totalorder %s22, 1
    %p171 = por %p169, %p170
    %p173 = scmp.ne.s32.totalorder %s158, %s172
    %p174 = scmp.eq.s32.totalorder %s22, 0
    %p175 = por %p173, %p174
    %s177 = sadd.s32 %s176, 1
    %p180 = scmp.eq.s32.totalorder %s16, 1
    %p181 = scmp.ne.s32.totalorder %s176, %s178
    %p182 = scmp.eq.s32.totalorder %s16, 0
    %p183 = por %p181, %p182
    %p184 = scmp.ne.s32.totalorder %s176, %s178
    %p185 = scmp.eq.s32.totalorder %s21, 1
    %p186 = por %p184, %p185
    %p187 = scmp.ne.s32.totalorder %s178, %s179
    %p188 = scmp.eq.s32.totalorder %s21, 0
    %p189 = por %p187, %p188
    %p190 = scmp.ne.s32.totalorder %s178, %s179
    %p191 = scmp.eq.s32.totalorder %s22, 1
    %p192 = por %p190, %p191
    %p194 = scmp.ne.s32.totalorder %s179, %s193
    %p195 = scmp.eq.s32.totalorder %s22, 0
    %p196 = por %p194, %p195
    %s198 = sadd.s32 %s197, 1
    %p201 = scmp.eq.s32.totalorder %s16, 1
    %p202 = scmp.ne.s32.totalorder %s197, %s199
    %p203 = scmp.eq.s32.totalorder %s16, 0
    %p204 = por %p202, %p203
    %p205 = scmp.ne.s32.totalorder %s197, %s199
    %p206 = scmp.eq.s32.totalorder %s21, 1
    %p207 = por %p205, %p206
    %p208 = scmp.ne.s32.totalorder %s199, %s200
    %p209 = scmp.eq.s32.totalorder %s21, 0
    %p210 = por %p208, %p209
    %p211 = scmp.ne.s32.totalorder %s199, %s200
    %p212 = scmp.eq.s32.totalorder %s22, 1
    %p213 = por %p211, %p212
    %p215 = scmp.ne.s32.totalorder %s200, %s214
    %p216 = scmp.eq.s32.totalorder %s22, 0
    %p217 = por %p215, %p216
    %s219 = sadd.s32 %s218, 1
    %p222 = scmp.eq.s32.totalorder %s16, 1
    %p223 = scmp.ne.s32.totalorder %s218, %s220
    %p224 = scmp.eq.s32.totalorder %s16, 0
    %p225 = por %p223, %p224
    %p226 = scmp.ne.s32.totalorder %s218, %s220
    %p227 = scmp.eq.s32.totalorder %s21, 1
    %p228 = por %p226, %p227
    %p229 = scmp.ne.s32.totalorder %s220, %s221
    %p230 = scmp.eq.s32.totalorder %s21, 0
    %p231 = por %p229, %p230
    %p232 = scmp.ne.s32.totalorder %s220, %s221
    %p233 = scmp.eq.s32.totalorder %s22, 1
    %p234 = por %p232, %p233
    %p236 = scmp.ne.s32.totalorder %s221, %s235
    %p237 = scmp.eq.s32.totalorder %s22, 0
    %p238 = por %p236, %p237
    %s239 = ssub.s32 %s16, %s23
    %p240 = scmp.eq.s32.totalorder %s239, 0
    %s242 = sadd.s32 %s241, 1
    %s243 = scalar_select %p240, %s241, %s242
    %p246 = pneg %p240
    %p247 = scmp.eq.s32.totalorder %s16, 1
    %p248 = por %p246, %p247
    %p249 = scmp.ne.s32.totalorder %s241, %s244
    %p250 = scmp.eq.s32.totalorder %s16, 0
    %p251 = por %p249, %p250
    %p252 = scmp.ne.s32.totalorder %s241, %s244
    %p253 = scmp.eq.s32.totalorder %s21, 1
    %p254 = por %p252, %p253
    %p255 = scmp.ne.s32.totalorder %s244, %s245
    %p256 = scmp.eq.s32.totalorder %s21, 0
    %p257 = por %p255, %p256
    %p258 = scmp.ne.s32.totalorder %s244, %s245
    %p259 = scmp.eq.s32.totalorder %s22, 1
    %p260 = por %p258, %p259
    %p262 = scmp.ne.s32.totalorder %s245, %s261
    %p263 = scmp.eq.s32.totalorder %s22, 0
    %p264 = por %p262, %p263
    %p265 = scmp.le.s32.totalorder 1, %s16
    %p266 = scmp.lt.s32.totalorder %s16, 3
    %p267 = pnand %p265, %p266
    %p268 = pneg %p267
    // Predicated region
    $region9: #{_lambda_.2} parent=5 // pred_check
      _
    $region10: #{_lambda_.2} parent=5 // pred_check_branch
      %270 = sbr.rel (%p267) target = $region12
    $region11: #{_lambda_.2} parent=5 // pred_region
      %s271 = ssub.s32 %s16, 1
      // Predicated region
      $region13: #{_lambda_.2} parent=11 // pred_check
        %p272 = pneg %p63
      $region14: #{_lambda_.2} parent=11 // pred_check_branch
        %274 = sbr.rel (%p272) target = $region16
      $region15: #{_lambda_.2} parent=11 // pred_region
        _
      $region16: #{_lambda_.2} parent=11 // pred_fallthru
        _
      // Predicated region
      $region17: #{_lambda_.2} parent=11 // pred_check
        %p275 = pneg %p84
      $region18: #{_lambda_.2} parent=11 // pred_check_branch
        %277 = sbr.rel (%p275) target = $region20
      $region19: #{_lambda_.2} parent=11 // pred_region
        _
      $region20: #{_lambda_.2} parent=11 // pred_fallthru
        _
      // Predicated region
      $region21: #{_lambda_.2} parent=11 // pred_check
        %p278 = pneg %p105
      $region22: #{_lambda_.2} parent=11 // pred_check_branch
        %280 = sbr.rel (%p278) target = $region24
      $region23: #{_lambda_.2} parent=11 // pred_region
        _
      $region24: #{_lambda_.2} parent=11 // pred_fallthru
        _
      // Predicated region
      $region25: #{_lambda_.2} parent=11 // pred_check
        %p281 = pneg %p126
      $region26: #{_lambda_.2} parent=11 // pred_check_branch
        %283 = sbr.rel (%p281) target = $region28
      $region27: #{_lambda_.2} parent=11 // pred_region
        _
      $region28: #{_lambda_.2} parent=11 // pred_fallthru
        _
      // Predicated region
      $region29: #{_lambda_.2} parent=11 // pred_check
        %p284 = pneg %p147
      $region30: #{_lambda_.2} parent=11 // pred_check_branch
        %286 = sbr.rel (%p284) target = $region32
      $region31: #{_lambda_.2} parent=11 // pred_region
        _
      $region32: #{_lambda_.2} parent=11 // pred_fallthru
        _
      // Predicated region
      $region33: #{_lambda_.2} parent=11 // pred_check
        %p287 = pneg %p168
      $region34: #{_lambda_.2} parent=11 // pred_check_branch
        %289 = sbr.rel (%p287) target = $region36
      $region35: #{_lambda_.2} parent=11 // pred_region
        _
      $region36: #{_lambda_.2} parent=11 // pred_fallthru
        _
      // Predicated region
      $region37: #{_lambda_.2} parent=11 // pred_check
        %p290 = pneg %p189
      $region38: #{_lambda_.2} parent=11 // pred_check_branch
        %292 = sbr.rel (%p290) target = $region40
      $region39: #{_lambda_.2} parent=11 // pred_region
        _
      $region40: #{_lambda_.2} parent=11 // pred_fallthru
        _
      // Predicated region
      $region41: #{_lambda_.2} parent=11 // pred_check
        %p293 = pneg %p210
      $region42: #{_lambda_.2} parent=11 // pred_check_branch
        %295 = sbr.rel (%p293) target = $region44
      $region43: #{_lambda_.2} parent=11 // pred_region
        _
      $region44: #{_lambda_.2} parent=11 // pred_fallthru
        _
      // Predicated region
      $region45: #{_lambda_.2} parent=11 // pred_check
        %p296 = pneg %p231
      $region46: #{_lambda_.2} parent=11 // pred_check_branch
        %298 = sbr.rel (%p296) target = $region48
      $region47: #{_lambda_.2} parent=11 // pred_region
        _
      $region48: #{_lambda_.2} parent=11 // pred_fallthru
        _
    $region12: #{_lambda_.2} parent=5 // pred_fallthru
      _
    %p299 = scmp.lt.s32.totalorder %s16, 2
    // Predicated region
    $region49: #{_lambda_.2} parent=5 // pred_check
      %p300 = pneg %p299
    $region50: #{_lambda_.2} parent=5 // pred_check_branch
      %302 = sbr.rel (%p300) target = $region52
    $region51: #{_lambda_.2} parent=5 // pred_region
      // Predicated region
      $region53: #{_lambda_.2} parent=51 // pred_check
        %p303 = pneg %p36
      $region54: #{_lambda_.2} parent=51 // pred_check_branch
        %305 = sbr.rel (%p303) target = $region56
      $region55: #{_lambda_.2} parent=51 // pred_region
        %s306 = smul.u32 2, %s16
        %p307 = scmp.lt.s32.totalorder %s306, 3
        %s308 = scalar_select %p307, %s306, 3
        %s309 = smul.addr %s308, 72
        %s310 = smul.addr %s309, 8
        %s311 = scalar_lea.vmem %s0, %s310
        %s312 = smul.u32 2, %s16
      $region56: #{_lambda_.2} parent=51 // pred_fallthru
        _
    $region52: #{_lambda_.2} parent=5 // pred_fallthru
      _
    %p313 = scmp.le.s32.totalorder 1, %s16
    %p314 = scmp.lt.s32.totalorder %s16, 3
    %p315 = pnand %p313, %p314
    %p316 = pneg %p315
    // Predicated region
    $region57: #{_lambda_.2} parent=5 // pred_check
      _
    $region58: #{_lambda_.2} parent=5 // pred_check_branch
      %318 = sbr.rel (%p315) target = $region60
    $region59: #{_lambda_.2} parent=5 // pred_region
      %s319 = ssub.s32 %s16, 1
      %s320 = smul.u32 2, %s21
      %p321 = scmp.lt.s32.totalorder %s320, 3
      %s322 = scalar_select %p321, %s320, 3
      %s323 = smul.addr %s322, 72
      %s324 = smul.addr %s323, 8
      %s325 = scalar_lea.vmem %s0, %s324
      %p326 = pneg %p42
      %p327 = pneg %p39
      %p328 = pneg %p63
      %p329 = pneg %p60
      %p330 = pneg %p84
      %p331 = pneg %p81
      %p332 = pneg %p105
      %p333 = pneg %p102
      %p334 = pneg %p126
      %p335 = pneg %p123
      %p336 = pneg %p147
      %p337 = pneg %p144
      %p338 = pneg %p168
      %p339 = pneg %p165
      %p340 = pneg %p189
      %p341 = pneg %p186
      %p342 = pneg %p210
      %p343 = pneg %p207
      %p344 = pneg %p231
      %p345 = pneg %p228
      %p346 = pneg %p257
      %p347 = pneg %p254
      %s348 = smul.u32 2, %s21
      %p349 = scmp.lt.s32.totalorder %s348, 3
      %s350 = scalar_select %p349, %s348, 3
      %s351 = smul.addr %s350, 16
      %s352 = smul.addr %s351, 8
      %s353 = scalar_lea.vmem %s10, %s352
      %s354 = smul.u32 2, %s21
      %p355 = scmp.lt.s32.totalorder %s354, 3
      %s356 = scalar_select %p355, %s354, 3
      %s357 = smul.addr %s356, 72
      %s358 = smul.addr %s357, 8
      %s359 = scalar_lea.vmem %s0, %s358
      %s360 = smul.u32 2, %s21
      %s361 = smul.u32 2, %s21
      %p362 = scmp.lt.s32.totalorder %s361, 3
      %s363 = scalar_select %p362, %s361, 3
      %s364 = smul.addr %s363, 16
      %s365 = smul.addr %s364, 8
      %s366 = scalar_lea.vmem %s10, %s365
      %s367 = smul.u32 2, %s21
      %vm369 = vcmask 483328
      %370 = vst.msk [vmem:[#allocation2] sm:$0x1] %vm369, 0.0
      %371 = vst.msk [vmem:[#allocation2 + $0x10] sm:$0x1] %vm369, 0.0
      %372 = vst.msk [vmem:[#allocation2 + $0x20] sm:$0x1] %vm369, 0.0
      %373 = vst.msk [vmem:[#allocation2 + $0x30] sm:$0x1] %vm369, 0.0
      %374 = vst.msk [vmem:[#allocation2 + $0x40] sm:$0x1] %vm369, 0.0
      %375 = vst.msk [vmem:[#allocation2 + $0x50] sm:$0x1] %vm369, 0.0
      %376 = vst.msk [vmem:[#allocation2 + $0x60] sm:$0x1] %vm369, 0.0
      %377 = vst.msk [vmem:[#allocation2 + $0x70] sm:$0x1] %vm369, 0.0
      %378 = vst.msk [vmem:[#allocation2 + $0x80] sm:$0x1] %vm369, 0.0
      %379 = vst.msk [vmem:[#allocation2 + $0x90] sm:$0x1] %vm369, 0.0
      %380 = vst.msk [vmem:[#allocation2 + $0xa0] sm:$0x1] %vm369, 0.0
      %381 = vst.msk [vmem:[#allocation2 + $0xb0] sm:$0x1] %vm369, 0.0
      %382 = vst.msk [vmem:[#allocation2 + $0xc0] sm:$0x1] %vm369, 0.0
      %383 = vst.msk [vmem:[#allocation2 + $0xd0] sm:$0x1] %vm369, 0.0
      %384 = vst.msk [vmem:[#allocation2 + $0xe0] sm:$0x1] %vm369, 0.0
      %385 = vst.msk [vmem:[#allocation2 + $0xf0] sm:$0x1] %vm369, 0.0
      %386 = vst.msk [vmem:[#allocation2 + $0x100] sm:$0x1] %vm369, 0.0
      %387 = vst.msk [vmem:[#allocation2 + $0x110] sm:$0x1] %vm369, 0.0
      %388 = vst.msk [vmem:[#allocation2 + $0x120] sm:$0x1] %vm369, 0.0
      %389 = vst.msk [vmem:[#allocation2 + $0x130] sm:$0x1] %vm369, 0.0
      %390 = vst.msk [vmem:[#allocation2 + $0x140] sm:$0x1] %vm369, 0.0
      %391 = vst.msk [vmem:[#allocation2 + $0x150] sm:$0x1] %vm369, 0.0
      %392 = vst.msk [vmem:[#allocation2 + $0x160] sm:$0x1] %vm369, 0.0
      %393 = vst.msk [vmem:[#allocation2 + $0x170] sm:$0x1] %vm369, 0.0
      %394 = vst.msk [vmem:[#allocation2 + $0x180] sm:$0x1] %vm369, 0.0
      %395 = vst.msk [vmem:[#allocation2 + $0x190] sm:$0x1] %vm369, 0.0
      %396 = vst.msk [vmem:[#allocation2 + $0x1a0] sm:$0x1] %vm369, 0.0
      %397 = vst.msk [vmem:[#allocation2 + $0x1b0] sm:$0x1] %vm369, 0.0
      %398 = vst.msk [vmem:[#allocation2 + $0x1c0] sm:$0x1] %vm369, 0.0
      %399 = vst.msk [vmem:[#allocation2 + $0x1d0] sm:$0x1] %vm369, 0.0
      %400 = vst.msk [vmem:[#allocation2 + $0x1e0] sm:$0x1] %vm369, 0.0
      %401 = vst.msk [vmem:[#allocation2 + $0x1f0] sm:$0x1] %vm369, 0.0
      %402 = vst.msk [vmem:[#allocation2 + $0x200] sm:$0x1] %vm369, 0.0
      %403 = vst.msk [vmem:[#allocation2 + $0x210] sm:$0x1] %vm369, 0.0
      %404 = vst.msk [vmem:[#allocation2 + $0x220] sm:$0x1] %vm369, 0.0
      %405 = vst.msk [vmem:[#allocation2 + $0x230] sm:$0x1] %vm369, 0.0
      %406 = vst.msk [vmem:[#allocation2 + $0x240] sm:$0x1] %vm369, 0.0
      %407 = vst.msk [vmem:[#allocation2 + $0x250] sm:$0x1] %vm369, 0.0
      %408 = vst.msk [vmem:[#allocation2 + $0x260] sm:$0x1] %vm369, 0.0
      %409 = vst.msk [vmem:[#allocation2 + $0x270] sm:$0x1] %vm369, 0.0
      %410 = vst.msk [vmem:[#allocation2 + $0x280] sm:$0x1] %vm369, 0.0
      %411 = vst.msk [vmem:[#allocation2 + $0x290] sm:$0x1] %vm369, 0.0
      %412 = vst.msk [vmem:[#allocation2 + $0x2a0] sm:$0x1] %vm369, 0.0
      %413 = vst.msk [vmem:[#allocation2 + $0x2b0] sm:$0x1] %vm369, 0.0
      %414 = vst.msk [vmem:[#allocation2 + $0x2c0] sm:$0x1] %vm369, 0.0
      %415 = vst.msk [vmem:[#allocation2 + $0x2d0] sm:$0x1] %vm369, 0.0
      %416 = vst.msk [vmem:[#allocation2 + $0x2e0] sm:$0x1] %vm369, 0.0
      %417 = vst.msk [vmem:[#allocation2 + $0x2f0] sm:$0x1] %vm369, 0.0
      %418 = vst.msk [vmem:[#allocation2 + $0x300] sm:$0x1] %vm369, 0.0
      %419 = vst.msk [vmem:[#allocation2 + $0x310] sm:$0x1] %vm369, 0.0
      %420 = vst.msk [vmem:[#allocation2 + $0x320] sm:$0x1] %vm369, 0.0
      %421 = vst.msk [vmem:[#allocation2 + $0x330] sm:$0x1] %vm369, 0.0
      %422 = vst.msk [vmem:[#allocation2 + $0x340] sm:$0x1] %vm369, 0.0
      %423 = vst.msk [vmem:[#allocation2 + $0x350] sm:$0x1] %vm369, 0.0
      %424 = vst.msk [vmem:[#allocation2 + $0x360] sm:$0x1] %vm369, 0.0
      %425 = vst.msk [vmem:[#allocation2 + $0x370] sm:$0x1] %vm369, 0.0
      %426 = vst.msk [vmem:[#allocation2 + $0x380] sm:$0x1] %vm369, 0.0
      %427 = vst.msk [vmem:[#allocation2 + $0x390] sm:$0x1] %vm369, 0.0
      %428 = vst.msk [vmem:[#allocation2 + $0x3a0] sm:$0x1] %vm369, 0.0
      %429 = vst.msk [vmem:[#allocation2 + $0x3b0] sm:$0x1] %vm369, 0.0
      %430 = vst.msk [vmem:[#allocation2 + $0x3c0] sm:$0x1] %vm369, 0.0
      %431 = vst.msk [vmem:[#allocation2 + $0x3d0] sm:$0x1] %vm369, 0.0
      %432 = vst.msk [vmem:[#allocation2 + $0x3e0] sm:$0x1] %vm369, 0.0
      %433 = vst.msk [vmem:[#allocation2 + $0x3f0] sm:$0x1] %vm369, 0.0
      %434 = vst.msk [vmem:[#allocation2 + $0x400] sm:$0x1] %vm369, 0.0
      %435 = vst.msk [vmem:[#allocation2 + $0x410] sm:$0x1] %vm369, 0.0
      %436 = vst.msk [vmem:[#allocation2 + $0x420] sm:$0x1] %vm369, 0.0
      %437 = vst.msk [vmem:[#allocation2 + $0x430] sm:$0x1] %vm369, 0.0
      %438 = vst.msk [vmem:[#allocation2 + $0x440] sm:$0x1] %vm369, 0.0
      %439 = vst.msk [vmem:[#allocation2 + $0x450] sm:$0x1] %vm369, 0.0
      %440 = vst.msk [vmem:[#allocation2 + $0x460] sm:$0x1] %vm369, 0.0
      %441 = vst.msk [vmem:[#allocation2 + $0x470] sm:$0x1] %vm369, 0.0
      %vm442 = vcmask 490496
      %443 = vst.msk [vmem:[#allocation2] sm:$0xff] %vm442, 0.0
      %444 = vst.msk [vmem:[#allocation2 + $0x8] sm:$0x1] %vm369, 0.0
      %445 = vst.msk [vmem:[#allocation2 + $0x240] sm:$0xff] %vm442, 0.0
      %446 = vst.msk [vmem:[#allocation2 + $0x248] sm:$0x1] %vm369, 0.0
      %s447 = scalar_lea.vmem [#allocation2], 144
      %448 = vst.msk [vmem:[%s447] sm:$0xff] %vm442, 0.0
      %449 = vst.msk [vmem:[%s447 + $0x8] sm:$0x1] %vm369, 0.0
      %450 = vst.msk [vmem:[%s447 + $0x240] sm:$0xff] %vm442, 0.0
      %451 = vst.msk [vmem:[%s447 + $0x248] sm:$0x1] %vm369, 0.0
      %s452 = scalar_lea.vmem [#allocation2], 288
      %453 = vst.msk [vmem:[%s452] sm:$0xff] %vm442, 0.0
      %454 = vst.msk [vmem:[%s452 + $0x8] sm:$0x1] %vm369, 0.0
      %455 = vst.msk [vmem:[%s452 + $0x240] sm:$0xff] %vm442, 0.0
      %456 = vst.msk [vmem:[%s452 + $0x248] sm:$0x1] %vm369, 0.0
      %s457 = scalar_lea.vmem [#allocation2], 432
      %458 = vst.msk [vmem:[%s457] sm:$0xff] %vm442, 0.0
      %459 = vst.msk [vmem:[%s457 + $0x8] sm:$0x1] %vm369, 0.0
      %460 = vst.msk [vmem:[%s457 + $0x240] sm:$0xff] %vm442, 0.0
      %461 = vst.msk [vmem:[%s457 + $0x248] sm:$0x1] %vm369, 0.0
      %v462 = vld [vmem:[%s1] sm:$0xf]
      %v463 = vld [vmem:[%s1 + $0x4] sm:$0xf]
      %v464 = vld [vmem:[%s1 + $0x8] sm:$0xf]
      %v465 = vld [vmem:[%s2] sm:$0x1]
      %v466 = vld [vmem:[%s3] sm:$0x1]
      %s467 = scalar_lea.vmem %s359, 16
      %v468 = vld [vmem:[%s467 + $0x1] sm:$0xff]
      %v469 = vld [vmem:[%s467 + $0x11] sm:$0xff]
      %v470 = vld [vmem:[%s467 + $0x21] sm:$0xff]
      %v471 = vld [vmem:[%s467 + $0x31] sm:$0xff]
      %v472 = vld [vmem:[%s467 + $0x41] sm:$0xff]
      %v473 = vld [vmem:[%s467 + $0x51] sm:$0xff]
      %v474 = vld [vmem:[%s467 + $0x61] sm:$0xff]
      %v475 = vld [vmem:[%s467 + $0x71] sm:$0xff]
      %v476 = vld [vmem:[%s467 + $0x241] sm:$0xff]
      %v477 = vld [vmem:[%s467 + $0x251] sm:$0xff]
      %v478 = vld [vmem:[%s467 + $0x261] sm:$0xff]
      %v479 = vld [vmem:[%s467 + $0x271] sm:$0xff]
      %v480 = vld [vmem:[%s467 + $0x281] sm:$0xff]
      %v481 = vld [vmem:[%s467 + $0x291] sm:$0xff]
      %v482 = vld [vmem:[%s467 + $0x2a1] sm:$0xff]
      %v483 = vld [vmem:[%s467 + $0x2b1] sm:$0xff]
      %v484 = vpack.c.bf16 %v469, %v468
      %v485 = vpack.c.bf16 %v471, %v470
      %v486 = vpack.c.bf16 %v473, %v472
      %v487 = vpack.c.bf16 %v475, %v474
      %v488 = vpack.c.bf16 %v477, %v476
      %v489 = vpack.c.bf16 %v479, %v478
      %v490 = vpack.c.bf16 %v481, %v480
      %v491 = vpack.c.bf16 %v483, %v482
      %v495 = vunpack.c.l.b16 %v462
      %v496 = vunpack.c.l.b16 %v463
      %v497 = vunpack.c.l.b16 %v464
      %v498 = vpack.c.b16 %v496, %v495
      %v499 = vpack.c.b16 %v497, %v497
      %vm501 = vcmask 195584
      %v503 = vsel %vm501, %v484, 0
      %v506 = vsel %vm501, %v485, 0
      %v509 = vsel %vm501, %v486, 0
      %v512 = vsel %vm501, %v487, 0
      %v515 = vsel %vm501, %v488, 0
      %v518 = vsel %vm501, %v489, 0
      %v521 = vsel %vm501, %v490, 0
      %v524 = vsel %vm501, %v491, 0
      %vm526 = vcmask 1043456
      %v528 = vsel %vm526, %v499, 0
      %530 = vmatprep.subr.bf16.mxu0 0
      %531 = vmatpush1.bf16.msra.mxu0 0
      %532 = vmatprep.subr.bf16.mxu0 0
      %533 = vmatpush1.bf16.msra.mxu0 0
      %534 = vmatprep.subr.bf16.mxu0 0
      %535 = vmatpush1.bf16.msra.mxu0 0
      %536 = vmatprep.subr.bf16.mxu0 0
      %537 = vmatpush1.bf16.msra.mxu0 0
      %538 = vmatprep.subr.bf16.mxu0 0
      %539 = vmatpush1.bf16.msra.mxu0 0
      %540 = vmatprep.subr.bf16.mxu0 0
      %541 = vmatpush1.bf16.msra.mxu0 0
      %542 = vmatprep.subr.bf16.mxu0 0
      %543 = vmatpush1.bf16.msra.mxu0 %v528
      %544 = vmatprep.subr.bf16.mxu0 0
      %545 = vmatpush1.bf16.msra.mxu0 %v498
      %546 = vmatprep.subr.bf16.mxu0 0
      %547 = vmatpush2.bf16.msra.mxu0 0
      %548 = vmatprep.subr.bf16.mxu0 0
      %549 = vmatpush2.bf16.msra.mxu0 0
      %550 = vmatprep.subr.bf16.mxu0 0
      %551 = vmatpush2.bf16.msra.mxu0 0
      %552 = vmatprep.subr.bf16.mxu0 0
      %553 = vmatpush2.bf16.msra.mxu0 0
      %554 = vmatprep.subr.bf16.mxu0 0
      %555 = vmatpush2.bf16.msra.mxu0 0
      %556 = vmatprep.subr.bf16.mxu0 0
      %557 = vmatpush2.bf16.msra.mxu0 0
      %558 = vmatprep.subr.bf16.mxu0 0
      %559 = vmatpush2.bf16.msra.mxu0 0
      %560 = vmatprep.subr.bf16.mxu0 0
      %561 = vmatpush2.bf16.msra.mxu0 0
      %562 = vmatprep.mubr.bf16.mxu0 0
      %563 = vmatmul.mubr.bf16.gmra.mxu0 %v503
      %v564 = vpop.f32.mrf.mxu0
      %v565 = vadd.f32 0.0, %v564
      %v566 = vpop.f32.mrf.mxu0
      %v567 = vpop.f32.mrf.mxu0
      %v568 = vadd.f32 0.0, %v567
      %v569 = vpop.f32.mrf.mxu0
      %570 = vmatprep.mubr.bf16.mxu0 0
      %571 = vmatmul.mubr.bf16.gmra.mxu0 %v506
      %v572 = vpop.f32.mrf.mxu0
      %v573 = vadd.f32 0.0, %v572
      %v574 = vpop.f32.mrf.mxu0
      %v575 = vpop.f32.mrf.mxu0
      %v576 = vadd.f32 0.0, %v575
      %v577 = vpop.f32.mrf.mxu0
      %578 = vmatprep.mubr.bf16.mxu0 0
      %579 = vmatmul.mubr.bf16.gmra.mxu0 %v509
      %v580 = vpop.f32.mrf.mxu0
      %v581 = vadd.f32 0.0, %v580
      %v582 = vpop.f32.mrf.mxu0
      %v583 = vpop.f32.mrf.mxu0
      %v584 = vadd.f32 0.0, %v583
      %v585 = vpop.f32.mrf.mxu0
      %586 = vmatprep.mubr.bf16.mxu0 0
      %587 = vmatmul.mubr.bf16.gmra.mxu0 %v512
      %v588 = vpop.f32.mrf.mxu0
      %v589 = vadd.f32 0.0, %v588
      %v590 = vpop.f32.mrf.mxu0
      %v591 = vpop.f32.mrf.mxu0
      %v592 = vadd.f32 0.0, %v591
      %v593 = vpop.f32.mrf.mxu0
      %594 = vmatprep.mubr.bf16.mxu0 0
      %595 = vmatmul.mubr.bf16.gmra.mxu0 %v515
      %v596 = vpop.f32.mrf.mxu0
      %v597 = vadd.f32 0.0, %v596
      %v598 = vpop.f32.mrf.mxu0
      %v599 = vpop.f32.mrf.mxu0
      %v600 = vadd.f32 0.0, %v599
      %v601 = vpop.f32.mrf.mxu0
      %602 = vmatprep.mubr.bf16.mxu0 0
      %603 = vmatmul.mubr.bf16.gmra.mxu0 %v518
      %v604 = vpop.f32.mrf.mxu0
      %v605 = vadd.f32 0.0, %v604
      %v606 = vpop.f32.mrf.mxu0
      %v607 = vpop.f32.mrf.mxu0
      %v608 = vadd.f32 0.0, %v607
      %v609 = vpop.f32.mrf.mxu0
      %610 = vmatprep.mubr.bf16.mxu0 0
      %611 = vmatmul.mubr.bf16.gmra.mxu0 %v521
      %v612 = vpop.f32.mrf.mxu0
      %v613 = vadd.f32 0.0, %v612
      %v614 = vpop.f32.mrf.mxu0
      %v615 = vpop.f32.mrf.mxu0
      %v616 = vadd.f32 0.0, %v615
      %v617 = vpop.f32.mrf.mxu0
      %618 = vmatprep.mubr.bf16.mxu0 0
      %619 = vmatmul.mubr.bf16.gmra.mxu0 %v524
      %v620 = vpop.f32.mrf.mxu0
      %v621 = vadd.f32 0.0, %v620
      %v622 = vpop.f32.mrf.mxu0
      %v623 = vpop.f32.mrf.mxu0
      %v624 = vadd.f32 0.0, %v623
      %v625 = vpop.f32.mrf.mxu0
      %626 = vdwg.mxu0
      %v628 = vlaneseq
      %v629 = vshrl.u32 %v628, 7
      %v630 = vsub.s32 0, %v629
      %v631 = vrot.slane %v465, %v630
      %v633 = vmul.f32 %v565, %v631
      %v634 = vmul.f32 %v568, %v631
      %v635 = vmul.f32 %v573, %v631
      %v636 = vmul.f32 %v576, %v631
      %v637 = vmul.f32 %v581, %v631
      %v638 = vmul.f32 %v584, %v631
      %v639 = vmul.f32 %v589, %v631
      %v640 = vmul.f32 %v592, %v631
      %v641 = vmul.f32 %v597, %v631
      %v642 = vmul.f32 %v600, %v631
      %v643 = vmul.f32 %v605, %v631
      %v644 = vmul.f32 %v608, %v631
      %v645 = vmul.f32 %v613, %v631
      %v646 = vmul.f32 %v616, %v631
      %v647 = vmul.f32 %v621, %v631
      %v648 = vmul.f32 %v624, %v631
      %v650 = vlaneseq
      %v651 = vshrl.u32 %v650, 7
      %v652 = vsub.s32 0, %v651
      %v653 = vrot.slane %v466, %v652
      %v655 = vadd.f32 %v633, %v653
      %v656 = vadd.f32 %v634, %v653
      %v657 = vadd.f32 %v635, %v653
      %v658 = vadd.f32 %v636, %v653
      %v659 = vadd.f32 %v637, %v653
      %v660 = vadd.f32 %v638, %v653
      %v661 = vadd.f32 %v639, %v653
      %v662 = vadd.f32 %v640, %v653
      %v663 = vadd.f32 %v641, %v653
      %v664 = vadd.f32 %v642, %v653
      %v665 = vadd.f32 %v643, %v653
      %v666 = vadd.f32 %v644, %v653
      %v667 = vadd.f32 %v645, %v653
      %v668 = vadd.f32 %v646, %v653
      %v669 = vadd.f32 %v647, %v653
      %v670 = vadd.f32 %v648, %v653
      %v671 = vmax.f32 %v655, 0.0
      %v672 = vmax.f32 %v656, 0.0
      %v673 = vmax.f32 %v657, 0.0
      %v674 = vmax.f32 %v658, 0.0
      %v675 = vmax.f32 %v659, 0.0
      %v676 = vmax.f32 %v660, 0.0
      %v677 = vmax.f32 %v661, 0.0
      %v678 = vmax.f32 %v662, 0.0
      %v679 = vmax.f32 %v663, 0.0
      %v680 = vmax.f32 %v664, 0.0
      %v681 = vmax.f32 %v665, 0.0
      %v682 = vmax.f32 %v666, 0.0
      %v683 = vmax.f32 %v667, 0.0
      %v684 = vmax.f32 %v668, 0.0
      %v685 = vmax.f32 %v669, 0.0
      %v686 = vmax.f32 %v670, 0.0
      %s687 = scalar_lea.vmem [#allocation2], 16
      %688 = vst.msk [vmem:[%s687 + $0x1] sm:$0xff] %vm442, %v671
      %689 = vst.msk [vmem:[%s687 + $0x11] sm:$0xff] %vm442, %v672
      %690 = vst.msk [vmem:[%s687 + $0x21] sm:$0xff] %vm442, %v673
      %691 = vst.msk [vmem:[%s687 + $0x31] sm:$0xff] %vm442, %v674
      %692 = vst.msk [vmem:[%s687 + $0x41] sm:$0xff] %vm442, %v675
      %693 = vst.msk [vmem:[%s687 + $0x51] sm:$0xff] %vm442, %v676
      %694 = vst.msk [vmem:[%s687 + $0x61] sm:$0xff] %vm442, %v677
      %695 = vst.msk [vmem:[%s687 + $0x71] sm:$0xff] %vm442, %v678
      %696 = vst.msk [vmem:[%s687 + $0x241] sm:$0xff] %vm442, %v679
      %697 = vst.msk [vmem:[%s687 + $0x251] sm:$0xff] %vm442, %v680
      %698 = vst.msk [vmem:[%s687 + $0x261] sm:$0xff] %vm442, %v681
      %699 = vst.msk [vmem:[%s687 + $0x271] sm:$0xff] %vm442, %v682
      %700 = vst.msk [vmem:[%s687 + $0x281] sm:$0xff] %vm442, %v683
      %701 = vst.msk [vmem:[%s687 + $0x291] sm:$0xff] %vm442, %v684
      %702 = vst.msk [vmem:[%s687 + $0x2a1] sm:$0xff] %vm442, %v685
      %703 = vst.msk [vmem:[%s687 + $0x2b1] sm:$0xff] %vm442, %v686
      %s704 = scalar_lea.vmem %s359, 160
      %v705 = vld [vmem:[%s704 + $0x1] sm:$0xff]
      %v706 = vld [vmem:[%s704 + $0x11] sm:$0xff]
      %v707 = vld [vmem:[%s704 + $0x21] sm:$0xff]
      %v708 = vld [vmem:[%s704 + $0x31] sm:$0xff]
      %v709 = vld [vmem:[%s704 + $0x41] sm:$0xff]
      %v710 = vld [vmem:[%s704 + $0x51] sm:$0xff]
      %v711 = vld [vmem:[%s704 + $0x61] sm:$0xff]
      %v712 = vld [vmem:[%s704 + $0x71] sm:$0xff]
      %v713 = vld [vmem:[%s704 + $0x241] sm:$0xff]
      %v714 = vld [vmem:[%s704 + $0x251] sm:$0xff]
      %v715 = vld [vmem:[%s704 + $0x261] sm:$0xff]
      %v716 = vld [vmem:[%s704 + $0x271] sm:$0xff]
      %v717 = vld [vmem:[%s704 + $0x281] sm:$0xff]
      %v718 = vld [vmem:[%s704 + $0x291] sm:$0xff]
      %v719 = vld [vmem:[%s704 + $0x2a1] sm:$0xff]
      %v720 = vld [vmem:[%s704 + $0x2b1] sm:$0xff]
      %v721 = vpack.c.bf16 %v706, %v705
      %v722 = vpack.c.bf16 %v708, %v707
      %v723 = vpack.c.bf16 %v710, %v709
      %v724 = vpack.c.bf16 %v712, %v711
      %v725 = vpack.c.bf16 %v714, %v713
      %v726 = vpack.c.bf16 %v716, %v715
      %v727 = vpack.c.bf16 %v718, %v717
      %v728 = vpack.c.bf16 %v720, %v719
      %v730 = vsel %vm501, %v721, 0
      %v733 = vsel %vm501, %v722, 0
      %v736 = vsel %vm501, %v723, 0
      %v739 = vsel %vm501, %v724, 0
      %v742 = vsel %vm501, %v725, 0
      %v745 = vsel %vm501, %v726, 0
      %v748 = vsel %vm501, %v727, 0
      %v751 = vsel %vm501, %v728, 0
      %753 = vmatprep.subr.bf16.mxu0 0
      %754 = vmatpush1.bf16.msra.mxu0 0
      %755 = vmatprep.subr.bf16.mxu0 0
      %756 = vmatpush1.bf16.msra.mxu0 0
      %757 = vmatprep.subr.bf16.mxu0 0
      %758 = vmatpush1.bf16.msra.mxu0 0
      %759 = vmatprep.subr.bf16.mxu0 0
      %760 = vmatpush1.bf16.msra.mxu0 0
      %761 = vmatprep.subr.bf16.mxu0 0
      %762 = vmatpush1.bf16.msra.mxu0 0
      %763 = vmatprep.subr.bf16.mxu0 0
      %764 = vmatpush1.bf16.msra.mxu0 0
      %765 = vmatprep.subr.bf16.mxu0 0
      %766 = vmatpush1.bf16.msra.mxu0 %v528
      %767 = vmatprep.subr.bf16.mxu0 0
      %768 = vmatpush1.bf16.msra.mxu0 %v498
      %769 = vmatprep.subr.bf16.mxu0 0
      %770 = vmatpush2.bf16.msra.mxu0 0
      %771 = vmatprep.subr.bf16.mxu0 0
      %772 = vmatpush2.bf16.msra.mxu0 0
      %773 = vmatprep.subr.bf16.mxu0 0
      %774 = vmatpush2.bf16.msra.mxu0 0
      %775 = vmatprep.subr.bf16.mxu0 0
      %776 = vmatpush2.bf16.msra.mxu0 0
      %777 = vmatprep.subr.bf16.mxu0 0
      %778 = vmatpush2.bf16.msra.mxu0 0
      %779 = vmatprep.subr.bf16.mxu0 0
      %780 = vmatpush2.bf16.msra.mxu0 0
      %781 = vmatprep.subr.bf16.mxu0 0
      %782 = vmatpush2.bf16.msra.mxu0 0
      %783 = vmatprep.subr.bf16.mxu0 0
      %784 = vmatpush2.bf16.msra.mxu0 0
      %785 = vmatprep.mubr.bf16.mxu0 0
      %786 = vmatmul.mubr.bf16.gmra.mxu0 %v730
      %v787 = vpop.f32.mrf.mxu0
      %v788 = vadd.f32 0.0, %v787
      %v789 = vpop.f32.mrf.mxu0
      %v790 = vpop.f32.mrf.mxu0
      %v791 = vadd.f32 0.0, %v790
      %v792 = vpop.f32.mrf.mxu0
      %793 = vmatprep.mubr.bf16.mxu0 0
      %794 = vmatmul.mubr.bf16.gmra.mxu0 %v733
      %v795 = vpop.f32.mrf.mxu0
      %v796 = vadd.f32 0.0, %v795
      %v797 = vpop.f32.mrf.mxu0
      %v798 = vpop.f32.mrf.mxu0
      %v799 = vadd.f32 0.0, %v798
      %v800 = vpop.f32.mrf.mxu0
      %801 = vmatprep.mubr.bf16.mxu0 0
      %802 = vmatmul.mubr.bf16.gmra.mxu0 %v736
      %v803 = vpop.f32.mrf.mxu0
      %v804 = vadd.f32 0.0, %v803
      %v805 = vpop.f32.mrf.mxu0
      %v806 = vpop.f32.mrf.mxu0
      %v807 = vadd.f32 0.0, %v806
      %v808 = vpop.f32.mrf.mxu0
      %809 = vmatprep.mubr.bf16.mxu0 0
      %810 = vmatmul.mubr.bf16.gmra.mxu0 %v739
      %v811 = vpop.f32.mrf.mxu0
      %v812 = vadd.f32 0.0, %v811
      %v813 = vpop.f32.mrf.mxu0
      %v814 = vpop.f32.mrf.mxu0
      %v815 = vadd.f32 0.0, %v814
      %v816 = vpop.f32.mrf.mxu0
      %817 = vmatprep.mubr.bf16.mxu0 0
      %818 = vmatmul.mubr.bf16.gmra.mxu0 %v742
      %v819 = vpop.f32.mrf.mxu0
      %v820 = vadd.f32 0.0, %v819
      %v821 = vpop.f32.mrf.mxu0
      %v822 = vpop.f32.mrf.mxu0
      %v823 = vadd.f32 0.0, %v822
      %v824 = vpop.f32.mrf.mxu0
      %825 = vmatprep.mubr.bf16.mxu0 0
      %826 = vmatmul.mubr.bf16.gmra.mxu0 %v745
      %v827 = vpop.f32.mrf.mxu0
      %v828 = vadd.f32 0.0, %v827
      %v829 = vpop.f32.mrf.mxu0
      %v830 = vpop.f32.mrf.mxu0
      %v831 = vadd.f32 0.0, %v830
      %v832 = vpop.f32.mrf.mxu0
      %833 = vmatprep.mubr.bf16.mxu0 0
      %834 = vmatmul.mubr.bf16.gmra.mxu0 %v748
      %v835 = vpop.f32.mrf.mxu0
      %v836 = vadd.f32 0.0, %v835
      %v837 = vpop.f32.mrf.mxu0
      %v838 = vpop.f32.mrf.mxu0
      %v839 = vadd.f32 0.0, %v838
      %v840 = vpop.f32.mrf.mxu0
      %841 = vmatprep.mubr.bf16.mxu0 0
      %842 = vmatmul.mubr.bf16.gmra.mxu0 %v751
      %v843 = vpop.f32.mrf.mxu0
      %v844 = vadd.f32 0.0, %v843
      %v845 = vpop.f32.mrf.mxu0
      %v846 = vpop.f32.mrf.mxu0
      %v847 = vadd.f32 0.0, %v846
      %v848 = vpop.f32.mrf.mxu0
      %849 = vdwg.mxu0
      %v850 = vmul.f32 %v788, %v631
      %v851 = vmul.f32 %v791, %v631
      %v852 = vmul.f32 %v796, %v631
      %v853 = vmul.f32 %v799, %v631
      %v854 = vmul.f32 %v804, %v631
      %v855 = vmul.f32 %v807, %v631
      %v856 = vmul.f32 %v812, %v631
      %v857 = vmul.f32 %v815, %v631
      %v858 = vmul.f32 %v820, %v631
      %v859 = vmul.f32 %v823, %v631
      %v860 = vmul.f32 %v828, %v631
      %v861 = vmul.f32 %v831, %v631
      %v862 = vmul.f32 %v836, %v631
      %v863 = vmul.f32 %v839, %v631
      %v864 = vmul.f32 %v844, %v631
      %v865 = vmul.f32 %v847, %v631
      %v866 = vadd.f32 %v850, %v653
      %v867 = vadd.f32 %v851, %v653
      %v868 = vadd.f32 %v852, %v653
      %v869 = vadd.f32 %v853, %v653
      %v870 = vadd.f32 %v854, %v653
      %v871 = vadd.f32 %v855, %v653
      %v872 = vadd.f32 %v856, %v653
      %v873 = vadd.f32 %v857, %v653
      %v874 = vadd.f32 %v858, %v653
      %v875 = vadd.f32 %v859, %v653
      %v876 = vadd.f32 %v860, %v653
      %v877 = vadd.f32 %v861, %v653
      %v878 = vadd.f32 %v862, %v653
      %v879 = vadd.f32 %v863, %v653
      %v880 = vadd.f32 %v864, %v653
      %v881 = vadd.f32 %v865, %v653
      %v882 = vmax.f32 %v866, 0.0
      %v883 = vmax.f32 %v867, 0.0
      %v884 = vmax.f32 %v868, 0.0
      %v885 = vmax.f32 %v869, 0.0
      %v886 = vmax.f32 %v870, 0.0
      %v887 = vmax.f32 %v871, 0.0
      %v888 = vmax.f32 %v872, 0.0
      %v889 = vmax.f32 %v873, 0.0
      %v890 = vmax.f32 %v874, 0.0
      %v891 = vmax.f32 %v875, 0.0
      %v892 = vmax.f32 %v876, 0.0
      %v893 = vmax.f32 %v877, 0.0
      %v894 = vmax.f32 %v878, 0.0
      %v895 = vmax.f32 %v879, 0.0
      %v896 = vmax.f32 %v880, 0.0
      %v897 = vmax.f32 %v881, 0.0
      %s898 = scalar_lea.vmem [#allocation2], 160
      %899 = vst.msk [vmem:[%s898 + $0x1] sm:$0xff] %vm442, %v882
      %900 = vst.msk [vmem:[%s898 + $0x11] sm:$0xff] %vm442, %v883
      %901 = vst.msk [vmem:[%s898 + $0x21] sm:$0xff] %vm442, %v884
      %902 = vst.msk [vmem:[%s898 + $0x31] sm:$0xff] %vm442, %v885
      %903 = vst.msk [vmem:[%s898 + $0x41] sm:$0xff] %vm442, %v886
      %904 = vst.msk [vmem:[%s898 + $0x51] sm:$0xff] %vm442, %v887
      %905 = vst.msk [vmem:[%s898 + $0x61] sm:$0xff] %vm442, %v888
      %906 = vst.msk [vmem:[%s898 + $0x71] sm:$0xff] %vm442, %v889
      %907 = vst.msk [vmem:[%s898 + $0x241] sm:$0xff] %vm442, %v890
      %908 = vst.msk [vmem:[%s898 + $0x251] sm:$0xff] %vm442, %v891
      %909 = vst.msk [vmem:[%s898 + $0x261] sm:$0xff] %vm442, %v892
      %910 = vst.msk [vmem:[%s898 + $0x271] sm:$0xff] %vm442, %v893
      %911 = vst.msk [vmem:[%s898 + $0x281] sm:$0xff] %vm442, %v894
      %912 = vst.msk [vmem:[%s898 + $0x291] sm:$0xff] %vm442, %v895
      %913 = vst.msk [vmem:[%s898 + $0x2a1] sm:$0xff] %vm442, %v896
      %914 = vst.msk [vmem:[%s898 + $0x2b1] sm:$0xff] %vm442, %v897
      %s915 = scalar_lea.vmem %s359, 304
      %v916 = vld [vmem:[%s915 + $0x1] sm:$0xff]
      %v917 = vld [vmem:[%s915 + $0x11] sm:$0xff]
      %v918 = vld [vmem:[%s915 + $0x21] sm:$0xff]
      %v919 = vld [vmem:[%s915 + $0x31] sm:$0xff]
      %v920 = vld [vmem:[%s915 + $0x41] sm:$0xff]
      %v921 = vld [vmem:[%s915 + $0x51] sm:$0xff]
      %v922 = vld [vmem:[%s915 + $0x61] sm:$0xff]
      %v923 = vld [vmem:[%s915 + $0x71] sm:$0xff]
      %v924 = vld [vmem:[%s915 + $0x241] sm:$0xff]
      %v925 = vld [vmem:[%s915 + $0x251] sm:$0xff]
      %v926 = vld [vmem:[%s915 + $0x261] sm:$0xff]
      %v927 = vld [vmem:[%s915 + $0x271] sm:$0xff]
      %v928 = vld [vmem:[%s915 + $0x281] sm:$0xff]
      %v929 = vld [vmem:[%s915 + $0x291] sm:$0xff]
      %v930 = vld [vmem:[%s915 + $0x2a1] sm:$0xff]
      %v931 = vld [vmem:[%s915 + $0x2b1] sm:$0xff]
      %v932 = vpack.c.bf16 %v917, %v916
      %v933 = vpack.c.bf16 %v919, %v918
      %v934 = vpack.c.bf16 %v921, %v920
      %v935 = vpack.c.bf16 %v923, %v922
      %v936 = vpack.c.bf16 %v925, %v924
      %v937 = vpack.c.bf16 %v927, %v926
      %v938 = vpack.c.bf16 %v929, %v928
      %v939 = vpack.c.bf16 %v931, %v930
      %v941 = vsel %vm501, %v932, 0
      %v944 = vsel %vm501, %v933, 0
      %v947 = vsel %vm501, %v934, 0
      %v950 = vsel %vm501, %v935, 0
      %v953 = vsel %vm501, %v936, 0
      %v956 = vsel %vm501, %v937, 0
      %v959 = vsel %vm501, %v938, 0
      %v962 = vsel %vm501, %v939, 0
      %964 = vmatprep.subr.bf16.mxu0 0
      %965 = vmatpush1.bf16.msra.mxu0 0
      %966 = vmatprep.subr.bf16.mxu0 0
      %967 = vmatpush1.bf16.msra.mxu0 0
      %968 = vmatprep.subr.bf16.mxu0 0
      %969 = vmatpush1.bf16.msra.mxu0 0
      %970 = vmatprep.subr.bf16.mxu0 0
      %971 = vmatpush1.bf16.msra.mxu0 0
      %972 = vmatprep.subr.bf16.mxu0 0
      %973 = vmatpush1.bf16.msra.mxu0 0
      %974 = vmatprep.subr.bf16.mxu0 0
      %975 = vmatpush1.bf16.msra.mxu0 0
      %976 = vmatprep.subr.bf16.mxu0 0
      %977 = vmatpush1.bf16.msra.mxu0 %v528
      %978 = vmatprep.subr.bf16.mxu0 0
      %979 = vmatpush1.bf16.msra.mxu0 %v498
      %980 = vmatprep.subr.bf16.mxu0 0
      %981 = vmatpush2.bf16.msra.mxu0 0
      %982 = vmatprep.subr.bf16.mxu0 0
      %983 = vmatpush2.bf16.msra.mxu0 0
      %984 = vmatprep.subr.bf16.mxu0 0
      %985 = vmatpush2.bf16.msra.mxu0 0
      %986 = vmatprep.subr.bf16.mxu0 0
      %987 = vmatpush2.bf16.msra.mxu0 0
      %988 = vmatprep.subr.bf16.mxu0 0
      %989 = vmatpush2.bf16.msra.mxu0 0
      %990 = vmatprep.subr.bf16.mxu0 0
      %991 = vmatpush2.bf16.msra.mxu0 0
      %992 = vmatprep.subr.bf16.mxu0 0
      %993 = vmatpush2.bf16.msra.mxu0 0
      %994 = vmatprep.subr.bf16.mxu0 0
      %995 = vmatpush2.bf16.msra.mxu0 0
      %996 = vmatprep.mubr.bf16.mxu0 0
      %997 = vmatmul.mubr.bf16.gmra.mxu0 %v941
      %v998 = vpop.f32.mrf.mxu0
      %v999 = vadd.f32 0.0, %v998
      %v1000 = vpop.f32.mrf.mxu0
      %v1001 = vpop.f32.mrf.mxu0
      %v1002 = vadd.f32 0.0, %v1001
      %v1003 = vpop.f32.mrf.mxu0
      %1004 = vmatprep.mubr.bf16.mxu0 0
      %1005 = vmatmul.mubr.bf16.gmra.mxu0 %v944
      %v1006 = vpop.f32.mrf.mxu0
      %v1007 = vadd.f32 0.0, %v1006
      %v1008 = vpop.f32.mrf.mxu0
      %v1009 = vpop.f32.mrf.mxu0
      %v1010 = vadd.f32 0.0, %v1009
      %v1011 = vpop.f32.mrf.mxu0
      %1012 = vmatprep.mubr.bf16.mxu0 0
      %1013 = vmatmul.mubr.bf16.gmra.mxu0 %v947
      %v1014 = vpop.f32.mrf.mxu0
      %v1015 = vadd.f32 0.0, %v1014
      %v1016 = vpop.f32.mrf.mxu0
      %v1017 = vpop.f32.mrf.mxu0
      %v1018 = vadd.f32 0.0, %v1017
      %v1019 = vpop.f32.mrf.mxu0
      %1020 = vmatprep.mubr.bf16.mxu0 0
      %1021 = vmatmul.mubr.bf16.gmra.mxu0 %v950
      %v1022 = vpop.f32.mrf.mxu0
      %v1023 = vadd.f32 0.0, %v1022
      %v1024 = vpop.f32.mrf.mxu0
      %v1025 = vpop.f32.mrf.mxu0
      %v1026 = vadd.f32 0.0, %v1025
      %v1027 = vpop.f32.mrf.mxu0
      %1028 = vmatprep.mubr.bf16.mxu0 0
      %1029 = vmatmul.mubr.bf16.gmra.mxu0 %v953
      %v1030 = vpop.f32.mrf.mxu0
      %v1031 = vadd.f32 0.0, %v1030
      %v1032 = vpop.f32.mrf.mxu0
      %v1033 = vpop.f32.mrf.mxu0
      %v1034 = vadd.f32 0.0, %v1033
      %v1035 = vpop.f32.mrf.mxu0
      %1036 = vmatprep.mubr.bf16.mxu0 0
      %1037 = vmatmul.mubr.bf16.gmra.mxu0 %v956
      %v1038 = vpop.f32.mrf.mxu0
      %v1039 = vadd.f32 0.0, %v1038
      %v1040 = vpop.f32.mrf.mxu0
      %v1041 = vpop.f32.mrf.mxu0
      %v1042 = vadd.f32 0.0, %v1041
      %v1043 = vpop.f32.mrf.mxu0
      %1044 = vmatprep.mubr.bf16.mxu0 0
      %1045 = vmatmul.mubr.bf16.gmra.mxu0 %v959
      %v1046 = vpop.f32.mrf.mxu0
      %v1047 = vadd.f32 0.0, %v1046
      %v1048 = vpop.f32.mrf.mxu0
      %v1049 = vpop.f32.mrf.mxu0
      %v1050 = vadd.f32 0.0, %v1049
      %v1051 = vpop.f32.mrf.mxu0
      %1052 = vmatprep.mubr.bf16.mxu0 0
      %1053 = vmatmul.mubr.bf16.gmra.mxu0 %v962
      %v1054 = vpop.f32.mrf.mxu0
      %v1055 = vadd.f32 0.0, %v1054
      %v1056 = vpop.f32.mrf.mxu0
      %v1057 = vpop.f32.mrf.mxu0
      %v1058 = vadd.f32 0.0, %v1057
      %v1059 = vpop.f32.mrf.mxu0
      %1060 = vdwg.mxu0
      %v1061 = vmul.f32 %v999, %v631
      %v1062 = vmul.f32 %v1002, %v631
      %v1063 = vmul.f32 %v1007, %v631
      %v1064 = vmul.f32 %v1010, %v631
      %v1065 = vmul.f32 %v1015, %v631
      %v1066 = vmul.f32 %v1018, %v631
      %v1067 = vmul.f32 %v1023, %v631
      %v1068 = vmul.f32 %v1026, %v631
      %v1069 = vmul.f32 %v1031, %v631
      %v1070 = vmul.f32 %v1034, %v631
      %v1071 = vmul.f32 %v1039, %v631
      %v1072 = vmul.f32 %v1042, %v631
      %v1073 = vmul.f32 %v1047, %v631
      %v1074 = vmul.f32 %v1050, %v631
      %v1075 = vmul.f32 %v1055, %v631
      %v1076 = vmul.f32 %v1058, %v631
      %v1077 = vadd.f32 %v1061, %v653
      %v1078 = vadd.f32 %v1062, %v653
      %v1079 = vadd.f32 %v1063, %v653
      %v1080 = vadd.f32 %v1064, %v653
      %v1081 = vadd.f32 %v1065, %v653
      %v1082 = vadd.f32 %v1066, %v653
      %v1083 = vadd.f32 %v1067, %v653
      %v1084 = vadd.f32 %v1068, %v653
      %v1085 = vadd.f32 %v1069, %v653
      %v1086 = vadd.f32 %v1070, %v653
      %v1087 = vadd.f32 %v1071, %v653
      %v1088 = vadd.f32 %v1072, %v653
      %v1089 = vadd.f32 %v1073, %v653
      %v1090 = vadd.f32 %v1074, %v653
      %v1091 = vadd.f32 %v1075, %v653
      %v1092 = vadd.f32 %v1076, %v653
      %v1093 = vmax.f32 %v1077, 0.0
      %v1094 = vmax.f32 %v1078, 0.0
      %v1095 = vmax.f32 %v1079, 0.0
      %v1096 = vmax.f32 %v1080, 0.0
      %v1097 = vmax.f32 %v1081, 0.0
      %v1098 = vmax.f32 %v1082, 0.0
      %v1099 = vmax.f32 %v1083, 0.0
      %v1100 = vmax.f32 %v1084, 0.0
      %v1101 = vmax.f32 %v1085, 0.0
      %v1102 = vmax.f32 %v1086, 0.0
      %v1103 = vmax.f32 %v1087, 0.0
      %v1104 = vmax.f32 %v1088, 0.0
      %v1105 = vmax.f32 %v1089, 0.0
      %v1106 = vmax.f32 %v1090, 0.0
      %v1107 = vmax.f32 %v1091, 0.0
      %v1108 = vmax.f32 %v1092, 0.0
      %s1109 = scalar_lea.vmem [#allocation2], 304
      %1110 = vst.msk [vmem:[%s1109 + $0x1] sm:$0xff] %vm442, %v1093
      %1111 = vst.msk [vmem:[%s1109 + $0x11] sm:$0xff] %vm442, %v1094
      %1112 = vst.msk [vmem:[%s1109 + $0x21] sm:$0xff] %vm442, %v1095
      %1113 = vst.msk [vmem:[%s1109 + $0x31] sm:$0xff] %vm442, %v1096
      %1114 = vst.msk [vmem:[%s1109 + $0x41] sm:$0xff] %vm442, %v1097
      %1115 = vst.msk [vmem:[%s1109 + $0x51] sm:$0xff] %vm442, %v1098
      %1116 = vst.msk [vmem:[%s1109 + $0x61] sm:$0xff] %vm442, %v1099
      %1117 = vst.msk [vmem:[%s1109 + $0x71] sm:$0xff] %vm442, %v1100
      %1118 = vst.msk [vmem:[%s1109 + $0x241] sm:$0xff] %vm442, %v1101
      %1119 = vst.msk [vmem:[%s1109 + $0x251] sm:$0xff] %vm442, %v1102
      %1120 = vst.msk [vmem:[%s1109 + $0x261] sm:$0xff] %vm442, %v1103
      %1121 = vst.msk [vmem:[%s1109 + $0x271] sm:$0xff] %vm442, %v1104
      %1122 = vst.msk [vmem:[%s1109 + $0x281] sm:$0xff] %vm442, %v1105
      %1123 = vst.msk [vmem:[%s1109 + $0x291] sm:$0xff] %vm442, %v1106
      %1124 = vst.msk [vmem:[%s1109 + $0x2a1] sm:$0xff] %vm442, %v1107
      %1125 = vst.msk [vmem:[%s1109 + $0x2b1] sm:$0xff] %vm442, %v1108
      %s1126 = scalar_lea.vmem %s359, 448
      %v1127 = vld [vmem:[%s1126 + $0x1] sm:$0xff]
      %v1128 = vld [vmem:[%s1126 + $0x11] sm:$0xff]
      %v1129 = vld [vmem:[%s1126 + $0x21] sm:$0xff]
      %v1130 = vld [vmem:[%s1126 + $0x31] sm:$0xff]
      %v1131 = vld [vmem:[%s1126 + $0x41] sm:$0xff]
      %v1132 = vld [vmem:[%s1126 + $0x51] sm:$0xff]
      %v1133 = vld [vmem:[%s1126 + $0x61] sm:$0xff]
      %v1134 = vld [vmem:[%s1126 + $0x71] sm:$0xff]
      %v1135 = vld [vmem:[%s1126 + $0x241] sm:$0xff]
      %v1136 = vld [vmem:[%s1126 + $0x251] sm:$0xff]
      %v1137 = vld [vmem:[%s1126 + $0x261] sm:$0xff]
      %v1138 = vld [vmem:[%s1126 + $0x271] sm:$0xff]
      %v1139 = vld [vmem:[%s1126 + $0x281] sm:$0xff]
      %v1140 = vld [vmem:[%s1126 + $0x291] sm:$0xff]
      %v1141 = vld [vmem:[%s1126 + $0x2a1] sm:$0xff]
      %v1142 = vld [vmem:[%s1126 + $0x2b1] sm:$0xff]
      %v1143 = vpack.c.bf16 %v1128, %v1127
      %v1144 = vpack.c.bf16 %v1130, %v1129
      %v1145 = vpack.c.bf16 %v1132, %v1131
      %v1146 = vpack.c.bf16 %v1134, %v1133
      %v1147 = vpack.c.bf16 %v1136, %v1135
      %v1148 = vpack.c.bf16 %v1138, %v1137
      %v1149 = vpack.c.bf16 %v1140, %v1139
      %v1150 = vpack.c.bf16 %v1142, %v1141
      %v1152 = vsel %vm501, %v1143, 0
      %v1155 = vsel %vm501, %v1144, 0
      %v1158 = vsel %vm501, %v1145, 0
      %v1161 = vsel %vm501, %v1146, 0
      %v1164 = vsel %vm501, %v1147, 0
      %v1167 = vsel %vm501, %v1148, 0
      %v1170 = vsel %vm501, %v1149, 0
      %v1173 = vsel %vm501, %v1150, 0
      %1175 = vmatprep.subr.bf16.mxu0 0
      %1176 = vmatpush1.bf16.msra.mxu0 0
      %1177 = vmatprep.subr.bf16.mxu0 0
      %1178 = vmatpush1.bf16.msra.mxu0 0
      %1179 = vmatprep.subr.bf16.mxu0 0
      %1180 = vmatpush1.bf16.msra.mxu0 0
      %1181 = vmatprep.subr.bf16.mxu0 0
      %1182 = vmatpush1.bf16.msra.mxu0 0
      %1183 = vmatprep.subr.bf16.mxu0 0
      %1184 = vmatpush1.bf16.msra.mxu0 0
      %1185 = vmatprep.subr.bf16.mxu0 0
      %1186 = vmatpush1.bf16.msra.mxu0 0
      %1187 = vmatprep.subr.bf16.mxu0 0
      %1188 = vmatpush1.bf16.msra.mxu0 %v528
      %1189 = vmatprep.subr.bf16.mxu0 0
      %1190 = vmatpush1.bf16.msra.mxu0 %v498
      %1191 = vmatprep.subr.bf16.mxu0 0
      %1192 = vmatpush2.bf16.msra.mxu0 0
      %1193 = vmatprep.subr.bf16.mxu0 0
      %1194 = vmatpush2.bf16.msra.mxu0 0
      %1195 = vmatprep.subr.bf16.mxu0 0
      %1196 = vmatpush2.bf16.msra.mxu0 0
      %1197 = vmatprep.subr.bf16.mxu0 0
      %1198 = vmatpush2.bf16.msra.mxu0 0
      %1199 = vmatprep.subr.bf16.mxu0 0
      %1200 = vmatpush2.bf16.msra.mxu0 0
      %1201 = vmatprep.subr.bf16.mxu0 0
      %1202 = vmatpush2.bf16.msra.mxu0 0
      %1203 = vmatprep.subr.bf16.mxu0 0
      %1204 = vmatpush2.bf16.msra.mxu0 0
      %1205 = vmatprep.subr.bf16.mxu0 0
      %1206 = vmatpush2.bf16.msra.mxu0 0
      %1207 = vmatprep.mubr.bf16.mxu0 0
      %1208 = vmatmul.mubr.bf16.gmra.mxu0 %v1152
      %v1209 = vpop.f32.mrf.mxu0
      %v1210 = vadd.f32 0.0, %v1209
      %v1211 = vpop.f32.mrf.mxu0
      %v1212 = vpop.f32.mrf.mxu0
      %v1213 = vadd.f32 0.0, %v1212
      %v1214 = vpop.f32.mrf.mxu0
      %1215 = vmatprep.mubr.bf16.mxu0 0
      %1216 = vmatmul.mubr.bf16.gmra.mxu0 %v1155
      %v1217 = vpop.f32.mrf.mxu0
      %v1218 = vadd.f32 0.0, %v1217
      %v1219 = vpop.f32.mrf.mxu0
      %v1220 = vpop.f32.mrf.mxu0
      %v1221 = vadd.f32 0.0, %v1220
      %v1222 = vpop.f32.mrf.mxu0
      %1223 = vmatprep.mubr.bf16.mxu0 0
      %1224 = vmatmul.mubr.bf16.gmra.mxu0 %v1158
      %v1225 = vpop.f32.mrf.mxu0
      %v1226 = vadd.f32 0.0, %v1225
      %v1227 = vpop.f32.mrf.mxu0
      %v1228 = vpop.f32.mrf.mxu0
      %v1229 = vadd.f32 0.0, %v1228
      %v1230 = vpop.f32.mrf.mxu0
      %1231 = vmatprep.mubr.bf16.mxu0 0
      %1232 = vmatmul.mubr.bf16.gmra.mxu0 %v1161
      %v1233 = vpop.f32.mrf.mxu0
      %v1234 = vadd.f32 0.0, %v1233
      %v1235 = vpop.f32.mrf.mxu0
      %v1236 = vpop.f32.mrf.mxu0
      %v1237 = vadd.f32 0.0, %v1236
      %v1238 = vpop.f32.mrf.mxu0
      %1239 = vmatprep.mubr.bf16.mxu0 0
      %1240 = vmatmul.mubr.bf16.gmra.mxu0 %v1164
      %v1241 = vpop.f32.mrf.mxu0
      %v1242 = vadd.f32 0.0, %v1241
      %v1243 = vpop.f32.mrf.mxu0
      %v1244 = vpop.f32.mrf.mxu0
      %v1245 = vadd.f32 0.0, %v1244
      %v1246 = vpop.f32.mrf.mxu0
      %1247 = vmatprep.mubr.bf16.mxu0 0
      %1248 = vmatmul.mubr.bf16.gmra.mxu0 %v1167
      %v1249 = vpop.f32.mrf.mxu0
      %v1250 = vadd.f32 0.0, %v1249
      %v1251 = vpop.f32.mrf.mxu0
      %v1252 = vpop.f32.mrf.mxu0
      %v1253 = vadd.f32 0.0, %v1252
      %v1254 = vpop.f32.mrf.mxu0
      %1255 = vmatprep.mubr.bf16.mxu0 0
      %1256 = vmatmul.mubr.bf16.gmra.mxu0 %v1170
      %v1257 = vpop.f32.mrf.mxu0
      %v1258 = vadd.f32 0.0, %v1257
      %v1259 = vpop.f32.mrf.mxu0
      %v1260 = vpop.f32.mrf.mxu0
      %v1261 = vadd.f32 0.0, %v1260
      %v1262 = vpop.f32.mrf.mxu0
      %1263 = vmatprep.mubr.bf16.mxu0 0
      %1264 = vmatmul.mubr.bf16.gmra.mxu0 %v1173
      %v1265 = vpop.f32.mrf.mxu0
      %v1266 = vadd.f32 0.0, %v1265
      %v1267 = vpop.f32.mrf.mxu0
      %v1268 = vpop.f32.mrf.mxu0
      %v1269 = vadd.f32 0.0, %v1268
      %v1270 = vpop.f32.mrf.mxu0
      %1271 = vdwg.mxu0
      %v1272 = vmul.f32 %v1210, %v631
      %v1273 = vmul.f32 %v1213, %v631
      %v1274 = vmul.f32 %v1218, %v631
      %v1275 = vmul.f32 %v1221, %v631
      %v1276 = vmul.f32 %v1226, %v631
      %v1277 = vmul.f32 %v1229, %v631
      %v1278 = vmul.f32 %v1234, %v631
      %v1279 = vmul.f32 %v1237, %v631
      %v1280 = vmul.f32 %v1242, %v631
      %v1281 = vmul.f32 %v1245, %v631
      %v1282 = vmul.f32 %v1250, %v631
      %v1283 = vmul.f32 %v1253, %v631
      %v1284 = vmul.f32 %v1258, %v631
      %v1285 = vmul.f32 %v1261, %v631
      %v1286 = vmul.f32 %v1266, %v631
      %v1287 = vmul.f32 %v1269, %v631
      %v1288 = vadd.f32 %v1272, %v653
      %v1289 = vadd.f32 %v1273, %v653
      %v1290 = vadd.f32 %v1274, %v653
      %v1291 = vadd.f32 %v1275, %v653
      %v1292 = vadd.f32 %v1276, %v653
      %v1293 = vadd.f32 %v1277, %v653
      %v1294 = vadd.f32 %v1278, %v653
      %v1295 = vadd.f32 %v1279, %v653
      %v1296 = vadd.f32 %v1280, %v653
      %v1297 = vadd.f32 %v1281, %v653
      %v1298 = vadd.f32 %v1282, %v653
      %v1299 = vadd.f32 %v1283, %v653
      %v1300 = vadd.f32 %v1284, %v653
      %v1301 = vadd.f32 %v1285, %v653
      %v1302 = vadd.f32 %v1286, %v653
      %v1303 = vadd.f32 %v1287, %v653
      %v1304 = vmax.f32 %v1288, 0.0
      %v1305 = vmax.f32 %v1289, 0.0
      %v1306 = vmax.f32 %v1290, 0.0
      %v1307 = vmax.f32 %v1291, 0.0
      %v1308 = vmax.f32 %v1292, 0.0
      %v1309 = vmax.f32 %v1293, 0.0
      %v1310 = vmax.f32 %v1294, 0.0
      %v1311 = vmax.f32 %v1295, 0.0
      %v1312 = vmax.f32 %v1296, 0.0
      %v1313 = vmax.f32 %v1297, 0.0
      %v1314 = vmax.f32 %v1298, 0.0
      %v1315 = vmax.f32 %v1299, 0.0
      %v1316 = vmax.f32 %v1300, 0.0
      %v1317 = vmax.f32 %v1301, 0.0
      %v1318 = vmax.f32 %v1302, 0.0
      %v1319 = vmax.f32 %v1303, 0.0
      %s1320 = scalar_lea.vmem [#allocation2], 448
      %1321 = vst.msk [vmem:[%s1320 + $0x1] sm:$0xff] %vm442, %v1304
      %1322 = vst.msk [vmem:[%s1320 + $0x11] sm:$0xff] %vm442, %v1305
      %1323 = vst.msk [vmem:[%s1320 + $0x21] sm:$0xff] %vm442, %v1306
      %1324 = vst.msk [vmem:[%s1320 + $0x31] sm:$0xff] %vm442, %v1307
      %1325 = vst.msk [vmem:[%s1320 + $0x41] sm:$0xff] %vm442, %v1308
      %1326 = vst.msk [vmem:[%s1320 + $0x51] sm:$0xff] %vm442, %v1309
      %1327 = vst.msk [vmem:[%s1320 + $0x61] sm:$0xff] %vm442, %v1310
      %1328 = vst.msk [vmem:[%s1320 + $0x71] sm:$0xff] %vm442, %v1311
      %1329 = vst.msk [vmem:[%s1320 + $0x241] sm:$0xff] %vm442, %v1312
      %1330 = vst.msk [vmem:[%s1320 + $0x251] sm:$0xff] %vm442, %v1313
      %1331 = vst.msk [vmem:[%s1320 + $0x261] sm:$0xff] %vm442, %v1314
      %1332 = vst.msk [vmem:[%s1320 + $0x271] sm:$0xff] %vm442, %v1315
      %1333 = vst.msk [vmem:[%s1320 + $0x281] sm:$0xff] %vm442, %v1316
      %1334 = vst.msk [vmem:[%s1320 + $0x291] sm:$0xff] %vm442, %v1317
      %1335 = vst.msk [vmem:[%s1320 + $0x2a1] sm:$0xff] %vm442, %v1318
      %1336 = vst.msk [vmem:[%s1320 + $0x2b1] sm:$0xff] %vm442, %v1319
      %v1337 = vld [vmem:[%s4] sm:$0xff]
      %v1338 = vld [vmem:[%s4 + $0x8] sm:$0x1]
      %v1339 = vld [vmem:[%s457] sm:$0xff]
      %v1340 = vld [vmem:[%s457 + $0x10] sm:$0xff]
      %v1341 = vld [vmem:[%s457 + $0x20] sm:$0xff]
      %v1342 = vld [vmem:[%s457 + $0x30] sm:$0xff]
      %v1343 = vld [vmem:[%s457 + $0x40] sm:$0xff]
      %v1344 = vld [vmem:[%s457 + $0x50] sm:$0xff]
      %v1345 = vld [vmem:[%s457 + $0x60] sm:$0xff]
      %v1346 = vld [vmem:[%s457 + $0x70] sm:$0xff]
      %v1347 = vld [vmem:[%s457 + $0x240] sm:$0xff]
      %v1348 = vld [vmem:[%s457 + $0x250] sm:$0xff]
      %v1349 = vld [vmem:[%s457 + $0x260] sm:$0xff]
      %v1350 = vld [vmem:[%s457 + $0x270] sm:$0xff]
      %v1351 = vld [vmem:[%s457 + $0x280] sm:$0xff]
      %v1352 = vld [vmem:[%s457 + $0x290] sm:$0xff]
      %v1353 = vld [vmem:[%s457 + $0x2a0] sm:$0xff]
      %v1354 = vld [vmem:[%s457 + $0x2b0] sm:$0xff]
      %v1355 = vlaneseq
      %v1356 = vshrl.u32 %v1355, 7
      %v1357 = vsub.s32 0, %v1356
      %v1358 = vrot.slane %v1337, %v1357
      %v1359 = vmul.f32 %v1339, %v1358
      %v1360 = vmul.f32 %v1340, %v1358
      %v1361 = vmul.f32 %v1341, %v1358
      %v1362 = vmul.f32 %v1342, %v1358
      %v1363 = vmul.f32 %v1343, %v1358
      %v1364 = vmul.f32 %v1344, %v1358
      %v1365 = vmul.f32 %v1345, %v1358
      %v1366 = vmul.f32 %v1346, %v1358
      %v1367 = vmul.f32 %v1347, %v1358
      %v1368 = vmul.f32 %v1348, %v1358
      %v1369 = vmul.f32 %v1349, %v1358
      %v1370 = vmul.f32 %v1350, %v1358
      %v1371 = vmul.f32 %v1351, %v1358
      %v1372 = vmul.f32 %v1352, %v1358
      %v1373 = vmul.f32 %v1353, %v1358
      %v1374 = vmul.f32 %v1354, %v1358
      %v1375 = vadd.f32 %v1359, 0.0
      %v1376 = vadd.f32 %v1360, 0.0
      %v1377 = vadd.f32 %v1361, 0.0
      %v1378 = vadd.f32 %v1362, 0.0
      %v1379 = vadd.f32 %v1363, 0.0
      %v1380 = vadd.f32 %v1364, 0.0
      %v1381 = vadd.f32 %v1365, 0.0
      %v1382 = vadd.f32 %v1366, 0.0
      %v1383 = vadd.f32 %v1367, 0.0
      %v1384 = vadd.f32 %v1368, 0.0
      %v1385 = vadd.f32 %v1369, 0.0
      %v1386 = vadd.f32 %v1370, 0.0
      %v1387 = vadd.f32 %v1371, 0.0
      %v1388 = vadd.f32 %v1372, 0.0
      %v1389 = vadd.f32 %v1373, 0.0
      %v1390 = vadd.f32 %v1374, 0.0
      %v1391 = vld [vmem:[%s452 + $0x1] sm:$0xff]
      %v1392 = vld [vmem:[%s452 + $0x11] sm:$0xff]
      %v1393 = vld [vmem:[%s452 + $0x21] sm:$0xff]
      %v1394 = vld [vmem:[%s452 + $0x31] sm:$0xff]
      %v1395 = vld [vmem:[%s452 + $0x41] sm:$0xff]
      %v1396 = vld [vmem:[%s452 + $0x51] sm:$0xff]
      %v1397 = vld [vmem:[%s452 + $0x61] sm:$0xff]
      %v1398 = vld [vmem:[%s452 + $0x71] sm:$0xff]
      %v1399 = vld [vmem:[%s452 + $0x241] sm:$0xff]
      %v1400 = vld [vmem:[%s452 + $0x251] sm:$0xff]
      %v1401 = vld [vmem:[%s452 + $0x261] sm:$0xff]
      %v1402 = vld [vmem:[%s452 + $0x271] sm:$0xff]
      %v1403 = vld [vmem:[%s452 + $0x281] sm:$0xff]
      %v1404 = vld [vmem:[%s452 + $0x291] sm:$0xff]
      %v1405 = vld [vmem:[%s452 + $0x2a1] sm:$0xff]
      %v1406 = vld [vmem:[%s452 + $0x2b1] sm:$0xff]
      %v1407 = vlaneseq
      %v1408 = vshrl.u32 %v1407, 7
      %v1409 = vsub.s32 1, %v1408
      %v1410 = vrot.slane %v1337, %v1409
      %v1411 = vmul.f32 %v1391, %v1410
      %v1412 = vmul.f32 %v1392, %v1410
      %v1413 = vmul.f32 %v1393, %v1410
      %v1414 = vmul.f32 %v1394, %v1410
      %v1415 = vmul.f32 %v1395, %v1410
      %v1416 = vmul.f32 %v1396, %v1410
      %v1417 = vmul.f32 %v1397, %v1410
      %v1418 = vmul.f32 %v1398, %v1410
      %v1419 = vmul.f32 %v1399, %v1410
      %v1420 = vmul.f32 %v1400, %v1410
      %v1421 = vmul.f32 %v1401, %v1410
      %v1422 = vmul.f32 %v1402, %v1410
      %v1423 = vmul.f32 %v1403, %v1410
      %v1424 = vmul.f32 %v1404, %v1410
      %v1425 = vmul.f32 %v1405, %v1410
      %v1426 = vmul.f32 %v1406, %v1410
      %v1427 = vadd.f32 %v1375, %v1411
      %v1428 = vadd.f32 %v1376, %v1412
      %v1429 = vadd.f32 %v1377, %v1413
      %v1430 = vadd.f32 %v1378, %v1414
      %v1431 = vadd.f32 %v1379, %v1415
      %v1432 = vadd.f32 %v1380, %v1416
      %v1433 = vadd.f32 %v1381, %v1417
      %v1434 = vadd.f32 %v1382, %v1418
      %v1435 = vadd.f32 %v1383, %v1419
      %v1436 = vadd.f32 %v1384, %v1420
      %v1437 = vadd.f32 %v1385, %v1421
      %v1438 = vadd.f32 %v1386, %v1422
      %v1439 = vadd.f32 %v1387, %v1423
      %v1440 = vadd.f32 %v1388, %v1424
      %v1441 = vadd.f32 %v1389, %v1425
      %v1442 = vadd.f32 %v1390, %v1426
      %v1443 = vld [vmem:[%s457 + $0x1] sm:$0xff]
      %v1444 = vld [vmem:[%s457 + $0x11] sm:$0xff]
      %v1445 = vld [vmem:[%s457 + $0x21] sm:$0xff]
      %v1446 = vld [vmem:[%s457 + $0x31] sm:$0xff]
      %v1447 = vld [vmem:[%s457 + $0x41] sm:$0xff]
      %v1448 = vld [vmem:[%s457 + $0x51] sm:$0xff]
      %v1449 = vld [vmem:[%s457 + $0x61] sm:$0xff]
      %v1450 = vld [vmem:[%s457 + $0x71] sm:$0xff]
      %v1451 = vld [vmem:[%s457 + $0x241] sm:$0xff]
      %v1452 = vld [vmem:[%s457 + $0x251] sm:$0xff]
      %v1453 = vld [vmem:[%s457 + $0x261] sm:$0xff]
      %v1454 = vld [vmem:[%s457 + $0x271] sm:$0xff]
      %v1455 = vld [vmem:[%s457 + $0x281] sm:$0xff]
      %v1456 = vld [vmem:[%s457 + $0x291] sm:$0xff]
      %v1457 = vld [vmem:[%s457 + $0x2a1] sm:$0xff]
      %v1458 = vld [vmem:[%s457 + $0x2b1] sm:$0xff]
      %v1459 = vlaneseq
      %v1460 = vshrl.u32 %v1459, 7
      %v1461 = vsub.s32 2, %v1460
      %v1462 = vrot.slane %v1337, %v1461
      %v1463 = vmul.f32 %v1443, %v1462
      %v1464 = vmul.f32 %v1444, %v1462
      %v1465 = vmul.f32 %v1445, %v1462
      %v1466 = vmul.f32 %v1446, %v1462
      %v1467 = vmul.f32 %v1447, %v1462
      %v1468 = vmul.f32 %v1448, %v1462
      %v1469 = vmul.f32 %v1449, %v1462
      %v1470 = vmul.f32 %v1450, %v1462
      %v1471 = vmul.f32 %v1451, %v1462
      %v1472 = vmul.f32 %v1452, %v1462
      %v1473 = vmul.f32 %v1453, %v1462
      %v1474 = vmul.f32 %v1454, %v1462
      %v1475 = vmul.f32 %v1455, %v1462
      %v1476 = vmul.f32 %v1456, %v1462
      %v1477 = vmul.f32 %v1457, %v1462
      %v1478 = vmul.f32 %v1458, %v1462
      %v1479 = vadd.f32 %v1427, %v1463
      %v1480 = vadd.f32 %v1428, %v1464
      %v1481 = vadd.f32 %v1429, %v1465
      %v1482 = vadd.f32 %v1430, %v1466
      %v1483 = vadd.f32 %v1431, %v1467
      %v1484 = vadd.f32 %v1432, %v1468
      %v1485 = vadd.f32 %v1433, %v1469
      %v1486 = vadd.f32 %v1434, %v1470
      %v1487 = vadd.f32 %v1435, %v1471
      %v1488 = vadd.f32 %v1436, %v1472
      %v1489 = vadd.f32 %v1437, %v1473
      %v1490 = vadd.f32 %v1438, %v1474
      %v1491 = vadd.f32 %v1439, %v1475
      %v1492 = vadd.f32 %v1440, %v1476
      %v1493 = vadd.f32 %v1441, %v1477
      %v1494 = vadd.f32 %v1442, %v1478
      %v1495 = vld [vmem:[%s898] sm:$0xff]
      %v1496 = vld [vmem:[%s898 + $0x10] sm:$0xff]
      %v1497 = vld [vmem:[%s898 + $0x20] sm:$0xff]
      %v1498 = vld [vmem:[%s898 + $0x30] sm:$0xff]
      %v1499 = vld [vmem:[%s898 + $0x40] sm:$0xff]
      %v1500 = vld [vmem:[%s898 + $0x50] sm:$0xff]
      %v1501 = vld [vmem:[%s898 + $0x60] sm:$0xff]
      %v1502 = vld [vmem:[%s898 + $0x70] sm:$0xff]
      %v1503 = vld [vmem:[%s898 + $0x240] sm:$0xff]
      %v1504 = vld [vmem:[%s898 + $0x250] sm:$0xff]
      %v1505 = vld [vmem:[%s898 + $0x260] sm:$0xff]
      %v1506 = vld [vmem:[%s898 + $0x270] sm:$0xff]
      %v1507 = vld [vmem:[%s898 + $0x280] sm:$0xff]
      %v1508 = vld [vmem:[%s898 + $0x290] sm:$0xff]
      %v1509 = vld [vmem:[%s898 + $0x2a0] sm:$0xff]
      %v1510 = vld [vmem:[%s898 + $0x2b0] sm:$0xff]
      %v1511 = vlaneseq
      %v1512 = vshrl.u32 %v1511, 7
      %v1513 = vsub.s32 3, %v1512
      %v1514 = vrot.slane %v1337, %v1513
      %v1515 = vmul.f32 %v1495, %v1514
      %v1516 = vmul.f32 %v1496, %v1514
      %v1517 = vmul.f32 %v1497, %v1514
      %v1518 = vmul.f32 %v1498, %v1514
      %v1519 = vmul.f32 %v1499, %v1514
      %v1520 = vmul.f32 %v1500, %v1514
      %v1521 = vmul.f32 %v1501, %v1514
      %v1522 = vmul.f32 %v1502, %v1514
      %v1523 = vmul.f32 %v1503, %v1514
      %v1524 = vmul.f32 %v1504, %v1514
      %v1525 = vmul.f32 %v1505, %v1514
      %v1526 = vmul.f32 %v1506, %v1514
      %v1527 = vmul.f32 %v1507, %v1514
      %v1528 = vmul.f32 %v1508, %v1514
      %v1529 = vmul.f32 %v1509, %v1514
      %v1530 = vmul.f32 %v1510, %v1514
      %v1531 = vadd.f32 %v1479, %v1515
      %v1532 = vadd.f32 %v1480, %v1516
      %v1533 = vadd.f32 %v1481, %v1517
      %v1534 = vadd.f32 %v1482, %v1518
      %v1535 = vadd.f32 %v1483, %v1519
      %v1536 = vadd.f32 %v1484, %v1520
      %v1537 = vadd.f32 %v1485, %v1521
      %v1538 = vadd.f32 %v1486, %v1522
      %v1539 = vadd.f32 %v1487, %v1523
      %v1540 = vadd.f32 %v1488, %v1524
      %v1541 = vadd.f32 %v1489, %v1525
      %v1542 = vadd.f32 %v1490, %v1526
      %v1543 = vadd.f32 %v1491, %v1527
      %v1544 = vadd.f32 %v1492, %v1528
      %v1545 = vadd.f32 %v1493, %v1529
      %v1546 = vadd.f32 %v1494, %v1530
      %v1547 = vld [vmem:[%s687 + $0x1] sm:$0xff]
      %v1548 = vld [vmem:[%s687 + $0x11] sm:$0xff]
      %v1549 = vld [vmem:[%s687 + $0x21] sm:$0xff]
      %v1550 = vld [vmem:[%s687 + $0x31] sm:$0xff]
      %v1551 = vld [vmem:[%s687 + $0x41] sm:$0xff]
      %v1552 = vld [vmem:[%s687 + $0x51] sm:$0xff]
      %v1553 = vld [vmem:[%s687 + $0x61] sm:$0xff]
      %v1554 = vld [vmem:[%s687 + $0x71] sm:$0xff]
      %v1555 = vld [vmem:[%s687 + $0x241] sm:$0xff]
      %v1556 = vld [vmem:[%s687 + $0x251] sm:$0xff]
      %v1557 = vld [vmem:[%s687 + $0x261] sm:$0xff]
      %v1558 = vld [vmem:[%s687 + $0x271] sm:$0xff]
      %v1559 = vld [vmem:[%s687 + $0x281] sm:$0xff]
      %v1560 = vld [vmem:[%s687 + $0x291] sm:$0xff]
      %v1561 = vld [vmem:[%s687 + $0x2a1] sm:$0xff]
      %v1562 = vld [vmem:[%s687 + $0x2b1] sm:$0xff]
      %v1563 = vlaneseq
      %v1564 = vshrl.u32 %v1563, 7
      %v1565 = vsub.s32 4, %v1564
      %v1566 = vrot.slane %v1337, %v1565
      %v1567 = vmul.f32 %v1547, %v1566
      %v1568 = vmul.f32 %v1548, %v1566
      %v1569 = vmul.f32 %v1549, %v1566
      %v1570 = vmul.f32 %v1550, %v1566
      %v1571 = vmul.f32 %v1551, %v1566
      %v1572 = vmul.f32 %v1552, %v1566
      %v1573 = vmul.f32 %v1553, %v1566
      %v1574 = vmul.f32 %v1554, %v1566
      %v1575 = vmul.f32 %v1555, %v1566
      %v1576 = vmul.f32 %v1556, %v1566
      %v1577 = vmul.f32 %v1557, %v1566
      %v1578 = vmul.f32 %v1558, %v1566
      %v1579 = vmul.f32 %v1559, %v1566
      %v1580 = vmul.f32 %v1560, %v1566
      %v1581 = vmul.f32 %v1561, %v1566
      %v1582 = vmul.f32 %v1562, %v1566
      %v1583 = vadd.f32 %v1531, %v1567
      %v1584 = vadd.f32 %v1532, %v1568
      %v1585 = vadd.f32 %v1533, %v1569
      %v1586 = vadd.f32 %v1534, %v1570
      %v1587 = vadd.f32 %v1535, %v1571
      %v1588 = vadd.f32 %v1536, %v1572
      %v1589 = vadd.f32 %v1537, %v1573
      %v1590 = vadd.f32 %v1538, %v1574
      %v1591 = vadd.f32 %v1539, %v1575
      %v1592 = vadd.f32 %v1540, %v1576
      %v1593 = vadd.f32 %v1541, %v1577
      %v1594 = vadd.f32 %v1542, %v1578
      %v1595 = vadd.f32 %v1543, %v1579
      %v1596 = vadd.f32 %v1544, %v1580
      %v1597 = vadd.f32 %v1545, %v1581
      %v1598 = vadd.f32 %v1546, %v1582
      %v1599 = vld [vmem:[%s898 + $0x1] sm:$0xff]
      %v1600 = vld [vmem:[%s898 + $0x11] sm:$0xff]
      %v1601 = vld [vmem:[%s898 + $0x21] sm:$0xff]
      %v1602 = vld [vmem:[%s898 + $0x31] sm:$0xff]
      %v1603 = vld [vmem:[%s898 + $0x41] sm:$0xff]
      %v1604 = vld [vmem:[%s898 + $0x51] sm:$0xff]
      %v1605 = vld [vmem:[%s898 + $0x61] sm:$0xff]
      %v1606 = vld [vmem:[%s898 + $0x71] sm:$0xff]
      %v1607 = vld [vmem:[%s898 + $0x241] sm:$0xff]
      %v1608 = vld [vmem:[%s898 + $0x251] sm:$0xff]
      %v1609 = vld [vmem:[%s898 + $0x261] sm:$0xff]
      %v1610 = vld [vmem:[%s898 + $0x271] sm:$0xff]
      %v1611 = vld [vmem:[%s898 + $0x281] sm:$0xff]
      %v1612 = vld [vmem:[%s898 + $0x291] sm:$0xff]
      %v1613 = vld [vmem:[%s898 + $0x2a1] sm:$0xff]
      %v1614 = vld [vmem:[%s898 + $0x2b1] sm:$0xff]
      %v1615 = vlaneseq
      %v1616 = vshrl.u32 %v1615, 7
      %v1617 = vsub.s32 5, %v1616
      %v1618 = vrot.slane %v1337, %v1617
      %v1619 = vmul.f32 %v1599, %v1618
      %v1620 = vmul.f32 %v1600, %v1618
      %v1621 = vmul.f32 %v1601, %v1618
      %v1622 = vmul.f32 %v1602, %v1618
      %v1623 = vmul.f32 %v1603, %v1618
      %v1624 = vmul.f32 %v1604, %v1618
      %v1625 = vmul.f32 %v1605, %v1618
      %v1626 = vmul.f32 %v1606, %v1618
      %v1627 = vmul.f32 %v1607, %v1618
      %v1628 = vmul.f32 %v1608, %v1618
      %v1629 = vmul.f32 %v1609, %v1618
      %v1630 = vmul.f32 %v1610, %v1618
      %v1631 = vmul.f32 %v1611, %v1618
      %v1632 = vmul.f32 %v1612, %v1618
      %v1633 = vmul.f32 %v1613, %v1618
      %v1634 = vmul.f32 %v1614, %v1618
      %v1635 = vadd.f32 %v1583, %v1619
      %v1636 = vadd.f32 %v1584, %v1620
      %v1637 = vadd.f32 %v1585, %v1621
      %v1638 = vadd.f32 %v1586, %v1622
      %v1639 = vadd.f32 %v1587, %v1623
      %v1640 = vadd.f32 %v1588, %v1624
      %v1641 = vadd.f32 %v1589, %v1625
      %v1642 = vadd.f32 %v1590, %v1626
      %v1643 = vadd.f32 %v1591, %v1627
      %v1644 = vadd.f32 %v1592, %v1628
      %v1645 = vadd.f32 %v1593, %v1629
      %v1646 = vadd.f32 %v1594, %v1630
      %v1647 = vadd.f32 %v1595, %v1631
      %v1648 = vadd.f32 %v1596, %v1632
      %v1649 = vadd.f32 %v1597, %v1633
      %v1650 = vadd.f32 %v1598, %v1634
      %v1651 = vld [vmem:[%s1320] sm:$0xff]
      %v1652 = vld [vmem:[%s1320 + $0x10] sm:$0xff]
      %v1653 = vld [vmem:[%s1320 + $0x20] sm:$0xff]
      %v1654 = vld [vmem:[%s1320 + $0x30] sm:$0xff]
      %v1655 = vld [vmem:[%s1320 + $0x40] sm:$0xff]
      %v1656 = vld [vmem:[%s1320 + $0x50] sm:$0xff]
      %v1657 = vld [vmem:[%s1320 + $0x60] sm:$0xff]
      %v1658 = vld [vmem:[%s1320 + $0x70] sm:$0xff]
      %v1659 = vld [vmem:[%s1320 + $0x240] sm:$0xff]
      %v1660 = vld [vmem:[%s1320 + $0x250] sm:$0xff]
      %v1661 = vld [vmem:[%s1320 + $0x260] sm:$0xff]
      %v1662 = vld [vmem:[%s1320 + $0x270] sm:$0xff]
      %v1663 = vld [vmem:[%s1320 + $0x280] sm:$0xff]
      %v1664 = vld [vmem:[%s1320 + $0x290] sm:$0xff]
      %v1665 = vld [vmem:[%s1320 + $0x2a0] sm:$0xff]
      %v1666 = vld [vmem:[%s1320 + $0x2b0] sm:$0xff]
      %v1667 = vlaneseq
      %v1668 = vshrl.u32 %v1667, 7
      %v1669 = vsub.s32 6, %v1668
      %v1670 = vrot.slane %v1337, %v1669
      %v1671 = vmul.f32 %v1651, %v1670
      %v1672 = vmul.f32 %v1652, %v1670
      %v1673 = vmul.f32 %v1653, %v1670
      %v1674 = vmul.f32 %v1654, %v1670
      %v1675 = vmul.f32 %v1655, %v1670
      %v1676 = vmul.f32 %v1656, %v1670
      %v1677 = vmul.f32 %v1657, %v1670
      %v1678 = vmul.f32 %v1658, %v1670
      %v1679 = vmul.f32 %v1659, %v1670
      %v1680 = vmul.f32 %v1660, %v1670
      %v1681 = vmul.f32 %v1661, %v1670
      %v1682 = vmul.f32 %v1662, %v1670
      %v1683 = vmul.f32 %v1663, %v1670
      %v1684 = vmul.f32 %v1664, %v1670
      %v1685 = vmul.f32 %v1665, %v1670
      %v1686 = vmul.f32 %v1666, %v1670
      %v1687 = vadd.f32 %v1635, %v1671
      %v1688 = vadd.f32 %v1636, %v1672
      %v1689 = vadd.f32 %v1637, %v1673
      %v1690 = vadd.f32 %v1638, %v1674
      %v1691 = vadd.f32 %v1639, %v1675
      %v1692 = vadd.f32 %v1640, %v1676
      %v1693 = vadd.f32 %v1641, %v1677
      %v1694 = vadd.f32 %v1642, %v1678
      %v1695 = vadd.f32 %v1643, %v1679
      %v1696 = vadd.f32 %v1644, %v1680
      %v1697 = vadd.f32 %v1645, %v1681
      %v1698 = vadd.f32 %v1646, %v1682
      %v1699 = vadd.f32 %v1647, %v1683
      %v1700 = vadd.f32 %v1648, %v1684
      %v1701 = vadd.f32 %v1649, %v1685
      %v1702 = vadd.f32 %v1650, %v1686
      %v1703 = vld [vmem:[%s1109 + $0x1] sm:$0xff]
      %v1704 = vld [vmem:[%s1109 + $0x11] sm:$0xff]
      %v1705 = vld [vmem:[%s1109 + $0x21] sm:$0xff]
      %v1706 = vld [vmem:[%s1109 + $0x31] sm:$0xff]
      %v1707 = vld [vmem:[%s1109 + $0x41] sm:$0xff]
      %v1708 = vld [vmem:[%s1109 + $0x51] sm:$0xff]
      %v1709 = vld [vmem:[%s1109 + $0x61] sm:$0xff]
      %v1710 = vld [vmem:[%s1109 + $0x71] sm:$0xff]
      %v1711 = vld [vmem:[%s1109 + $0x241] sm:$0xff]
      %v1712 = vld [vmem:[%s1109 + $0x251] sm:$0xff]
      %v1713 = vld [vmem:[%s1109 + $0x261] sm:$0xff]
      %v1714 = vld [vmem:[%s1109 + $0x271] sm:$0xff]
      %v1715 = vld [vmem:[%s1109 + $0x281] sm:$0xff]
      %v1716 = vld [vmem:[%s1109 + $0x291] sm:$0xff]
      %v1717 = vld [vmem:[%s1109 + $0x2a1] sm:$0xff]
      %v1718 = vld [vmem:[%s1109 + $0x2b1] sm:$0xff]
      %v1719 = vlaneseq
      %v1720 = vshrl.u32 %v1719, 7
      %v1721 = vsub.s32 7, %v1720
      %v1722 = vrot.slane %v1337, %v1721
      %v1723 = vmul.f32 %v1703, %v1722
      %v1724 = vmul.f32 %v1704, %v1722
      %v1725 = vmul.f32 %v1705, %v1722
      %v1726 = vmul.f32 %v1706, %v1722
      %v1727 = vmul.f32 %v1707, %v1722
      %v1728 = vmul.f32 %v1708, %v1722
      %v1729 = vmul.f32 %v1709, %v1722
      %v1730 = vmul.f32 %v1710, %v1722
      %v1731 = vmul.f32 %v1711, %v1722
      %v1732 = vmul.f32 %v1712, %v1722
      %v1733 = vmul.f32 %v1713, %v1722
      %v1734 = vmul.f32 %v1714, %v1722
      %v1735 = vmul.f32 %v1715, %v1722
      %v1736 = vmul.f32 %v1716, %v1722
      %v1737 = vmul.f32 %v1717, %v1722
      %v1738 = vmul.f32 %v1718, %v1722
      %v1739 = vadd.f32 %v1687, %v1723
      %v1740 = vadd.f32 %v1688, %v1724
      %v1741 = vadd.f32 %v1689, %v1725
      %v1742 = vadd.f32 %v1690, %v1726
      %v1743 = vadd.f32 %v1691, %v1727
      %v1744 = vadd.f32 %v1692, %v1728
      %v1745 = vadd.f32 %v1693, %v1729
      %v1746 = vadd.f32 %v1694, %v1730
      %v1747 = vadd.f32 %v1695, %v1731
      %v1748 = vadd.f32 %v1696, %v1732
      %v1749 = vadd.f32 %v1697, %v1733
      %v1750 = vadd.f32 %v1698, %v1734
      %v1751 = vadd.f32 %v1699, %v1735
      %v1752 = vadd.f32 %v1700, %v1736
      %v1753 = vadd.f32 %v1701, %v1737
      %v1754 = vadd.f32 %v1702, %v1738
      %v1755 = vld [vmem:[%s1320 + $0x1] sm:$0xff]
      %v1756 = vld [vmem:[%s1320 + $0x11] sm:$0xff]
      %v1757 = vld [vmem:[%s1320 + $0x21] sm:$0xff]
      %v1758 = vld [vmem:[%s1320 + $0x31] sm:$0xff]
      %v1759 = vld [vmem:[%s1320 + $0x41] sm:$0xff]
      %v1760 = vld [vmem:[%s1320 + $0x51] sm:$0xff]
      %v1761 = vld [vmem:[%s1320 + $0x61] sm:$0xff]
      %v1762 = vld [vmem:[%s1320 + $0x71] sm:$0xff]
      %v1763 = vld [vmem:[%s1320 + $0x241] sm:$0xff]
      %v1764 = vld [vmem:[%s1320 + $0x251] sm:$0xff]
      %v1765 = vld [vmem:[%s1320 + $0x261] sm:$0xff]
      %v1766 = vld [vmem:[%s1320 + $0x271] sm:$0xff]
      %v1767 = vld [vmem:[%s1320 + $0x281] sm:$0xff]
      %v1768 = vld [vmem:[%s1320 + $0x291] sm:$0xff]
      %v1769 = vld [vmem:[%s1320 + $0x2a1] sm:$0xff]
      %v1770 = vld [vmem:[%s1320 + $0x2b1] sm:$0xff]
      %v1771 = vlaneseq
      %v1772 = vshrl.u32 %v1771, 7
      %v1773 = vsub.s32 0, %v1772
      %v1774 = vrot.slane %v1338, %v1773
      %v1775 = vmul.f32 %v1755, %v1774
      %v1776 = vmul.f32 %v1756, %v1774
      %v1777 = vmul.f32 %v1757, %v1774
      %v1778 = vmul.f32 %v1758, %v1774
      %v1779 = vmul.f32 %v1759, %v1774
      %v1780 = vmul.f32 %v1760, %v1774
      %v1781 = vmul.f32 %v1761, %v1774
      %v1782 = vmul.f32 %v1762, %v1774
      %v1783 = vmul.f32 %v1763, %v1774
      %v1784 = vmul.f32 %v1764, %v1774
      %v1785 = vmul.f32 %v1765, %v1774
      %v1786 = vmul.f32 %v1766, %v1774
      %v1787 = vmul.f32 %v1767, %v1774
      %v1788 = vmul.f32 %v1768, %v1774
      %v1789 = vmul.f32 %v1769, %v1774
      %v1790 = vmul.f32 %v1770, %v1774
      %v1791 = vadd.f32 %v1739, %v1775
      %v1792 = vadd.f32 %v1740, %v1776
      %v1793 = vadd.f32 %v1741, %v1777
      %v1794 = vadd.f32 %v1742, %v1778
      %v1795 = vadd.f32 %v1743, %v1779
      %v1796 = vadd.f32 %v1744, %v1780
      %v1797 = vadd.f32 %v1745, %v1781
      %v1798 = vadd.f32 %v1746, %v1782
      %v1799 = vadd.f32 %v1747, %v1783
      %v1800 = vadd.f32 %v1748, %v1784
      %v1801 = vadd.f32 %v1749, %v1785
      %v1802 = vadd.f32 %v1750, %v1786
      %v1803 = vadd.f32 %v1751, %v1787
      %v1804 = vadd.f32 %v1752, %v1788
      %v1805 = vadd.f32 %v1753, %v1789
      %v1806 = vadd.f32 %v1754, %v1790
      %v1807 = vld [vmem:[%s5] sm:$0x1]
      %v1809 = vlaneseq
      %v1810 = vshrl.u32 %v1809, 7
      %v1811 = vsub.s32 0, %v1810
      %v1812 = vrot.slane %v1807, %v1811
      %v1814 = vmul.f32 %v1791, %v1812
      %v1815 = vmul.f32 %v1792, %v1812
      %v1816 = vmul.f32 %v1793, %v1812
      %v1817 = vmul.f32 %v1794, %v1812
      %v1818 = vmul.f32 %v1795, %v1812
      %v1819 = vmul.f32 %v1796, %v1812
      %v1820 = vmul.f32 %v1797, %v1812
      %v1821 = vmul.f32 %v1798, %v1812
      %v1822 = vmul.f32 %v1799, %v1812
      %v1823 = vmul.f32 %v1800, %v1812
      %v1824 = vmul.f32 %v1801, %v1812
      %v1825 = vmul.f32 %v1802, %v1812
      %v1826 = vmul.f32 %v1803, %v1812
      %v1827 = vmul.f32 %v1804, %v1812
      %v1828 = vmul.f32 %v1805, %v1812
      %v1829 = vmul.f32 %v1806, %v1812
      %v1830 = vld [vmem:[%s6] sm:$0x1]
      %v1832 = vlaneseq
      %v1833 = vshrl.u32 %v1832, 7
      %v1834 = vsub.s32 0, %v1833
      %v1835 = vrot.slane %v1830, %v1834
      %v1837 = vadd.f32 %v1814, %v1835
      %v1838 = vadd.f32 %v1815, %v1835
      %v1839 = vadd.f32 %v1816, %v1835
      %v1840 = vadd.f32 %v1817, %v1835
      %v1841 = vadd.f32 %v1818, %v1835
      %v1842 = vadd.f32 %v1819, %v1835
      %v1843 = vadd.f32 %v1820, %v1835
      %v1844 = vadd.f32 %v1821, %v1835
      %v1845 = vadd.f32 %v1822, %v1835
      %v1846 = vadd.f32 %v1823, %v1835
      %v1847 = vadd.f32 %v1824, %v1835
      %v1848 = vadd.f32 %v1825, %v1835
      %v1849 = vadd.f32 %v1826, %v1835
      %v1850 = vadd.f32 %v1827, %v1835
      %v1851 = vadd.f32 %v1828, %v1835
      %v1852 = vadd.f32 %v1829, %v1835
      %v1853 = vpack.c.bf16 %v1838, %v1837
      %v1854 = vpack.c.bf16 %v1840, %v1839
      %v1855 = vpack.c.bf16 %v1842, %v1841
      %v1856 = vpack.c.bf16 %v1844, %v1843
      %v1857 = vpack.c.bf16 %v1846, %v1845
      %v1858 = vpack.c.bf16 %v1848, %v1847
      %v1859 = vpack.c.bf16 %v1850, %v1849
      %v1860 = vpack.c.bf16 %v1852, %v1851
      %v1861 = vld [vmem:[%s7] sm:$0xff]
      %v1862 = vld [vmem:[%s7 + $0x8] sm:$0xff]
      %v1863 = vld [vmem:[%s7 + $0x10] sm:$0xff]
      %v1864 = vld [vmem:[%s7 + $0x18] sm:$0xff]
      %v1865 = vld [vmem:[%s7 + $0x20] sm:$0xff]
      %v1866 = vld [vmem:[%s7 + $0x28] sm:$0xff]
      %v1867 = vld [vmem:[%s7 + $0x30] sm:$0xff]
      %v1868 = vld [vmem:[%s7 + $0x38] sm:$0x33]
      %v1877 = vunpack.c.l.b16 %v1861
      %v1878 = vunpack.c.h.b16 %v1861
      %v1879 = vunpack.c.l.b16 %v1862
      %v1880 = vunpack.c.h.b16 %v1862
      %v1881 = vunpack.c.l.b16 %v1863
      %v1882 = vunpack.c.h.b16 %v1863
      %v1883 = vunpack.c.l.b16 %v1864
      %v1884 = vunpack.c.h.b16 %v1864
      %v1885 = vunpack.c.l.b16 %v1865
      %v1886 = vunpack.c.h.b16 %v1865
      %v1887 = vunpack.c.l.b16 %v1866
      %v1888 = vunpack.c.h.b16 %v1866
      %v1889 = vunpack.c.l.b16 %v1867
      %v1890 = vunpack.c.h.b16 %v1867
      %v1891 = vunpack.c.l.b16 %v1868
      %v1892 = vunpack.c.h.b16 %v1868
      %v1893 = vpack.c.b16 %v1879, %v1877
      %v1894 = vpack.c.b16 %v1880, %v1878
      %v1895 = vpack.c.b16 %v1883, %v1881
      %v1896 = vpack.c.b16 %v1884, %v1882
      %v1897 = vpack.c.b16 %v1887, %v1885
      %v1898 = vpack.c.b16 %v1888, %v1886
      %v1899 = vpack.c.b16 %v1891, %v1889
      %v1900 = vpack.c.b16 %v1892, %v1890
      %v1908 = vsel %vm442, %v1853, 0
      %v1911 = vsel %vm442, %v1854, 0
      %v1914 = vsel %vm442, %v1855, 0
      %v1917 = vsel %vm442, %v1856, 0
      %v1920 = vsel %vm442, %v1857, 0
      %v1923 = vsel %vm442, %v1858, 0
      %v1926 = vsel %vm442, %v1859, 0
      %v1929 = vsel %vm442, %v1860, 0
      %vm1931 = vcmask 1045504
      %v1933 = vsel %vm1931, %v1899, 0
      %v1936 = vsel %vm1931, %v1900, 0
      %1938 = vmatprep.subr.bf16.mxu0 0
      %1939 = vmatpush1.bf16.msra.mxu0 0
      %1940 = vmatprep.subr.bf16.mxu0 0
      %1941 = vmatpush1.bf16.msra.mxu0 0
      %1942 = vmatprep.subr.bf16.mxu0 0
      %1943 = vmatpush1.bf16.msra.mxu0 0
      %1944 = vmatprep.subr.bf16.mxu0 0
      %1945 = vmatpush1.bf16.msra.mxu0 0
      %1946 = vmatprep.subr.bf16.mxu0 %v1936
      %1947 = vmatpush1.bf16.msra.mxu0 %v1933
      %1948 = vmatprep.subr.bf16.mxu0 %v1898
      %1949 = vmatpush1.bf16.msra.mxu0 %v1897
      %1950 = vmatprep.subr.bf16.mxu0 %v1896
      %1951 = vmatpush1.bf16.msra.mxu0 %v1895
      %1952 = vmatprep.subr.bf16.mxu0 %v1894
      %1953 = vmatpush1.bf16.msra.mxu0 %v1893
      %1954 = vmatprep.subr.bf16.mxu0 0
      %1955 = vmatpush2.bf16.msra.mxu0 0
      %1956 = vmatprep.subr.bf16.mxu0 0
      %1957 = vmatpush2.bf16.msra.mxu0 0
      %1958 = vmatprep.subr.bf16.mxu0 0
      %1959 = vmatpush2.bf16.msra.mxu0 0
      %1960 = vmatprep.subr.bf16.mxu0 0
      %1961 = vmatpush2.bf16.msra.mxu0 0
      %1962 = vmatprep.subr.bf16.mxu0 0
      %1963 = vmatpush2.bf16.msra.mxu0 0
      %1964 = vmatprep.subr.bf16.mxu0 0
      %1965 = vmatpush2.bf16.msra.mxu0 0
      %1966 = vmatprep.subr.bf16.mxu0 0
      %1967 = vmatpush2.bf16.msra.mxu0 0
      %1968 = vmatprep.subr.bf16.mxu0 0
      %1969 = vmatpush2.bf16.msra.mxu0 0
      %1970 = vmatprep.mubr.bf16.mxu0 0
      %1971 = vmatmul.mubr.bf16.gmra.mxu0 %v1908
      %v1972 = vpop.f32.mrf.mxu0
      %v1973 = vadd.f32 0.0, %v1972
      %v1974 = vpop.f32.mrf.mxu0
      %v1975 = vadd.f32 0.0, %v1974
      %v1976 = vpop.f32.mrf.mxu0
      %v1977 = vadd.f32 0.0, %v1976
      %v1978 = vpop.f32.mrf.mxu0
      %v1979 = vadd.f32 0.0, %v1978
      %1980 = vmatprep.mubr.bf16.mxu0 0
      %1981 = vmatmul.mubr.bf16.gmra.mxu0 %v1911
      %v1982 = vpop.f32.mrf.mxu0
      %v1983 = vadd.f32 0.0, %v1982
      %v1984 = vpop.f32.mrf.mxu0
      %v1985 = vadd.f32 0.0, %v1984
      %v1986 = vpop.f32.mrf.mxu0
      %v1987 = vadd.f32 0.0, %v1986
      %v1988 = vpop.f32.mrf.mxu0
      %v1989 = vadd.f32 0.0, %v1988
      %1990 = vmatprep.mubr.bf16.mxu0 0
      %1991 = vmatmul.mubr.bf16.gmra.mxu0 %v1914
      %v1992 = vpop.f32.mrf.mxu0
      %v1993 = vadd.f32 0.0, %v1992
      %v1994 = vpop.f32.mrf.mxu0
      %v1995 = vadd.f32 0.0, %v1994
      %v1996 = vpop.f32.mrf.mxu0
      %v1997 = vadd.f32 0.0, %v1996
      %v1998 = vpop.f32.mrf.mxu0
      %v1999 = vadd.f32 0.0, %v1998
      %2000 = vmatprep.mubr.bf16.mxu0 0
      %2001 = vmatmul.mubr.bf16.gmra.mxu0 %v1917
      %v2002 = vpop.f32.mrf.mxu0
      %v2003 = vadd.f32 0.0, %v2002
      %v2004 = vpop.f32.mrf.mxu0
      %v2005 = vadd.f32 0.0, %v2004
      %v2006 = vpop.f32.mrf.mxu0
      %v2007 = vadd.f32 0.0, %v2006
      %v2008 = vpop.f32.mrf.mxu0
      %v2009 = vadd.f32 0.0, %v2008
      %2010 = vmatprep.mubr.bf16.mxu0 0
      %2011 = vmatmul.mubr.bf16.gmra.mxu0 %v1920
      %v2012 = vpop.f32.mrf.mxu0
      %v2013 = vadd.f32 0.0, %v2012
      %v2014 = vpop.f32.mrf.mxu0
      %v2015 = vadd.f32 0.0, %v2014
      %v2016 = vpop.f32.mrf.mxu0
      %v2017 = vadd.f32 0.0, %v2016
      %v2018 = vpop.f32.mrf.mxu0
      %v2019 = vadd.f32 0.0, %v2018
      %2020 = vmatprep.mubr.bf16.mxu0 0
      %2021 = vmatmul.mubr.bf16.gmra.mxu0 %v1923
      %v2022 = vpop.f32.mrf.mxu0
      %v2023 = vadd.f32 0.0, %v2022
      %v2024 = vpop.f32.mrf.mxu0
      %v2025 = vadd.f32 0.0, %v2024
      %v2026 = vpop.f32.mrf.mxu0
      %v2027 = vadd.f32 0.0, %v2026
      %v2028 = vpop.f32.mrf.mxu0
      %v2029 = vadd.f32 0.0, %v2028
      %2030 = vmatprep.mubr.bf16.mxu0 0
      %2031 = vmatmul.mubr.bf16.gmra.mxu0 %v1926
      %v2032 = vpop.f32.mrf.mxu0
      %v2033 = vadd.f32 0.0, %v2032
      %v2034 = vpop.f32.mrf.mxu0
      %v2035 = vadd.f32 0.0, %v2034
      %v2036 = vpop.f32.mrf.mxu0
      %v2037 = vadd.f32 0.0, %v2036
      %v2038 = vpop.f32.mrf.mxu0
      %v2039 = vadd.f32 0.0, %v2038
      %2040 = vmatprep.mubr.bf16.mxu0 0
      %2041 = vmatmul.mubr.bf16.gmra.mxu0 %v1929
      %v2042 = vpop.f32.mrf.mxu0
      %v2043 = vadd.f32 0.0, %v2042
      %v2044 = vpop.f32.mrf.mxu0
      %v2045 = vadd.f32 0.0, %v2044
      %v2046 = vpop.f32.mrf.mxu0
      %v2047 = vadd.f32 0.0, %v2046
      %v2048 = vpop.f32.mrf.mxu0
      %v2049 = vadd.f32 0.0, %v2048
      %2050 = vdwg.mxu0
      %v2051 = vld [vmem:[%s8] sm:$0x3]
      %v2053 = vlaneseq
      %v2054 = vshrl.u32 %v2053, 7
      %v2055 = vsub.s32 0, %v2054
      %v2056 = vrot.slane %v2051, %v2055
      %v2057 = vlaneseq
      %v2058 = vshrl.u32 %v2057, 7
      %v2059 = vsub.s32 1, %v2058
      %v2060 = vrot.slane %v2051, %v2059
      %v2063 = vmul.f32 %v1973, %v2056
      %v2064 = vmul.f32 %v1975, %v2060
      %v2065 = vmul.f32 %v1977, %v2056
      %v2066 = vmul.f32 %v1979, %v2060
      %v2067 = vmul.f32 %v1983, %v2056
      %v2068 = vmul.f32 %v1985, %v2060
      %v2069 = vmul.f32 %v1987, %v2056
      %v2070 = vmul.f32 %v1989, %v2060
      %v2071 = vmul.f32 %v1993, %v2056
      %v2072 = vmul.f32 %v1995, %v2060
      %v2073 = vmul.f32 %v1997, %v2056
      %v2074 = vmul.f32 %v1999, %v2060
      %v2075 = vmul.f32 %v2003, %v2056
      %v2076 = vmul.f32 %v2005, %v2060
      %v2077 = vmul.f32 %v2007, %v2056
      %v2078 = vmul.f32 %v2009, %v2060
      %v2079 = vmul.f32 %v2013, %v2056
      %v2080 = vmul.f32 %v2015, %v2060
      %v2081 = vmul.f32 %v2017, %v2056
      %v2082 = vmul.f32 %v2019, %v2060
      %v2083 = vmul.f32 %v2023, %v2056
      %v2084 = vmul.f32 %v2025, %v2060
      %v2085 = vmul.f32 %v2027, %v2056
      %v2086 = vmul.f32 %v2029, %v2060
      %v2087 = vmul.f32 %v2033, %v2056
      %v2088 = vmul.f32 %v2035, %v2060
      %v2089 = vmul.f32 %v2037, %v2056
      %v2090 = vmul.f32 %v2039, %v2060
      %v2091 = vmul.f32 %v2043, %v2056
      %v2092 = vmul.f32 %v2045, %v2060
      %v2093 = vmul.f32 %v2047, %v2056
      %v2094 = vmul.f32 %v2049, %v2060
      %v2095 = vld [vmem:[%s9] sm:$0x3]
      %v2097 = vlaneseq
      %v2098 = vshrl.u32 %v2097, 7
      %v2099 = vsub.s32 0, %v2098
      %v2100 = vrot.slane %v2095, %v2099
      %v2101 = vlaneseq
      %v2102 = vshrl.u32 %v2101, 7
      %v2103 = vsub.s32 1, %v2102
      %v2104 = vrot.slane %v2095, %v2103
      %v2107 = vadd.f32 %v2063, %v2100
      %v2108 = vadd.f32 %v2064, %v2104
      %v2109 = vadd.f32 %v2065, %v2100
      %v2110 = vadd.f32 %v2066, %v2104
      %v2111 = vadd.f32 %v2067, %v2100
      %v2112 = vadd.f32 %v2068, %v2104
      %v2113 = vadd.f32 %v2069, %v2100
      %v2114 = vadd.f32 %v2070, %v2104
      %v2115 = vadd.f32 %v2071, %v2100
      %v2116 = vadd.f32 %v2072, %v2104
      %v2117 = vadd.f32 %v2073, %v2100
      %v2118 = vadd.f32 %v2074, %v2104
      %v2119 = vadd.f32 %v2075, %v2100
      %v2120 = vadd.f32 %v2076, %v2104
      %v2121 = vadd.f32 %v2077, %v2100
      %v2122 = vadd.f32 %v2078, %v2104
      %v2123 = vadd.f32 %v2079, %v2100
      %v2124 = vadd.f32 %v2080, %v2104
      %v2125 = vadd.f32 %v2081, %v2100
      %v2126 = vadd.f32 %v2082, %v2104
      %v2127 = vadd.f32 %v2083, %v2100
      %v2128 = vadd.f32 %v2084, %v2104
      %v2129 = vadd.f32 %v2085, %v2100
      %v2130 = vadd.f32 %v2086, %v2104
      %v2131 = vadd.f32 %v2087, %v2100
      %v2132 = vadd.f32 %v2088, %v2104
      %v2133 = vadd.f32 %v2089, %v2100
      %v2134 = vadd.f32 %v2090, %v2104
      %v2135 = vadd.f32 %v2091, %v2100
      %v2136 = vadd.f32 %v2092, %v2104
      %v2137 = vadd.f32 %v2093, %v2100
      %v2138 = vadd.f32 %v2094, %v2104
      %s2139 = scalar_lea.vmem %s359, 432
      %v2140 = vld [vmem:[%s2139] sm:$0xff]
      %v2141 = vld [vmem:[%s2139 + $0x10] sm:$0xff]
      %v2142 = vld [vmem:[%s2139 + $0x20] sm:$0xff]
      %v2143 = vld [vmem:[%s2139 + $0x30] sm:$0xff]
      %v2144 = vld [vmem:[%s2139 + $0x40] sm:$0xff]
      %v2145 = vld [vmem:[%s2139 + $0x50] sm:$0xff]
      %v2146 = vld [vmem:[%s2139 + $0x60] sm:$0xff]
      %v2147 = vld [vmem:[%s2139 + $0x70] sm:$0xff]
      %v2148 = vld [vmem:[%s2139 + $0x240] sm:$0xff]
      %v2149 = vld [vmem:[%s2139 + $0x250] sm:$0xff]
      %v2150 = vld [vmem:[%s2139 + $0x260] sm:$0xff]
      %v2151 = vld [vmem:[%s2139 + $0x270] sm:$0xff]
      %v2152 = vld [vmem:[%s2139 + $0x280] sm:$0xff]
      %v2153 = vld [vmem:[%s2139 + $0x290] sm:$0xff]
      %v2154 = vld [vmem:[%s2139 + $0x2a0] sm:$0xff]
      %v2155 = vld [vmem:[%s2139 + $0x2b0] sm:$0xff]
      %v2156 = vadd.f32 %v2140, 0.0
      %v2157 = vadd.f32 %v2141, 0.0
      %v2158 = vadd.f32 %v2142, 0.0
      %v2159 = vadd.f32 %v2143, 0.0
      %v2160 = vadd.f32 %v2144, 0.0
      %v2161 = vadd.f32 %v2145, 0.0
      %v2162 = vadd.f32 %v2146, 0.0
      %v2163 = vadd.f32 %v2147, 0.0
      %v2164 = vadd.f32 %v2148, 0.0
      %v2165 = vadd.f32 %v2149, 0.0
      %v2166 = vadd.f32 %v2150, 0.0
      %v2167 = vadd.f32 %v2151, 0.0
      %v2168 = vadd.f32 %v2152, 0.0
      %v2169 = vadd.f32 %v2153, 0.0
      %v2170 = vadd.f32 %v2154, 0.0
      %v2171 = vadd.f32 %v2155, 0.0
      %s2172 = scalar_lea.vmem %s359, 288
      %v2173 = vld [vmem:[%s2172 + $0x1] sm:$0xff]
      %v2174 = vld [vmem:[%s2172 + $0x11] sm:$0xff]
      %v2175 = vld [vmem:[%s2172 + $0x21] sm:$0xff]
      %v2176 = vld [vmem:[%s2172 + $0x31] sm:$0xff]
      %v2177 = vld [vmem:[%s2172 + $0x41] sm:$0xff]
      %v2178 = vld [vmem:[%s2172 + $0x51] sm:$0xff]
      %v2179 = vld [vmem:[%s2172 + $0x61] sm:$0xff]
      %v2180 = vld [vmem:[%s2172 + $0x71] sm:$0xff]
      %v2181 = vld [vmem:[%s2172 + $0x241] sm:$0xff]
      %v2182 = vld [vmem:[%s2172 + $0x251] sm:$0xff]
      %v2183 = vld [vmem:[%s2172 + $0x261] sm:$0xff]
      %v2184 = vld [vmem:[%s2172 + $0x271] sm:$0xff]
      %v2185 = vld [vmem:[%s2172 + $0x281] sm:$0xff]
      %v2186 = vld [vmem:[%s2172 + $0x291] sm:$0xff]
      %v2187 = vld [vmem:[%s2172 + $0x2a1] sm:$0xff]
      %v2188 = vld [vmem:[%s2172 + $0x2b1] sm:$0xff]
      %v2189 = vadd.f32 %v2156, %v2173
      %v2190 = vadd.f32 %v2157, %v2174
      %v2191 = vadd.f32 %v2158, %v2175
      %v2192 = vadd.f32 %v2159, %v2176
      %v2193 = vadd.f32 %v2160, %v2177
      %v2194 = vadd.f32 %v2161, %v2178
      %v2195 = vadd.f32 %v2162, %v2179
      %v2196 = vadd.f32 %v2163, %v2180
      %v2197 = vadd.f32 %v2164, %v2181
      %v2198 = vadd.f32 %v2165, %v2182
      %v2199 = vadd.f32 %v2166, %v2183
      %v2200 = vadd.f32 %v2167, %v2184
      %v2201 = vadd.f32 %v2168, %v2185
      %v2202 = vadd.f32 %v2169, %v2186
      %v2203 = vadd.f32 %v2170, %v2187
      %v2204 = vadd.f32 %v2171, %v2188
      %v2205 = vld [vmem:[%s2139 + $0x1] sm:$0xff]
      %v2206 = vld [vmem:[%s2139 + $0x11] sm:$0xff]
      %v2207 = vld [vmem:[%s2139 + $0x21] sm:$0xff]
      %v2208 = vld [vmem:[%s2139 + $0x31] sm:$0xff]
      %v2209 = vld [vmem:[%s2139 + $0x41] sm:$0xff]
      %v2210 = vld [vmem:[%s2139 + $0x51] sm:$0xff]
      %v2211 = vld [vmem:[%s2139 + $0x61] sm:$0xff]
      %v2212 = vld [vmem:[%s2139 + $0x71] sm:$0xff]
      %v2213 = vld [vmem:[%s2139 + $0x241] sm:$0xff]
      %v2214 = vld [vmem:[%s2139 + $0x251] sm:$0xff]
      %v2215 = vld [vmem:[%s2139 + $0x261] sm:$0xff]
      %v2216 = vld [vmem:[%s2139 + $0x271] sm:$0xff]
      %v2217 = vld [vmem:[%s2139 + $0x281] sm:$0xff]
      %v2218 = vld [vmem:[%s2139 + $0x291] sm:$0xff]
      %v2219 = vld [vmem:[%s2139 + $0x2a1] sm:$0xff]
      %v2220 = vld [vmem:[%s2139 + $0x2b1] sm:$0xff]
      %v2221 = vadd.f32 %v2189, %v2205
      %v2222 = vadd.f32 %v2190, %v2206
      %v2223 = vadd.f32 %v2191, %v2207
      %v2224 = vadd.f32 %v2192, %v2208
      %v2225 = vadd.f32 %v2193, %v2209
      %v2226 = vadd.f32 %v2194, %v2210
      %v2227 = vadd.f32 %v2195, %v2211
      %v2228 = vadd.f32 %v2196, %v2212
      %v2229 = vadd.f32 %v2197, %v2213
      %v2230 = vadd.f32 %v2198, %v2214
      %v2231 = vadd.f32 %v2199, %v2215
      %v2232 = vadd.f32 %v2200, %v2216
      %v2233 = vadd.f32 %v2201, %v2217
      %v2234 = vadd.f32 %v2202, %v2218
      %v2235 = vadd.f32 %v2203, %v2219
      %v2236 = vadd.f32 %v2204, %v2220
      %v2237 = vld [vmem:[%s704] sm:$0xff]
      %v2238 = vld [vmem:[%s704 + $0x10] sm:$0xff]
      %v2239 = vld [vmem:[%s704 + $0x20] sm:$0xff]
      %v2240 = vld [vmem:[%s704 + $0x30] sm:$0xff]
      %v2241 = vld [vmem:[%s704 + $0x40] sm:$0xff]
      %v2242 = vld [vmem:[%s704 + $0x50] sm:$0xff]
      %v2243 = vld [vmem:[%s704 + $0x60] sm:$0xff]
      %v2244 = vld [vmem:[%s704 + $0x70] sm:$0xff]
      %v2245 = vld [vmem:[%s704 + $0x240] sm:$0xff]
      %v2246 = vld [vmem:[%s704 + $0x250] sm:$0xff]
      %v2247 = vld [vmem:[%s704 + $0x260] sm:$0xff]
      %v2248 = vld [vmem:[%s704 + $0x270] sm:$0xff]
      %v2249 = vld [vmem:[%s704 + $0x280] sm:$0xff]
      %v2250 = vld [vmem:[%s704 + $0x290] sm:$0xff]
      %v2251 = vld [vmem:[%s704 + $0x2a0] sm:$0xff]
      %v2252 = vld [vmem:[%s704 + $0x2b0] sm:$0xff]
      %v2253 = vadd.f32 %v2221, %v2237
      %v2254 = vadd.f32 %v2222, %v2238
      %v2255 = vadd.f32 %v2223, %v2239
      %v2256 = vadd.f32 %v2224, %v2240
      %v2257 = vadd.f32 %v2225, %v2241
      %v2258 = vadd.f32 %v2226, %v2242
      %v2259 = vadd.f32 %v2227, %v2243
      %v2260 = vadd.f32 %v2228, %v2244
      %v2261 = vadd.f32 %v2229, %v2245
      %v2262 = vadd.f32 %v2230, %v2246
      %v2263 = vadd.f32 %v2231, %v2247
      %v2264 = vadd.f32 %v2232, %v2248
      %v2265 = vadd.f32 %v2233, %v2249
      %v2266 = vadd.f32 %v2234, %v2250
      %v2267 = vadd.f32 %v2235, %v2251
      %v2268 = vadd.f32 %v2236, %v2252
      %v2269 = vld [vmem:[%s467 + $0x1] sm:$0xff]
      %v2270 = vld [vmem:[%s467 + $0x11] sm:$0xff]
      %v2271 = vld [vmem:[%s467 + $0x21] sm:$0xff]
      %v2272 = vld [vmem:[%s467 + $0x31] sm:$0xff]
      %v2273 = vld [vmem:[%s467 + $0x41] sm:$0xff]
      %v2274 = vld [vmem:[%s467 + $0x51] sm:$0xff]
      %v2275 = vld [vmem:[%s467 + $0x61] sm:$0xff]
      %v2276 = vld [vmem:[%s467 + $0x71] sm:$0xff]
      %v2277 = vld [vmem:[%s467 + $0x241] sm:$0xff]
      %v2278 = vld [vmem:[%s467 + $0x251] sm:$0xff]
      %v2279 = vld [vmem:[%s467 + $0x261] sm:$0xff]
      %v2280 = vld [vmem:[%s467 + $0x271] sm:$0xff]
      %v2281 = vld [vmem:[%s467 + $0x281] sm:$0xff]
      %v2282 = vld [vmem:[%s467 + $0x291] sm:$0xff]
      %v2283 = vld [vmem:[%s467 + $0x2a1] sm:$0xff]
      %v2284 = vld [vmem:[%s467 + $0x2b1] sm:$0xff]
      %v2285 = vadd.f32 %v2253, %v2269
      %v2286 = vadd.f32 %v2254, %v2270
      %v2287 = vadd.f32 %v2255, %v2271
      %v2288 = vadd.f32 %v2256, %v2272
      %v2289 = vadd.f32 %v2257, %v2273
      %v2290 = vadd.f32 %v2258, %v2274
      %v2291 = vadd.f32 %v2259, %v2275
      %v2292 = vadd.f32 %v2260, %v2276
      %v2293 = vadd.f32 %v2261, %v2277
      %v2294 = vadd.f32 %v2262, %v2278
      %v2295 = vadd.f32 %v2263, %v2279
      %v2296 = vadd.f32 %v2264, %v2280
      %v2297 = vadd.f32 %v2265, %v2281
      %v2298 = vadd.f32 %v2266, %v2282
      %v2299 = vadd.f32 %v2267, %v2283
      %v2300 = vadd.f32 %v2268, %v2284
      %v2301 = vld [vmem:[%s704 + $0x1] sm:$0xff]
      %v2302 = vld [vmem:[%s704 + $0x11] sm:$0xff]
      %v2303 = vld [vmem:[%s704 + $0x21] sm:$0xff]
      %v2304 = vld [vmem:[%s704 + $0x31] sm:$0xff]
      %v2305 = vld [vmem:[%s704 + $0x41] sm:$0xff]
      %v2306 = vld [vmem:[%s704 + $0x51] sm:$0xff]
      %v2307 = vld [vmem:[%s704 + $0x61] sm:$0xff]
      %v2308 = vld [vmem:[%s704 + $0x71] sm:$0xff]
      %v2309 = vld [vmem:[%s704 + $0x241] sm:$0xff]
      %v2310 = vld [vmem:[%s704 + $0x251] sm:$0xff]
      %v2311 = vld [vmem:[%s704 + $0x261] sm:$0xff]
      %v2312 = vld [vmem:[%s704 + $0x271] sm:$0xff]
      %v2313 = vld [vmem:[%s704 + $0x281] sm:$0xff]
      %v2314 = vld [vmem:[%s704 + $0x291] sm:$0xff]
      %v2315 = vld [vmem:[%s704 + $0x2a1] sm:$0xff]
      %v2316 = vld [vmem:[%s704 + $0x2b1] sm:$0xff]
      %v2317 = vadd.f32 %v2285, %v2301
      %v2318 = vadd.f32 %v2286, %v2302
      %v2319 = vadd.f32 %v2287, %v2303
      %v2320 = vadd.f32 %v2288, %v2304
      %v2321 = vadd.f32 %v2289, %v2305
      %v2322 = vadd.f32 %v2290, %v2306
      %v2323 = vadd.f32 %v2291, %v2307
      %v2324 = vadd.f32 %v2292, %v2308
      %v2325 = vadd.f32 %v2293, %v2309
      %v2326 = vadd.f32 %v2294, %v2310
      %v2327 = vadd.f32 %v2295, %v2311
      %v2328 = vadd.f32 %v2296, %v2312
      %v2329 = vadd.f32 %v2297, %v2313
      %v2330 = vadd.f32 %v2298, %v2314
      %v2331 = vadd.f32 %v2299, %v2315
      %v2332 = vadd.f32 %v2300, %v2316
      %v2333 = vld [vmem:[%s1126] sm:$0xff]
      %v2334 = vld [vmem:[%s1126 + $0x10] sm:$0xff]
      %v2335 = vld [vmem:[%s1126 + $0x20] sm:$0xff]
      %v2336 = vld [vmem:[%s1126 + $0x30] sm:$0xff]
      %v2337 = vld [vmem:[%s1126 + $0x40] sm:$0xff]
      %v2338 = vld [vmem:[%s1126 + $0x50] sm:$0xff]
      %v2339 = vld [vmem:[%s1126 + $0x60] sm:$0xff]
      %v2340 = vld [vmem:[%s1126 + $0x70] sm:$0xff]
      %v2341 = vld [vmem:[%s1126 + $0x240] sm:$0xff]
      %v2342 = vld [vmem:[%s1126 + $0x250] sm:$0xff]
      %v2343 = vld [vmem:[%s1126 + $0x260] sm:$0xff]
      %v2344 = vld [vmem:[%s1126 + $0x270] sm:$0xff]
      %v2345 = vld [vmem:[%s1126 + $0x280] sm:$0xff]
      %v2346 = vld [vmem:[%s1126 + $0x290] sm:$0xff]
      %v2347 = vld [vmem:[%s1126 + $0x2a0] sm:$0xff]
      %v2348 = vld [vmem:[%s1126 + $0x2b0] sm:$0xff]
      %v2349 = vadd.f32 %v2317, %v2333
      %v2350 = vadd.f32 %v2318, %v2334
      %v2351 = vadd.f32 %v2319, %v2335
      %v2352 = vadd.f32 %v2320, %v2336
      %v2353 = vadd.f32 %v2321, %v2337
      %v2354 = vadd.f32 %v2322, %v2338
      %v2355 = vadd.f32 %v2323, %v2339
      %v2356 = vadd.f32 %v2324, %v2340
      %v2357 = vadd.f32 %v2325, %v2341
      %v2358 = vadd.f32 %v2326, %v2342
      %v2359 = vadd.f32 %v2327, %v2343
      %v2360 = vadd.f32 %v2328, %v2344
      %v2361 = vadd.f32 %v2329, %v2345
      %v2362 = vadd.f32 %v2330, %v2346
      %v2363 = vadd.f32 %v2331, %v2347
      %v2364 = vadd.f32 %v2332, %v2348
      %v2365 = vld [vmem:[%s915 + $0x1] sm:$0xff]
      %v2366 = vld [vmem:[%s915 + $0x11] sm:$0xff]
      %v2367 = vld [vmem:[%s915 + $0x21] sm:$0xff]
      %v2368 = vld [vmem:[%s915 + $0x31] sm:$0xff]
      %v2369 = vld [vmem:[%s915 + $0x41] sm:$0xff]
      %v2370 = vld [vmem:[%s915 + $0x51] sm:$0xff]
      %v2371 = vld [vmem:[%s915 + $0x61] sm:$0xff]
      %v2372 = vld [vmem:[%s915 + $0x71] sm:$0xff]
      %v2373 = vld [vmem:[%s915 + $0x241] sm:$0xff]
      %v2374 = vld [vmem:[%s915 + $0x251] sm:$0xff]
      %v2375 = vld [vmem:[%s915 + $0x261] sm:$0xff]
      %v2376 = vld [vmem:[%s915 + $0x271] sm:$0xff]
      %v2377 = vld [vmem:[%s915 + $0x281] sm:$0xff]
      %v2378 = vld [vmem:[%s915 + $0x291] sm:$0xff]
      %v2379 = vld [vmem:[%s915 + $0x2a1] sm:$0xff]
      %v2380 = vld [vmem:[%s915 + $0x2b1] sm:$0xff]
      %v2381 = vadd.f32 %v2349, %v2365
      %v2382 = vadd.f32 %v2350, %v2366
      %v2383 = vadd.f32 %v2351, %v2367
      %v2384 = vadd.f32 %v2352, %v2368
      %v2385 = vadd.f32 %v2353, %v2369
      %v2386 = vadd.f32 %v2354, %v2370
      %v2387 = vadd.f32 %v2355, %v2371
      %v2388 = vadd.f32 %v2356, %v2372
      %v2389 = vadd.f32 %v2357, %v2373
      %v2390 = vadd.f32 %v2358, %v2374
      %v2391 = vadd.f32 %v2359, %v2375
      %v2392 = vadd.f32 %v2360, %v2376
      %v2393 = vadd.f32 %v2361, %v2377
      %v2394 = vadd.f32 %v2362, %v2378
      %v2395 = vadd.f32 %v2363, %v2379
      %v2396 = vadd.f32 %v2364, %v2380
      %v2397 = vld [vmem:[%s1126 + $0x1] sm:$0xff]
      %v2398 = vld [vmem:[%s1126 + $0x11] sm:$0xff]
      %v2399 = vld [vmem:[%s1126 + $0x21] sm:$0xff]
      %v2400 = vld [vmem:[%s1126 + $0x31] sm:$0xff]
      %v2401 = vld [vmem:[%s1126 + $0x41] sm:$0xff]
      %v2402 = vld [vmem:[%s1126 + $0x51] sm:$0xff]
      %v2403 = vld [vmem:[%s1126 + $0x61] sm:$0xff]
      %v2404 = vld [vmem:[%s1126 + $0x71] sm:$0xff]
      %v2405 = vld [vmem:[%s1126 + $0x241] sm:$0xff]
      %v2406 = vld [vmem:[%s1126 + $0x251] sm:$0xff]
      %v2407 = vld [vmem:[%s1126 + $0x261] sm:$0xff]
      %v2408 = vld [vmem:[%s1126 + $0x271] sm:$0xff]
      %v2409 = vld [vmem:[%s1126 + $0x281] sm:$0xff]
      %v2410 = vld [vmem:[%s1126 + $0x291] sm:$0xff]
      %v2411 = vld [vmem:[%s1126 + $0x2a1] sm:$0xff]
      %v2412 = vld [vmem:[%s1126 + $0x2b1] sm:$0xff]
      %v2413 = vadd.f32 %v2381, %v2397
      %v2414 = vadd.f32 %v2382, %v2398
      %v2415 = vadd.f32 %v2383, %v2399
      %v2416 = vadd.f32 %v2384, %v2400
      %v2417 = vadd.f32 %v2385, %v2401
      %v2418 = vadd.f32 %v2386, %v2402
      %v2419 = vadd.f32 %v2387, %v2403
      %v2420 = vadd.f32 %v2388, %v2404
      %v2421 = vadd.f32 %v2389, %v2405
      %v2422 = vadd.f32 %v2390, %v2406
      %v2423 = vadd.f32 %v2391, %v2407
      %v2424 = vadd.f32 %v2392, %v2408
      %v2425 = vadd.f32 %v2393, %v2409
      %v2426 = vadd.f32 %v2394, %v2410
      %v2427 = vadd.f32 %v2395, %v2411
      %v2428 = vadd.f32 %v2396, %v2412
      %v2429 = vmul.f32 %v2413, 0.11111111
      %v2430 = vmul.f32 %v2414, 0.11111111
      %v2431 = vmul.f32 %v2415, 0.11111111
      %v2432 = vmul.f32 %v2416, 0.11111111
      %v2433 = vmul.f32 %v2417, 0.11111111
      %v2434 = vmul.f32 %v2418, 0.11111111
      %v2435 = vmul.f32 %v2419, 0.11111111
      %v2436 = vmul.f32 %v2420, 0.11111111
      %v2437 = vmul.f32 %v2421, 0.11111111
      %v2438 = vmul.f32 %v2422, 0.11111111
      %v2439 = vmul.f32 %v2423, 0.11111111
      %v2440 = vmul.f32 %v2424, 0.11111111
      %v2441 = vmul.f32 %v2425, 0.11111111
      %v2442 = vmul.f32 %v2426, 0.11111111
      %v2443 = vmul.f32 %v2427, 0.11111111
      %v2444 = vmul.f32 %v2428, 0.11111111
      %2477 = vrot.lane.b32.xlu0 %v2107, 24
      %v2478 = vpop.permute.xlu0 %2477
      %2479 = vrot.lane.b32.xlu0 %v2108, 24
      %v2480 = vpop.permute.xlu0 %2479
      %2481 = vrot.lane.b32.xlu0 %v2109, 24
      %v2482 = vpop.permute.xlu0 %2481
      %2483 = vrot.lane.b32.xlu0 %v2110, 24
      %v2484 = vpop.permute.xlu0 %2483
      %2485 = vrot.lane.b32.xlu0 %v2111, 24
      %v2486 = vpop.permute.xlu0 %2485
      %2487 = vrot.lane.b32.xlu0 %v2112, 24
      %v2488 = vpop.permute.xlu0 %2487
      %2489 = vrot.lane.b32.xlu0 %v2113, 24
      %v2490 = vpop.permute.xlu0 %2489
      %2491 = vrot.lane.b32.xlu0 %v2114, 24
      %v2492 = vpop.permute.xlu0 %2491
      %2493 = vrot.lane.b32.xlu0 %v2115, 24
      %v2494 = vpop.permute.xlu0 %2493
      %2495 = vrot.lane.b32.xlu0 %v2116, 24
      %v2496 = vpop.permute.xlu0 %2495
      %2497 = vrot.lane.b32.xlu0 %v2117, 24
      %v2498 = vpop.permute.xlu0 %2497
      %2499 = vrot.lane.b32.xlu0 %v2118, 24
      %v2500 = vpop.permute.xlu0 %2499
      %2501 = vrot.lane.b32.xlu0 %v2119, 24
      %v2502 = vpop.permute.xlu0 %2501
      %2503 = vrot.lane.b32.xlu0 %v2120, 24
      %v2504 = vpop.permute.xlu0 %2503
      %2505 = vrot.lane.b32.xlu0 %v2121, 24
      %v2506 = vpop.permute.xlu0 %2505
      %2507 = vrot.lane.b32.xlu0 %v2122, 24
      %v2508 = vpop.permute.xlu0 %2507
      %2509 = vrot.lane.b32.xlu0 %v2123, 24
      %v2510 = vpop.permute.xlu0 %2509
      %2511 = vrot.lane.b32.xlu0 %v2124, 24
      %v2512 = vpop.permute.xlu0 %2511
      %2513 = vrot.lane.b32.xlu0 %v2125, 24
      %v2514 = vpop.permute.xlu0 %2513
      %2515 = vrot.lane.b32.xlu0 %v2126, 24
      %v2516 = vpop.permute.xlu0 %2515
      %2517 = vrot.lane.b32.xlu0 %v2127, 24
      %v2518 = vpop.permute.xlu0 %2517
      %2519 = vrot.lane.b32.xlu0 %v2128, 24
      %v2520 = vpop.permute.xlu0 %2519
      %2521 = vrot.lane.b32.xlu0 %v2129, 24
      %v2522 = vpop.permute.xlu0 %2521
      %2523 = vrot.lane.b32.xlu0 %v2130, 24
      %v2524 = vpop.permute.xlu0 %2523
      %2525 = vrot.lane.b32.xlu0 %v2131, 24
      %v2526 = vpop.permute.xlu0 %2525
      %2527 = vrot.lane.b32.xlu0 %v2132, 24
      %v2528 = vpop.permute.xlu0 %2527
      %2529 = vrot.lane.b32.xlu0 %v2133, 24
      %v2530 = vpop.permute.xlu0 %2529
      %2531 = vrot.lane.b32.xlu0 %v2134, 24
      %v2532 = vpop.permute.xlu0 %2531
      %2533 = vrot.lane.b32.xlu0 %v2135, 24
      %v2534 = vpop.permute.xlu0 %2533
      %2535 = vrot.lane.b32.xlu0 %v2136, 24
      %v2536 = vpop.permute.xlu0 %2535
      %2537 = vrot.lane.b32.xlu0 %v2137, 24
      %v2538 = vpop.permute.xlu0 %2537
      %2539 = vrot.lane.b32.xlu0 %v2138, 24
      %v2540 = vpop.permute.xlu0 %2539
      %v2541 = vsel %vm501, %v2478, %v2480
      %v2542 = vsel %vm501, %v2482, %v2484
      %v2543 = vsel %vm501, %v2486, %v2488
      %v2544 = vsel %vm501, %v2490, %v2492
      %v2545 = vsel %vm501, %v2494, %v2496
      %v2546 = vsel %vm501, %v2498, %v2500
      %v2547 = vsel %vm501, %v2502, %v2504
      %v2548 = vsel %vm501, %v2506, %v2508
      %v2549 = vsel %vm501, %v2510, %v2512
      %v2550 = vsel %vm501, %v2514, %v2516
      %v2551 = vsel %vm501, %v2518, %v2520
      %v2552 = vsel %vm501, %v2522, %v2524
      %v2553 = vsel %vm501, %v2526, %v2528
      %v2554 = vsel %vm501, %v2530, %v2532
      %v2555 = vsel %vm501, %v2534, %v2536
      %v2556 = vsel %vm501, %v2538, %v2540
      %v2589 = vsel %vm501, %v2429, %v2478
      %v2590 = vsel %vm501, %v2430, %v2482
      %v2591 = vsel %vm501, %v2431, %v2486
      %v2592 = vsel %vm501, %v2432, %v2490
      %v2593 = vsel %vm501, %v2433, %v2494
      %v2594 = vsel %vm501, %v2434, %v2498
      %v2595 = vsel %vm501, %v2435, %v2502
      %v2596 = vsel %vm501, %v2436, %v2506
      %v2597 = vsel %vm501, %v2437, %v2510
      %v2598 = vsel %vm501, %v2438, %v2514
      %v2599 = vsel %vm501, %v2439, %v2518
      %v2600 = vsel %vm501, %v2440, %v2522
      %v2601 = vsel %vm501, %v2441, %v2526
      %v2602 = vsel %vm501, %v2442, %v2530
      %v2603 = vsel %vm501, %v2443, %v2534
      %v2604 = vsel %vm501, %v2444, %v2538
      %v2605 = vmax.f32 %v2589, 0.0
      %v2606 = vmax.f32 %v2541, 0.0
      %v2607 = vmax.f32 %v2590, 0.0
      %v2608 = vmax.f32 %v2542, 0.0
      %v2609 = vmax.f32 %v2591, 0.0
      %v2610 = vmax.f32 %v2543, 0.0
      %v2611 = vmax.f32 %v2592, 0.0
      %v2612 = vmax.f32 %v2544, 0.0
      %v2613 = vmax.f32 %v2593, 0.0
      %v2614 = vmax.f32 %v2545, 0.0
      %v2615 = vmax.f32 %v2594, 0.0
      %v2616 = vmax.f32 %v2546, 0.0
      %v2617 = vmax.f32 %v2595, 0.0
      %v2618 = vmax.f32 %v2547, 0.0
      %v2619 = vmax.f32 %v2596, 0.0
      %v2620 = vmax.f32 %v2548, 0.0
      %v2621 = vmax.f32 %v2597, 0.0
      %v2622 = vmax.f32 %v2549, 0.0
      %v2623 = vmax.f32 %v2598, 0.0
      %v2624 = vmax.f32 %v2550, 0.0
      %v2625 = vmax.f32 %v2599, 0.0
      %v2626 = vmax.f32 %v2551, 0.0
      %v2627 = vmax.f32 %v2600, 0.0
      %v2628 = vmax.f32 %v2552, 0.0
      %v2629 = vmax.f32 %v2601, 0.0
      %v2630 = vmax.f32 %v2553, 0.0
      %v2631 = vmax.f32 %v2602, 0.0
      %v2632 = vmax.f32 %v2554, 0.0
      %v2633 = vmax.f32 %v2603, 0.0
      %v2634 = vmax.f32 %v2555, 0.0
      %v2635 = vmax.f32 %v2604, 0.0
      %v2636 = vmax.f32 %v2556, 0.0
      %2637 = vst [vmem:[%s366] sm:$0xff] %v2605
      %2638 = vst [vmem:[%s366 + $0x8] sm:$0xff] %v2606
      %2639 = vst [vmem:[%s366 + $0x10] sm:$0xff] %v2607
      %2640 = vst [vmem:[%s366 + $0x18] sm:$0xff] %v2608
      %2641 = vst [vmem:[%s366 + $0x20] sm:$0xff] %v2609
      %2642 = vst [vmem:[%s366 + $0x28] sm:$0xff] %v2610
      %2643 = vst [vmem:[%s366 + $0x30] sm:$0xff] %v2611
      %2644 = vst [vmem:[%s366 + $0x38] sm:$0xff] %v2612
      %2645 = vst [vmem:[%s366 + $0x40] sm:$0xff] %v2613
      %2646 = vst [vmem:[%s366 + $0x48] sm:$0xff] %v2614
      %2647 = vst [vmem:[%s366 + $0x50] sm:$0xff] %v2615
      %2648 = vst [vmem:[%s366 + $0x58] sm:$0xff] %v2616
      %2649 = vst [vmem:[%s366 + $0x60] sm:$0xff] %v2617
      %2650 = vst [vmem:[%s366 + $0x68] sm:$0xff] %v2618
      %2651 = vst [vmem:[%s366 + $0x70] sm:$0xff] %v2619
      %2652 = vst [vmem:[%s366 + $0x78] sm:$0xff] %v2620
      %2653 = vst [vmem:[%s366 + $0x80] sm:$0xff] %v2621
      %2654 = vst [vmem:[%s366 + $0x88] sm:$0xff] %v2622
      %2655 = vst [vmem:[%s366 + $0x90] sm:$0xff] %v2623
      %2656 = vst [vmem:[%s366 + $0x98] sm:$0xff] %v2624
      %2657 = vst [vmem:[%s366 + $0xa0] sm:$0xff] %v2625
      %2658 = vst [vmem:[%s366 + $0xa8] sm:$0xff] %v2626
      %2659 = vst [vmem:[%s366 + $0xb0] sm:$0xff] %v2627
      %2660 = vst [vmem:[%s366 + $0xb8] sm:$0xff] %v2628
      %2661 = vst [vmem:[%s366 + $0xc0] sm:$0xff] %v2629
      %2662 = vst [vmem:[%s366 + $0xc8] sm:$0xff] %v2630
      %2663 = vst [vmem:[%s366 + $0xd0] sm:$0xff] %v2631
      %2664 = vst [vmem:[%s366 + $0xd8] sm:$0xff] %v2632
      %2665 = vst [vmem:[%s366 + $0xe0] sm:$0xff] %v2633
      %2666 = vst [vmem:[%s366 + $0xe8] sm:$0xff] %v2634
      %2667 = vst [vmem:[%s366 + $0xf0] sm:$0xff] %v2635
      %2668 = vst [vmem:[%s366 + $0xf8] sm:$0xff] %v2636
      %s2669 = smul.u32 2, %s21
      %p2670 = scmp.lt.s32.totalorder %s2669, 3
      %s2671 = scalar_select %p2670, %s2669, 3
      %s2672 = smul.addr %s2671, 16
      %s2673 = smul.addr %s2672, 8
      %s2674 = scalar_lea.vmem %s10, %s2673
      // Predicated region
      $region61: #{_lambda_.2} parent=59 // pred_check
        %p2675 = pneg %p254
      $region62: #{_lambda_.2} parent=59 // pred_check_branch
        %2677 = sbr.rel (%p2675) target = $region64
      $region63: #{_lambda_.2} parent=59 // pred_region
        %s2678 = smul.u32 2, %s21
      $region64: #{_lambda_.2} parent=59 // pred_fallthru
        _
    $region60: #{_lambda_.2} parent=5 // pred_fallthru
      _
    %p2679 = scmp.le.s32.totalorder 2, %s16
    // Predicated region
    $region65: #{_lambda_.2} parent=5 // pred_check
      %p2680 = pneg %p2679
    $region66: #{_lambda_.2} parent=5 // pred_check_branch
      %2682 = sbr.rel (%p2680) target = $region68
    $region67: #{_lambda_.2} parent=5 // pred_region
      %s2683 = ssub.s32 %s16, 2
      // Predicated region
      $region69: #{_lambda_.2} parent=67 // pred_check
        %p2684 = pneg %p260
      $region70: #{_lambda_.2} parent=67 // pred_check_branch
        %2686 = sbr.rel (%p2684) target = $region72
      $region71: #{_lambda_.2} parent=67 // pred_region
        %s2687 = smul.u32 2, %s22
        %p2688 = scmp.lt.s32.totalorder %s2687, 3
        %s2689 = scalar_select %p2688, %s2687, 3
        %s2690 = smul.addr %s2689, 16
        %s2691 = smul.addr %s2690, 8
        %s2692 = scalar_lea.vmem %s10, %s2691
      $region72: #{_lambda_.2} parent=67 // pred_fallthru
        _
    $region68: #{_lambda_.2} parent=5 // pred_fallthru
      _
  $region6: #{_lambda_.2} parent=0 // loop_footer
    %s20 = sadd.s32 1, %s16
  $region7: #{_lambda_.2} parent=0 // loop_footer_branch
    %15 = sbr.rel target = $region3
  $region8: #{_lambda_.2} parent=0 // loop_exit
    _

</llo_original>
